<compile_context>
chip_gen: v7x
topology: tpu7x:2x2x1
jax: 0.10.0
libtpu: 0.0.40
codegen_flags: <defaults>
</compile_context>

<pallas_src>
import functools

import jax
import jax.numpy as jnp
from jax import lax
from jax.experimental import pallas as pl
from jax.experimental.pallas import tpu as pltpu

LRELU_SLOPE = 0.1


def get_padding(kernel_size: int, dilation: int = 1) -> int:
    return (kernel_size * dilation - 1) // 2


def _mxu_tile_n() -> int:
    """256-wide Cout tiles only on 256x256-MXU chips (v6e/v7x); 128 otherwise."""
    try:
        kind = jax.devices()[0].device_kind.lower()
    except Exception:
        return 128
    return 256 if ("v6" in kind or "v7" in kind) else 128


def _conv_kernel(x_ref, w_ref, b_ref, o_ref, *, k, stride, hout, slope, tb, hc):
    """(k,1)-conv + bias + optional LeakyReLU for TB rows x one Cout tile.

    x_ref: (s, TB, Lp, Cin)  phase-split, zero-padded input rows (bf16)
    w_ref: (k, Cin, TN)      conv taps for this Cout tile (bf16); VMEM-resident
                             across the whole row sweep for heavy layers
    b_ref: (1, TN)           bias tile (f32)
    o_ref: (TB, hout, TN)    output tile
    """
    tn = o_ref.shape[-1]
    bias = b_ref[...].astype(jnp.float32)                   # (1, tn)
    for bwi in range(tb):                                    # rows share the resident weight
        for h0 in range(0, hout, hc):                        # bound live f32 acc (<= ~32 vregs)
            hh = min(hc, hout - h0)
            acc = jnp.zeros((hh, tn), jnp.float32)
            # Unrolled tap chain into a single acc value (MRB-friendly on v7x).
            for t in range(k):
                r = t % stride                               # phase index
                q = t // stride                              # unit-stride offset in the phase
                xs = x_ref[r, bwi, pl.ds(h0 + q, hh), :]     # (hh, cin), unit stride
                acc = acc + jnp.dot(xs, w_ref[t],
                                    preferred_element_type=jnp.float32)
            out = acc + bias
            if slope is not None:
                out = jnp.where(out >= 0.0, out, slope * out)
            o_ref[bwi, pl.ds(h0, hh), :] = out.astype(o_ref.dtype)


def conv2d_kx1(x, w, bias, stride, pad, slope, out_dtype):
    """Conv2d kernel (k,1) / stride (s,1) / zero pad (pad,0) + optional LeakyReLU.

    x: (BW, H, Cin) activations (bf16), w: (k, Cin, Cout) bf16, bias: (Cout,) f32.
    Returns (BW, hout, Cout) in out_dtype.
    """
    BW, H, cin = x.shape
    k, _, cout = w.shape
    s = stride
    hout = (H + 2 * pad - k) // s + 1
    q_max = (k - 1) // s
    Lp = hout + q_max                 # rows per phase seen by the kernel
    total = s * Lp                    # padded length so the phase reshape is exact
    back = total - H - pad
    assert back >= 0 and hout >= 1

    # Zero pad + split into `s` unit-stride phases:
    #   phases[r, bw, h', c] = x_pad[bw, s*h' + r, c]
    x_pad = jnp.pad(x, ((0, 0), (pad, back), (0, 0)))
    if s == 1:
        phases = x_pad[None]                                       # (1, BW, Lp, Cin)
    else:
        phases = jnp.transpose(x_pad.reshape(BW, Lp, s, cin), (2, 0, 1, 3))

    # Output-channel tile width: full MXU on v6e/v7x, 128 on older chips.
    tn_pref = _mxu_tile_n()
    if cout % tn_pref == 0:
        tn = tn_pref
    elif cout % 128 == 0:
        tn = 128
    else:
        tn = cout                      # fallback (not hit by DiscriminatorP configs)

    # Row blocking: amortize per-step pipeline overhead / fill the MXU M dim
    # when hout is small; the weight tile is reused across all TB rows.
    tb = min(8, max(1, -(-256 // hout)))
    bwp = -(-BW // tb) * tb
    if bwp != BW:
        phases = jnp.pad(phases, ((0, 0), (0, bwp - BW), (0, 0), (0, 0)))

    # Chunk hout so the live f32 accumulator stays <= ~32 vregs (no spills).
    hc = max(8, (32 * 1024) // tn)     # 128 rows @ tn=256, 256 rows @ tn=128

    kern = functools.partial(
        _conv_kernel, k=k, stride=s, hout=hout, slope=slope, tb=tb, hc=hc
    )

    n_rows = bwp // tb
    n_ct = cout // tn
    heavy = cin >= 128
    if heavy:
        # Cout-tile axis OUTER: the (k,cin,tn) weight tile's block index only
        # changes with the outer axis, so it is fetched once per tile and kept
        # VMEM-resident across the whole row sweep (and per-TC on v7x).
        grid = (n_ct, n_rows)
        in_specs = [
            pl.BlockSpec((s, tb, Lp, cin), lambda j, i: (0, i, 0, 0)),
            pl.BlockSpec((k, cin, tn), lambda j, i: (0, 0, j)),
            pl.BlockSpec((1, tn), lambda j, i: (0, j)),
        ]
        out_specs = pl.BlockSpec((tb, hout, tn), lambda j, i: (i, 0, j))
    else:
        # Small weights (e.g. Cin=32, <=40 KB): per-row input block dominates,
        # keep rows outer so the input block is fetched once.
        grid = (n_rows, n_ct)
        in_specs = [
            pl.BlockSpec((s, tb, Lp, cin), lambda i, j: (0, i, 0, 0)),
            pl.BlockSpec((k, cin, tn), lambda i, j: (0, 0, j)),
            pl.BlockSpec((1, tn), lambda i, j: (0, j)),
        ]
        out_specs = pl.BlockSpec((tb, hout, tn), lambda i, j: (i, 0, j))

    y = pl.pallas_call(
        kern,
        out_shape=jax.ShapeDtypeStruct((bwp, hout, cout), out_dtype),
        grid=grid,
        in_specs=in_specs,
        out_specs=out_specs,
        compiler_params=pltpu.CompilerParams(
            dimension_semantics=("parallel", "parallel"),
            vmem_limit_bytes=32 * 1024 * 1024,
        ),
    )(phases, w, bias.reshape(1, cout))
    return y[:BW] if bwp != BW else y


def _conv_l0_jnp(x, w, bias, stride, pad, slope):
    """Cin==1 first layer: <0.1% of FLOPs and pathological for the TPU lane
    layout (1 useful lane / 128, 32-wide masked stores) -> plain XLA conv."""
    y = lax.conv_general_dilated(
        x, w, window_strides=(stride,), padding=[(pad, pad)],
        dimension_numbers=("NWC", "WIO", "NWC"),
        preferred_element_type=jnp.float32,
    )
    y = y + bias[None, None, :].astype(jnp.float32)
    y = jnp.where(y >= 0.0, y, slope * y)
    return y


def discriminator_p_forward(x, params, period):
    """x: (b, c, t) with c == 1.  Returns (flattened logits, fmap list in NCHW)."""
    b, c, t = x.shape
    if t % period != 0:
        n_pad = period - t % period
        x = jnp.pad(x, ((0, 0), (0, 0), (0, n_pad)), mode="reflect")
        t = t + n_pad
    h = t // period
    # NCHW view (b, c, h, period) -> kernel layout (b*period, h, c)
    xk = jnp.transpose(x.reshape(b, c, h, period), (0, 3, 2, 1)).reshape(
        b * period, h, c
    )
    xk = xk.astype(jnp.bfloat16)

    fmap = []
    n_layers = len(params)
    for i, (w, bias, stride, pad) in enumerate(params):
        is_post = i == n_layers - 1
        slope = None if is_post else LRELU_SLOPE      # conv_post has no LeakyReLU
        cout = w.shape[-1]
        if i == 0 and w.shape[1] == 1:
            # Degenerate Cin==1 layer handled by XLA (see perf notes above).
            y = _conv_l0_jnp(xk, w, bias, stride, pad, slope).astype(jnp.bfloat16)
        else:
            if is_post and cout < 128:
                # Lane-dense conv_post: pad Cout -> 128 with zero columns, slice after.
                cpad = 128 - cout
                w_call = jnp.pad(w, ((0, 0), (0, 0), (0, cpad)))
                b_call = jnp.pad(bias, ((0, cpad),))
            else:
                w_call, b_call = w, bias
            out_dtype = jnp.float32 if is_post else jnp.bfloat16
            y = conv2d_kx1(xk, w_call, b_call, stride, pad, slope, out_dtype)
            if is_post and cout < 128:
                y = y[:, :, :cout]
        hh = y.shape[1]
        # Back to NCHW for the fmap output (matches the PyTorch module).
        fmap.append(jnp.transpose(y.reshape(b, period, hh, cout), (0, 3, 2, 1)))
        xk = y

    # torch.flatten(x, 1, -1) on the NCHW conv_post output.
    out = fmap[-1].reshape(b, -1)
    return out, fmap


def make_params(key, kernel_size=5, stride=3):
    # (Cin, Cout, k, stride, pad) for the 5 convs + conv_post.
    # weight_norm is an identity reparameterization at init -> plain conv weights.
    cfg = [
        (1, 32, kernel_size, stride, get_padding(5, 1)),
        (32, 128, kernel_size, stride, get_padding(5, 1)),
        (128, 512, kernel_size, stride, get_padding(5, 1)),
        (512, 1024, kernel_size, stride, get_padding(5, 1)),
        (1024, 1024, kernel_size, 1, 2),
        (1024, 1, 3, 1, 1),  # conv_post
    ]
    params = []
    for cin, cout, k, s, p in cfg:
        key, kw, kb = jax.random.split(key, 3)
        scale = 1.0 / float(cin * k) ** 0.5
        w = (jax.random.normal(kw, (k, cin, cout), jnp.float32) * scale).astype(
            jnp.bfloat16
        )
        bias = jax.random.normal(kb, (cout,), jnp.float32) * 0.01
        params.append((w, bias, s, p))
    return params


if __name__ == "__main__":
    key = jax.random.PRNGKey(0)
    key, kp, kx = jax.random.split(key, 3)

    period = 3
    params = make_params(kp, kernel_size=5, stride=3)

    # Input matching the module's forward: (batch, channels=1, time)
    x = jax.random.normal(kx, (2, 1, 16), jnp.float32)

    out, fmap = discriminator_p_forward(x, params, period)
    jax.block_until_ready(out)
    for f in fmap:
        jax.block_until_ready(f)

    assert out.shape[0] == 2 and out.ndim == 2
    assert len(fmap) == 6
    print("KERNEL_OK")
</pallas_src>

<mosaic_0001>
module attributes {stable_mosaic.version = 11 : i64} {
  func.func @_conv_kernel(%arg0: i32, %arg1: i32, %arg2: memref<3x8x2x32xbf16, #tpu.memory_space<vmem>>, %arg3: memref<5x32x128xbf16, #tpu.memory_space<vmem>>, %arg4: memref<1x128xf32, #tpu.memory_space<vmem>>, %arg5: memref<8x1x128xbf16, #tpu.memory_space<vmem>>) attributes {dimension_semantics = [#tpu.dimension_semantics<parallel>, #tpu.dimension_semantics<parallel>], iteration_bounds = array<i64: 1, 1>, scalar_prefetch = 0 : i64, scratch_operands = 0 : i64, tpu.core_type = #tpu.core_type<tc>, window_params = [{transform_indices = @transform_0, window_bounds = array<i64: 3, 8, 2, 32>}, {transform_indices = @transform_1, window_bounds = array<i64: 5, 32, 128>}, {transform_indices = @transform_2, window_bounds = array<i64: 1, 128>}, {transform_indices = @transform_3, window_bounds = array<i64: 8, 1, 128>}]} {
    %c0 = arith.constant 0 : index
    %c0_0 = arith.constant 0 : index
    %0 = vector.load %arg4[%c0, %c0_0] : memref<1x128xf32, #tpu.memory_space<vmem>>, vector<1x128xf32>
    %cst = arith.constant 0.000000e+00 : f32
    %1 = vector.broadcast %cst : f32 to vector<1x128xf32>
    %c0_1 = arith.constant 0 : index
    %c0_2 = arith.constant 0 : index
    %c0_3 = arith.constant 0 : index
    %c0_4 = arith.constant 0 : index
    %2 = vector.load %arg2[%c0_1, %c0_2, %c0_3, %c0_4] : memref<3x8x2x32xbf16, #tpu.memory_space<vmem>>, vector<1x1x1x32xbf16>
    %3 = vector.shape_cast %2 : vector<1x1x1x32xbf16> to vector<1x32xbf16>
    %c0_5 = arith.constant 0 : index
    %c0_6 = arith.constant 0 : index
    %c0_7 = arith.constant 0 : index
    %4 = vector.load %arg3[%c0_5, %c0_6, %c0_7] : memref<5x32x128xbf16, #tpu.memory_space<vmem>>, vector<1x32x128xbf16>
    %5 = vector.shape_cast %4 : vector<1x32x128xbf16> to vector<32x128xbf16>
    %cst_8 = arith.constant dense<0.000000e+00> : vector<1x128xf32>
    %6 = tpu.matmul %3, %5, %cst_8 {dimension_numbers = #tpu.dot_dimension_numbers<[1], [0], [0], [1], [0, 0, 1, 1], [], []>} : vector<1x32xbf16>, vector<32x128xbf16>, vector<1x128xf32> -> vector<1x128xf32>
    %7 = arith.addf %1, %6 : vector<1x128xf32>
    %c1 = arith.constant 1 : index
    %c0_9 = arith.constant 0 : index
    %c0_10 = arith.constant 0 : index
    %c0_11 = arith.constant 0 : index
    %8 = vector.load %arg2[%c1, %c0_9, %c0_10, %c0_11] : memref<3x8x2x32xbf16, #tpu.memory_space<vmem>>, vector<1x1x1x32xbf16>
    %9 = vector.shape_cast %8 : vector<1x1x1x32xbf16> to vector<1x32xbf16>
    %c1_12 = arith.constant 1 : index
    %c0_13 = arith.constant 0 : index
    %c0_14 = arith.constant 0 : index
    %10 = vector.load %arg3[%c1_12, %c0_13, %c0_14] : memref<5x32x128xbf16, #tpu.memory_space<vmem>>, vector<1x32x128xbf16>
    %11 = vector.shape_cast %10 : vector<1x32x128xbf16> to vector<32x128xbf16>
    %cst_15 = arith.constant dense<0.000000e+00> : vector<1x128xf32>
    %12 = tpu.matmul %9, %11, %cst_15 {dimension_numbers = #tpu.dot_dimension_numbers<[1], [0], [0], [1], [0, 0, 1, 1], [], []>} : vector<1x32xbf16>, vector<32x128xbf16>, vector<1x128xf32> -> vector<1x128xf32>
    %13 = arith.addf %7, %12 : vector<1x128xf32>
    %c2 = arith.constant 2 : index
    %c0_16 = arith.constant 0 : index
    %c0_17 = arith.constant 0 : index
    %c0_18 = arith.constant 0 : index
    %14 = vector.load %arg2[%c2, %c0_16, %c0_17, %c0_18] : memref<3x8x2x32xbf16, #tpu.memory_space<vmem>>, vector<1x1x1x32xbf16>
    %15 = vector.shape_cast %14 : vector<1x1x1x32xbf16> to vector<1x32xbf16>
    %c2_19 = arith.constant 2 : index
    %c0_20 = arith.constant 0 : index
    %c0_21 = arith.constant 0 : index
    %16 = vector.load %arg3[%c2_19, %c0_20, %c0_21] : memref<5x32x128xbf16, #tpu.memory_space<vmem>>, vector<1x32x128xbf16>
    %17 = vector.shape_cast %16 : vector<1x32x128xbf16> to vector<32x128xbf16>
    %cst_22 = arith.constant dense<0.000000e+00> : vector<1x128xf32>
    %18 = tpu.matmul %15, %17, %cst_22 {dimension_numbers = #tpu.dot_dimension_numbers<[1], [0], [0], [1], [0, 0, 1, 1], [], []>} : vector<1x32xbf16>, vector<32x128xbf16>, vector<1x128xf32> -> vector<1x128xf32>
    %19 = arith.addf %13, %18 : vector<1x128xf32>
    %c0_23 = arith.constant 0 : index
    %c0_24 = arith.constant 0 : index
    %c1_25 = arith.constant 1 : index
    %c0_26 = arith.constant 0 : index
    %20 = vector.load %arg2[%c0_23, %c0_24, %c1_25, %c0_26] : memref<3x8x2x32xbf16, #tpu.memory_space<vmem>>, vector<1x1x1x32xbf16>
    %21 = vector.shape_cast %20 : vector<1x1x1x32xbf16> to vector<1x32xbf16>
    %c3 = arith.constant 3 : index
    %c0_27 = arith.constant 0 : index
    %c0_28 = arith.constant 0 : index
    %22 = vector.load %arg3[%c3, %c0_27, %c0_28] : memref<5x32x128xbf16, #tpu.memory_space<vmem>>, vector<1x32x128xbf16>
    %23 = vector.shape_cast %22 : vector<1x32x128xbf16> to vector<32x128xbf16>
    %cst_29 = arith.constant dense<0.000000e+00> : vector<1x128xf32>
    %24 = tpu.matmul %21, %23, %cst_29 {dimension_numbers = #tpu.dot_dimension_numbers<[1], [0], [0], [1], [0, 0, 1, 1], [], []>} : vector<1x32xbf16>, vector<32x128xbf16>, vector<1x128xf32> -> vector<1x128xf32>
    %25 = arith.addf %19, %24 : vector<1x128xf32>
    %c1_30 = arith.constant 1 : index
    %c0_31 = arith.constant 0 : index
    %c1_32 = arith.constant 1 : index
    %c0_33 = arith.constant 0 : index
    %26 = vector.load %arg2[%c1_30, %c0_31, %c1_32, %c0_33] : memref<3x8x2x32xbf16, #tpu.memory_space<vmem>>, vector<1x1x1x32xbf16>
    %27 = vector.shape_cast %26 : vector<1x1x1x32xbf16> to vector<1x32xbf16>
    %c4 = arith.constant 4 : index
    %c0_34 = arith.constant 0 : index
    %c0_35 = arith.constant 0 : index
    %28 = vector.load %arg3[%c4, %c0_34, %c0_35] : memref<5x32x128xbf16, #tpu.memory_space<vmem>>, vector<1x32x128xbf16>
    %29 = vector.shape_cast %28 : vector<1x32x128xbf16> to vector<32x128xbf16>
    %cst_36 = arith.constant dense<0.000000e+00> : vector<1x128xf32>
    %30 = tpu.matmul %27, %29, %cst_36 {dimension_numbers = #tpu.dot_dimension_numbers<[1], [0], [0], [1], [0, 0, 1, 1], [], []>} : vector<1x32xbf16>, vector<32x128xbf16>, vector<1x128xf32> -> vector<1x128xf32>
    %31 = arith.addf %25, %30 : vector<1x128xf32>
    %32 = arith.addf %31, %0 : vector<1x128xf32>
    %cst_37 = arith.constant 0.000000e+00 : f32
    %33 = vector.broadcast %cst_37 : f32 to vector<1x128xf32>
    %34 = arith.cmpf oge, %32, %33 : vector<1x128xf32>
    %cst_38 = arith.constant 1.000000e-01 : f32
    %35 = vector.broadcast %cst_38 : f32 to vector<1x128xf32>
    %36 = arith.mulf %35, %32 : vector<1x128xf32>
    %37 = arith.select %34, %32, %36 : vector<1x128xi1>, vector<1x128xf32>
    %38 = arith.truncf %37 : vector<1x128xf32> to vector<1x128xbf16>
    %c0_39 = arith.constant 0 : index
    %c0_40 = arith.constant 0 : index
    %c0_41 = arith.constant 0 : index
    %39 = vector.load %arg5[%c0_39, %c0_40, %c0_41] : memref<8x1x128xbf16, #tpu.memory_space<vmem>>, vector<1x1x128xbf16>
    %40 = vector.shape_cast %39 : vector<1x1x128xbf16> to vector<1x128xbf16>
    %41 = vector.shape_cast %38 : vector<1x128xbf16> to vector<1x1x128xbf16>
    tpu.vector_store %arg5[%c0_39, %c0_40, %c0_41], %41 {strides = array<i32>} : memref<8x1x128xbf16, #tpu.memory_space<vmem>>, vector<1x1x128xbf16>,
    %cst_42 = arith.constant 0.000000e+00 : f32
    %42 = vector.broadcast %cst_42 : f32 to vector<1x128xf32>
    %c0_43 = arith.constant 0 : index
    %c1_44 = arith.constant 1 : index
    %c0_45 = arith.constant 0 : index
    %c0_46 = arith.constant 0 : index
    %43 = vector.load %arg2[%c0_43, %c1_44, %c0_45, %c0_46] : memref<3x8x2x32xbf16, #tpu.memory_space<vmem>>, vector<1x1x1x32xbf16>
    %44 = vector.shape_cast %43 : vector<1x1x1x32xbf16> to vector<1x32xbf16>
    %c0_47 = arith.constant 0 : index
    %c0_48 = arith.constant 0 : index
    %c0_49 = arith.constant 0 : index
    %45 = vector.load %arg3[%c0_47, %c0_48, %c0_49] : memref<5x32x128xbf16, #tpu.memory_space<vmem>>, vector<1x32x128xbf16>
    %46 = vector.shape_cast %45 : vector<1x32x128xbf16> to vector<32x128xbf16>
    %cst_50 = arith.constant dense<0.000000e+00> : vector<1x128xf32>
    %47 = tpu.matmul %44, %46, %cst_50 {dimension_numbers = #tpu.dot_dimension_numbers<[1], [0], [0], [1], [0, 0, 1, 1], [], []>} : vector<1x32xbf16>, vector<32x128xbf16>, vector<1x128xf32> -> vector<1x128xf32>
    %48 = arith.addf %42, %47 : vector<1x128xf32>
    %c1_51 = arith.constant 1 : index
    %c1_52 = arith.constant 1 : index
    %c0_53 = arith.constant 0 : index
    %c0_54 = arith.constant 0 : index
    %49 = vector.load %arg2[%c1_51, %c1_52, %c0_53, %c0_54] : memref<3x8x2x32xbf16, #tpu.memory_space<vmem>>, vector<1x1x1x32xbf16>
    %50 = vector.shape_cast %49 : vector<1x1x1x32xbf16> to vector<1x32xbf16>
    %c1_55 = arith.constant 1 : index
    %c0_56 = arith.constant 0 : index
    %c0_57 = arith.constant 0 : index
    %51 = vector.load %arg3[%c1_55, %c0_56, %c0_57] : memref<5x32x128xbf16, #tpu.memory_space<vmem>>, vector<1x32x128xbf16>
    %52 = vector.shape_cast %51 : vector<1x32x128xbf16> to vector<32x128xbf16>
    %cst_58 = arith.constant dense<0.000000e+00> : vector<1x128xf32>
    %53 = tpu.matmul %50, %52, %cst_58 {dimension_numbers = #tpu.dot_dimension_numbers<[1], [0], [0], [1], [0, 0, 1, 1], [], []>} : vector<1x32xbf16>, vector<32x128xbf16>, vector<1x128xf32> -> vector<1x128xf32>
    %54 = arith.addf %48, %53 : vector<1x128xf32>
    %c2_59 = arith.constant 2 : index
    %c1_60 = arith.constant 1 : index
    %c0_61 = arith.constant 0 : index
    %c0_62 = arith.constant 0 : index
    %55 = vector.load %arg2[%c2_59, %c1_60, %c0_61, %c0_62] : memref<3x8x2x32xbf16, #tpu.memory_space<vmem>>, vector<1x1x1x32xbf16>
    %56 = vector.shape_cast %55 : vector<1x1x1x32xbf16> to vector<1x32xbf16>
    %c2_63 = arith.constant 2 : index
    %c0_64 = arith.constant 0 : index
    %c0_65 = arith.constant 0 : index
    %57 = vector.load %arg3[%c2_63, %c0_64, %c0_65] : memref<5x32x128xbf16, #tpu.memory_space<vmem>>, vector<1x32x128xbf16>
    %58 = vector.shape_cast %57 : vector<1x32x128xbf16> to vector<32x128xbf16>
    %cst_66 = arith.constant dense<0.000000e+00> : vector<1x128xf32>
    %59 = tpu.matmul %56, %58, %cst_66 {dimension_numbers = #tpu.dot_dimension_numbers<[1], [0], [0], [1], [0, 0, 1, 1], [], []>} : vector<1x32xbf16>, vector<32x128xbf16>, vector<1x128xf32> -> vector<1x128xf32>
    %60 = arith.addf %54, %59 : vector<1x128xf32>
    %c0_67 = arith.constant 0 : index
    %c1_68 = arith.constant 1 : index
    %c1_69 = arith.constant 1 : index
    %c0_70 = arith.constant 0 : index
    %61 = vector.load %arg2[%c0_67, %c1_68, %c1_69, %c0_70] : memref<3x8x2x32xbf16, #tpu.memory_space<vmem>>, vector<1x1x1x32xbf16>
    %62 = vector.shape_cast %61 : vector<1x1x1x32xbf16> to vector<1x32xbf16>
    %c3_71 = arith.constant 3 : index
    %c0_72 = arith.constant 0 : index
    %c0_73 = arith.constant 0 : index
    %63 = vector.load %arg3[%c3_71, %c0_72, %c0_73] : memref<5x32x128xbf16, #tpu.memory_space<vmem>>, vector<1x32x128xbf16>
    %64 = vector.shape_cast %63 : vector<1x32x128xbf16> to vector<32x128xbf16>
    %cst_74 = arith.constant dense<0.000000e+00> : vector<1x128xf32>
    %65 = tpu.matmul %62, %64, %cst_74 {dimension_numbers = #tpu.dot_dimension_numbers<[1], [0], [0], [1], [0, 0, 1, 1], [], []>} : vector<1x32xbf16>, vector<32x128xbf16>, vector<1x128xf32> -> vector<1x128xf32>
    %66 = arith.addf %60, %65 : vector<1x128xf32>
    %c1_75 = arith.constant 1 : index
    %c1_76 = arith.constant 1 : index
    %c1_77 = arith.constant 1 : index
    %c0_78 = arith.constant 0 : index
    %67 = vector.load %arg2[%c1_75, %c1_76, %c1_77, %c0_78] : memref<3x8x2x32xbf16, #tpu.memory_space<vmem>>, vector<1x1x1x32xbf16>
    %68 = vector.shape_cast %67 : vector<1x1x1x32xbf16> to vector<1x32xbf16>
    %c4_79 = arith.constant 4 : index
    %c0_80 = arith.constant 0 : index
    %c0_81 = arith.constant 0 : index
    %69 = vector.load %arg3[%c4_79, %c0_80, %c0_81] : memref<5x32x128xbf16, #tpu.memory_space<vmem>>, vector<1x32x128xbf16>
    %70 = vector.shape_cast %69 : vector<1x32x128xbf16> to vector<32x128xbf16>
    %cst_82 = arith.constant dense<0.000000e+00> : vector<1x128xf32>
    %71 = tpu.matmul %68, %70, %cst_82 {dimension_numbers = #tpu.dot_dimension_numbers<[1], [0], [0], [1], [0, 0, 1, 1], [], []>} : vector<1x32xbf16>, vector<32x128xbf16>, vector<1x128xf32> -> vector<1x128xf32>
    %72 = arith.addf %66, %71 : vector<1x128xf32>
    %73 = arith.addf %72, %0 : vector<1x128xf32>
    %cst_83 = arith.constant 0.000000e+00 : f32
    %74 = vector.broadcast %cst_83 : f32 to vector<1x128xf32>
    %75 = arith.cmpf oge, %73, %74 : vector<1x128xf32>
    %cst_84 = arith.constant 1.000000e-01 : f32
    %76 = vector.broadcast %cst_84 : f32 to vector<1x128xf32>
    %77 = arith.mulf %76, %73 : vector<1x128xf32>
    %78 = arith.select %75, %73, %77 : vector<1x128xi1>, vector<1x128xf32>
    %79 = arith.truncf %78 : vector<1x128xf32> to vector<1x128xbf16>
    %c1_85 = arith.constant 1 : index
    %c0_86 = arith.constant 0 : index
    %c0_87 = arith.constant 0 : index
    %80 = vector.load %arg5[%c1_85, %c0_86, %c0_87] : memref<8x1x128xbf16, #tpu.memory_space<vmem>>, vector<1x1x128xbf16>
    %81 = vector.shape_cast %80 : vector<1x1x128xbf16> to vector<1x128xbf16>
    %82 = vector.shape_cast %79 : vector<1x128xbf16> to vector<1x1x128xbf16>
    tpu.vector_store %arg5[%c1_85, %c0_86, %c0_87], %82 {strides = array<i32>} : memref<8x1x128xbf16, #tpu.memory_space<vmem>>, vector<1x1x128xbf16>,
    %cst_88 = arith.constant 0.000000e+00 : f32
    %83 = vector.broadcast %cst_88 : f32 to vector<1x128xf32>
    %c0_89 = arith.constant 0 : index
    %c2_90 = arith.constant 2 : index
    %c0_91 = arith.constant 0 : index
    %c0_92 = arith.constant 0 : index
    %84 = vector.load %arg2[%c0_89, %c2_90, %c0_91, %c0_92] : memref<3x8x2x32xbf16, #tpu.memory_space<vmem>>, vector<1x1x1x32xbf16>
    %85 = vector.shape_cast %84 : vector<1x1x1x32xbf16> to vector<1x32xbf16>
    %c0_93 = arith.constant 0 : index
    %c0_94 = arith.constant 0 : index
    %c0_95 = arith.constant 0 : index
    %86 = vector.load %arg3[%c0_93, %c0_94, %c0_95] : memref<5x32x128xbf16, #tpu.memory_space<vmem>>, vector<1x32x128xbf16>
    %87 = vector.shape_cast %86 : vector<1x32x128xbf16> to vector<32x128xbf16>
    %cst_96 = arith.constant dense<0.000000e+00> : vector<1x128xf32>
    %88 = tpu.matmul %85, %87, %cst_96 {dimension_numbers = #tpu.dot_dimension_numbers<[1], [0], [0], [1], [0, 0, 1, 1], [], []>} : vector<1x32xbf16>, vector<32x128xbf16>, vector<1x128xf32> -> vector<1x128xf32>
    %89 = arith.addf %83, %88 : vector<1x128xf32>
    %c1_97 = arith.constant 1 : index
    %c2_98 = arith.constant 2 : index
    %c0_99 = arith.constant 0 : index
    %c0_100 = arith.constant 0 : index
    %90 = vector.load %arg2[%c1_97, %c2_98, %c0_99, %c0_100] : memref<3x8x2x32xbf16, #tpu.memory_space<vmem>>, vector<1x1x1x32xbf16>
    %91 = vector.shape_cast %90 : vector<1x1x1x32xbf16> to vector<1x32xbf16>
    %c1_101 = arith.constant 1 : index
    %c0_102 = arith.constant 0 : index
    %c0_103 = arith.constant 0 : index
    %92 = vector.load %arg3[%c1_101, %c0_102, %c0_103] : memref<5x32x128xbf16, #tpu.memory_space<vmem>>, vector<1x32x128xbf16>
    %93 = vector.shape_cast %92 : vector<1x32x128xbf16> to vector<32x128xbf16>
    %cst_104 = arith.constant dense<0.000000e+00> : vector<1x128xf32>
    %94 = tpu.matmul %91, %93, %cst_104 {dimension_numbers = #tpu.dot_dimension_numbers<[1], [0], [0], [1], [0, 0, 1, 1], [], []>} : vector<1x32xbf16>, vector<32x128xbf16>, vector<1x128xf32> -> vector<1x128xf32>
    %95 = arith.addf %89, %94 : vector<1x128xf32>
    %c2_105 = arith.constant 2 : index
    %c2_106 = arith.constant 2 : index
    %c0_107 = arith.constant 0 : index
    %c0_108 = arith.constant 0 : index
    %96 = vector.load %arg2[%c2_105, %c2_106, %c0_107, %c0_108] : memref<3x8x2x32xbf16, #tpu.memory_space<vmem>>, vector<1x1x1x32xbf16>
    %97 = vector.shape_cast %96 : vector<1x1x1x32xbf16> to vector<1x32xbf16>
    %c2_109 = arith.constant 2 : index
    %c0_110 = arith.constant 0 : index
    %c0_111 = arith.constant 0 : index
    %98 = vector.load %arg3[%c2_109, %c0_110, %c0_111] : memref<5x32x128xbf16, #tpu.memory_space<vmem>>, vector<1x32x128xbf16>
    %99 = vector.shape_cast %98 : vector<1x32x128xbf16> to vector<32x128xbf16>
    %cst_112 = arith.constant dense<0.000000e+00> : vector<1x128xf32>
    %100 = tpu.matmul %97, %99, %cst_112 {dimension_numbers = #tpu.dot_dimension_numbers<[1], [0], [0], [1], [0, 0, 1, 1], [], []>} : vector<1x32xbf16>, vector<32x128xbf16>, vector<1x128xf32> -> vector<1x128xf32>
    %101 = arith.addf %95, %100 : vector<1x128xf32>
    %c0_113 = arith.constant 0 : index
    %c2_114 = arith.constant 2 : index
    %c1_115 = arith.constant 1 : index
    %c0_116 = arith.constant 0 : index
    %102 = vector.load %arg2[%c0_113, %c2_114, %c1_115, %c0_116] : memref<3x8x2x32xbf16, #tpu.memory_space<vmem>>, vector<1x1x1x32xbf16>
    %103 = vector.shape_cast %102 : vector<1x1x1x32xbf16> to vector<1x32xbf16>
    %c3_117 = arith.constant 3 : index
    %c0_118 = arith.constant 0 : index
    %c0_119 = arith.constant 0 : index
    %104 = vector.load %arg3[%c3_117, %c0_118, %c0_119] : memref<5x32x128xbf16, #tpu.memory_space<vmem>>, vector<1x32x128xbf16>
    %105 = vector.shape_cast %104 : vector<1x32x128xbf16> to vector<32x128xbf16>
    %cst_120 = arith.constant dense<0.000000e+00> : vector<1x128xf32>
    %106 = tpu.matmul %103, %105, %cst_120 {dimension_numbers = #tpu.dot_dimension_numbers<[1], [0], [0], [1], [0, 0, 1, 1], [], []>} : vector<1x32xbf16>, vector<32x128xbf16>, vector<1x128xf32> -> vector<1x128xf32>
    %107 = arith.addf %101, %106 : vector<1x128xf32>
    %c1_121 = arith.constant 1 : index
    %c2_122 = arith.constant 2 : index
    %c1_123 = arith.constant 1 : index
    %c0_124 = arith.constant 0 : index
    %108 = vector.load %arg2[%c1_121, %c2_122, %c1_123, %c0_124] : memref<3x8x2x32xbf16, #tpu.memory_space<vmem>>, vector<1x1x1x32xbf16>
    %109 = vector.shape_cast %108 : vector<1x1x1x32xbf16> to vector<1x32xbf16>
    %c4_125 = arith.constant 4 : index
    %c0_126 = arith.constant 0 : index
    %c0_127 = arith.constant 0 : index
    %110 = vector.load %arg3[%c4_125, %c0_126, %c0_127] : memref<5x32x128xbf16, #tpu.memory_space<vmem>>, vector<1x32x128xbf16>
    %111 = vector.shape_cast %110 : vector<1x32x128xbf16> to vector<32x128xbf16>
    %cst_128 = arith.constant dense<0.000000e+00> : vector<1x128xf32>
    %112 = tpu.matmul %109, %111, %cst_128 {dimension_numbers = #tpu.dot_dimension_numbers<[1], [0], [0], [1], [0, 0, 1, 1], [], []>} : vector<1x32xbf16>, vector<32x128xbf16>, vector<1x128xf32> -> vector<1x128xf32>
    %113 = arith.addf %107, %112 : vector<1x128xf32>
    %114 = arith.addf %113, %0 : vector<1x128xf32>
    %cst_129 = arith.constant 0.000000e+00 : f32
    %115 = vector.broadcast %cst_129 : f32 to vector<1x128xf32>
    %116 = arith.cmpf oge, %114, %115 : vector<1x128xf32>
    %cst_130 = arith.constant 1.000000e-01 : f32
    %117 = vector.broadcast %cst_130 : f32 to vector<1x128xf32>
    %118 = arith.mulf %117, %114 : vector<1x128xf32>
    %119 = arith.select %116, %114, %118 : vector<1x128xi1>, vector<1x128xf32>
    %120 = arith.truncf %119 : vector<1x128xf32> to vector<1x128xbf16>
    %c2_131 = arith.constant 2 : index
    %c0_132 = arith.constant 0 : index
    %c0_133 = arith.constant 0 : index
    %121 = vector.load %arg5[%c2_131, %c0_132, %c0_133] : memref<8x1x128xbf16, #tpu.memory_space<vmem>>, vector<1x1x128xbf16>
    %122 = vector.shape_cast %121 : vector<1x1x128xbf16> to vector<1x128xbf16>
    %123 = vector.shape_cast %120 : vector<1x128xbf16> to vector<1x1x128xbf16>
    tpu.vector_store %arg5[%c2_131, %c0_132, %c0_133], %123 {strides = array<i32>} : memref<8x1x128xbf16, #tpu.memory_space<vmem>>, vector<1x1x128xbf16>,
    %cst_134 = arith.constant 0.000000e+00 : f32
    %124 = vector.broadcast %cst_134 : f32 to vector<1x128xf32>
    %c0_135 = arith.constant 0 : index
    %c3_136 = arith.constant 3 : index
    %c0_137 = arith.constant 0 : index
    %c0_138 = arith.constant 0 : index
    %125 = vector.load %arg2[%c0_135, %c3_136, %c0_137, %c0_138] : memref<3x8x2x32xbf16, #tpu.memory_space<vmem>>, vector<1x1x1x32xbf16>
    %126 = vector.shape_cast %125 : vector<1x1x1x32xbf16> to vector<1x32xbf16>
    %c0_139 = arith.constant 0 : index
    %c0_140 = arith.constant 0 : index
    %c0_141 = arith.constant 0 : index
    %127 = vector.load %arg3[%c0_139, %c0_140, %c0_141] : memref<5x32x128xbf16, #tpu.memory_space<vmem>>, vector<1x32x128xbf16>
    %128 = vector.shape_cast %127 : vector<1x32x128xbf16> to vector<32x128xbf16>
    %cst_142 = arith.constant dense<0.000000e+00> : vector<1x128xf32>
    %129 = tpu.matmul %126, %128, %cst_142 {dimension_numbers = #tpu.dot_dimension_numbers<[1], [0], [0], [1], [0, 0, 1, 1], [], []>} : vector<1x32xbf16>, vector<32x128xbf16>, vector<1x128xf32> -> vector<1x128xf32>
    %130 = arith.addf %124, %129 : vector<1x128xf32>
    %c1_143 = arith.constant 1 : index
    %c3_144 = arith.constant 3 : index
    %c0_145 = arith.constant 0 : index
    %c0_146 = arith.constant 0 : index
    %131 = vector.load %arg2[%c1_143, %c3_144, %c0_145, %c0_146] : memref<3x8x2x32xbf16, #tpu.memory_space<vmem>>, vector<1x1x1x32xbf16>
    %132 = vector.shape_cast %131 : vector<1x1x1x32xbf16> to vector<1x32xbf16>
    %c1_147 = arith.constant 1 : index
    %c0_148 = arith.constant 0 : index
    %c0_149 = arith.constant 0 : index
    %133 = vector.load %arg3[%c1_147, %c0_148, %c0_149] : memref<5x32x128xbf16, #tpu.memory_space<vmem>>, vector<1x32x128xbf16>
    %134 = vector.shape_cast %133 : vector<1x32x128xbf16> to vector<32x128xbf16>
    %cst_150 = arith.constant dense<0.000000e+00> : vector<1x128xf32>
    %135 = tpu.matmul %132, %134, %cst_150 {dimension_numbers = #tpu.dot_dimension_numbers<[1], [0], [0], [1], [0, 0, 1, 1], [], []>} : vector<1x32xbf16>, vector<32x128xbf16>, vector<1x128xf32> -> vector<1x128xf32>
    %136 = arith.addf %130, %135 : vector<1x128xf32>
    %c2_151 = arith.constant 2 : index
    %c3_152 = arith.constant 3 : index
    %c0_153 = arith.constant 0 : index
    %c0_154 = arith.constant 0 : index
    %137 = vector.load %arg2[%c2_151, %c3_152, %c0_153, %c0_154] : memref<3x8x2x32xbf16, #tpu.memory_space<vmem>>, vector<1x1x1x32xbf16>
    %138 = vector.shape_cast %137 : vector<1x1x1x32xbf16> to vector<1x32xbf16>
    %c2_155 = arith.constant 2 : index
    %c0_156 = arith.constant 0 : index
    %c0_157 = arith.constant 0 : index
    %139 = vector.load %arg3[%c2_155, %c0_156, %c0_157] : memref<5x32x128xbf16, #tpu.memory_space<vmem>>, vector<1x32x128xbf16>
    %140 = vector.shape_cast %139 : vector<1x32x128xbf16> to vector<32x128xbf16>
    %cst_158 = arith.constant dense<0.000000e+00> : vector<1x128xf32>
    %141 = tpu.matmul %138, %140, %cst_158 {dimension_numbers = #tpu.dot_dimension_numbers<[1], [0], [0], [1], [0, 0, 1, 1], [], []>} : vector<1x32xbf16>, vector<32x128xbf16>, vector<1x128xf32> -> vector<1x128xf32>
    %142 = arith.addf %136, %141 : vector<1x128xf32>
    %c0_159 = arith.constant 0 : index
    %c3_160 = arith.constant 3 : index
    %c1_161 = arith.constant 1 : index
    %c0_162 = arith.constant 0 : index
    %143 = vector.load %arg2[%c0_159, %c3_160, %c1_161, %c0_162] : memref<3x8x2x32xbf16, #tpu.memory_space<vmem>>, vector<1x1x1x32xbf16>
    %144 = vector.shape_cast %143 : vector<1x1x1x32xbf16> to vector<1x32xbf16>
    %c3_163 = arith.constant 3 : index
    %c0_164 = arith.constant 0 : index
    %c0_165 = arith.constant 0 : index
    %145 = vector.load %arg3[%c3_163, %c0_164, %c0_165] : memref<5x32x128xbf16, #tpu.memory_space<vmem>>, vector<1x32x128xbf16>
    %146 = vector.shape_cast %145 : vector<1x32x128xbf16> to vector<32x128xbf16>
    %cst_166 = arith.constant dense<0.000000e+00> : vector<1x128xf32>
    %147 = tpu.matmul %144, %146, %cst_166 {dimension_numbers = #tpu.dot_dimension_numbers<[1], [0], [0], [1], [0, 0, 1, 1], [], []>} : vector<1x32xbf16>, vector<32x128xbf16>, vector<1x128xf32> -> vector<1x128xf32>
    %148 = arith.addf %142, %147 : vector<1x128xf32>
    %c1_167 = arith.constant 1 : index
    %c3_168 = arith.constant 3 : index
    %c1_169 = arith.constant 1 : index
    %c0_170 = arith.constant 0 : index
    %149 = vector.load %arg2[%c1_167, %c3_168, %c1_169, %c0_170] : memref<3x8x2x32xbf16, #tpu.memory_space<vmem>>, vector<1x1x1x32xbf16>
    %150 = vector.shape_cast %149 : vector<1x1x1x32xbf16> to vector<1x32xbf16>
    %c4_171 = arith.constant 4 : index
    %c0_172 = arith.constant 0 : index
    %c0_173 = arith.constant 0 : index
    %151 = vector.load %arg3[%c4_171, %c0_172, %c0_173] : memref<5x32x128xbf16, #tpu.memory_space<vmem>>, vector<1x32x128xbf16>
    %152 = vector.shape_cast %151 : vector<1x32x128xbf16> to vector<32x128xbf16>
    %cst_174 = arith.constant dense<0.000000e+00> : vector<1x128xf32>
    %153 = tpu.matmul %150, %152, %cst_174 {dimension_numbers = #tpu.dot_dimension_numbers<[1], [0], [0], [1], [0, 0, 1, 1], [], []>} : vector<1x32xbf16>, vector<32x128xbf16>, vector<1x128xf32> -> vector<1x128xf32>
    %154 = arith.addf %148, %153 : vector<1x128xf32>
    %155 = arith.addf %154, %0 : vector<1x128xf32>
    %cst_175 = arith.constant 0.000000e+00 : f32
    %156 = vector.broadcast %cst_175 : f32 to vector<1x128xf32>
    %157 = arith.cmpf oge, %155, %156 : vector<1x128xf32>
    %cst_176 = arith.constant 1.000000e-01 : f32
    %158 = vector.broadcast %cst_176 : f32 to vector<1x128xf32>
    %159 = arith.mulf %158, %155 : vector<1x128xf32>
    %160 = arith.select %157, %155, %159 : vector<1x128xi1>, vector<1x128xf32>
    %161 = arith.truncf %160 : vector<1x128xf32> to vector<1x128xbf16>
    %c3_177 = arith.constant 3 : index
    %c0_178 = arith.constant 0 : index
    %c0_179 = arith.constant 0 : index
    %162 = vector.load %arg5[%c3_177, %c0_178, %c0_179] : memref<8x1x128xbf16, #tpu.memory_space<vmem>>, vector<1x1x128xbf16>
    %163 = vector.shape_cast %162 : vector<1x1x128xbf16> to vector<1x128xbf16>
    %164 = vector.shape_cast %161 : vector<1x128xbf16> to vector<1x1x128xbf16>
    tpu.vector_store %arg5[%c3_177, %c0_178, %c0_179], %164 {strides = array<i32>} : memref<8x1x128xbf16, #tpu.memory_space<vmem>>, vector<1x1x128xbf16>,
    %cst_180 = arith.constant 0.000000e+00 : f32
    %165 = vector.broadcast %cst_180 : f32 to vector<1x128xf32>
    %c0_181 = arith.constant 0 : index
    %c4_182 = arith.constant 4 : index
    %c0_183 = arith.constant 0 : index
    %c0_184 = arith.constant 0 : index
    %166 = vector.load %arg2[%c0_181, %c4_182, %c0_183, %c0_184] : memref<3x8x2x32xbf16, #tpu.memory_space<vmem>>, vector<1x1x1x32xbf16>
    %167 = vector.shape_cast %166 : vector<1x1x1x32xbf16> to vector<1x32xbf16>
    %c0_185 = arith.constant 0 : index
    %c0_186 = arith.constant 0 : index
    %c0_187 = arith.constant 0 : index
    %168 = vector.load %arg3[%c0_185, %c0_186, %c0_187] : memref<5x32x128xbf16, #tpu.memory_space<vmem>>, vector<1x32x128xbf16>
    %169 = vector.shape_cast %168 : vector<1x32x128xbf16> to vector<32x128xbf16>
    %cst_188 = arith.constant dense<0.000000e+00> : vector<1x128xf32>
    %170 = tpu.matmul %167, %169, %cst_188 {dimension_numbers = #tpu.dot_dimension_numbers<[1], [0], [0], [1], [0, 0, 1, 1], [], []>} : vector<1x32xbf16>, vector<32x128xbf16>, vector<1x128xf32> -> vector<1x128xf32>
    %171 = arith.addf %165, %170 : vector<1x128xf32>
    %c1_189 = arith.constant 1 : index
    %c4_190 = arith.constant 4 : index
    %c0_191 = arith.constant 0 : index
    %c0_192 = arith.constant 0 : index
    %172 = vector.load %arg2[%c1_189, %c4_190, %c0_191, %c0_192] : memref<3x8x2x32xbf16, #tpu.memory_space<vmem>>, vector<1x1x1x32xbf16>
    %173 = vector.shape_cast %172 : vector<1x1x1x32xbf16> to vector<1x32xbf16>
    %c1_193 = arith.constant 1 : index
    %c0_194 = arith.constant 0 : index
    %c0_195 = arith.constant 0 : index
    %174 = vector.load %arg3[%c1_193, %c0_194, %c0_195] : memref<5x32x128xbf16, #tpu.memory_space<vmem>>, vector<1x32x128xbf16>
    %175 = vector.shape_cast %174 : vector<1x32x128xbf16> to vector<32x128xbf16>
    %cst_196 = arith.constant dense<0.000000e+00> : vector<1x128xf32>
    %176 = tpu.matmul %173, %175, %cst_196 {dimension_numbers = #tpu.dot_dimension_numbers<[1], [0], [0], [1], [0, 0, 1, 1], [], []>} : vector<1x32xbf16>, vector<32x128xbf16>, vector<1x128xf32> -> vector<1x128xf32>
    %177 = arith.addf %171, %176 : vector<1x128xf32>
    %c2_197 = arith.constant 2 : index
    %c4_198 = arith.constant 4 : index
    %c0_199 = arith.constant 0 : index
    %c0_200 = arith.constant 0 : index
    %178 = vector.load %arg2[%c2_197, %c4_198, %c0_199, %c0_200] : memref<3x8x2x32xbf16, #tpu.memory_space<vmem>>, vector<1x1x1x32xbf16>
    %179 = vector.shape_cast %178 : vector<1x1x1x32xbf16> to vector<1x32xbf16>
    %c2_201 = arith.constant 2 : index
    %c0_202 = arith.constant 0 : index
    %c0_203 = arith.constant 0 : index
    %180 = vector.load %arg3[%c2_201, %c0_202, %c0_203] : memref<5x32x128xbf16, #tpu.memory_space<vmem>>, vector<1x32x128xbf16>
    %181 = vector.shape_cast %180 : vector<1x32x128xbf16> to vector<32x128xbf16>
    %cst_204 = arith.constant dense<0.000000e+00> : vector<1x128xf32>
    %182 = tpu.matmul %179, %181, %cst_204 {dimension_numbers = #tpu.dot_dimension_numbers<[1], [0], [0], [1], [0, 0, 1, 1], [], []>} : vector<1x32xbf16>, vector<32x128xbf16>, vector<1x128xf32> -> vector<1x128xf32>
    %183 = arith.addf %177, %182 : vector<1x128xf32>
    %c0_205 = arith.constant 0 : index
    %c4_206 = arith.constant 4 : index
    %c1_207 = arith.constant 1 : index
    %c0_208 = arith.constant 0 : index
    %184 = vector.load %arg2[%c0_205, %c4_206, %c1_207, %c0_208] : memref<3x8x2x32xbf16, #tpu.memory_space<vmem>>, vector<1x1x1x32xbf16>
    %185 = vector.shape_cast %184 : vector<1x1x1x32xbf16> to vector<1x32xbf16>
    %c3_209 = arith.constant 3 : index
    %c0_210 = arith.constant 0 : index
    %c0_211 = arith.constant 0 : index
    %186 = vector.load %arg3[%c3_209, %c0_210, %c0_211] : memref<5x32x128xbf16, #tpu.memory_space<vmem>>, vector<1x32x128xbf16>
    %187 = vector.shape_cast %186 : vector<1x32x128xbf16> to vector<32x128xbf16>
    %cst_212 = arith.constant dense<0.000000e+00> : vector<1x128xf32>
    %188 = tpu.matmul %185, %187, %cst_212 {dimension_numbers = #tpu.dot_dimension_numbers<[1], [0], [0], [1], [0, 0, 1, 1], [], []>} : vector<1x32xbf16>, vector<32x128xbf16>, vector<1x128xf32> -> vector<1x128xf32>
    %189 = arith.addf %183, %188 : vector<1x128xf32>
    %c1_213 = arith.constant 1 : index
    %c4_214 = arith.constant 4 : index
    %c1_215 = arith.constant 1 : index
    %c0_216 = arith.constant 0 : index
    %190 = vector.load %arg2[%c1_213, %c4_214, %c1_215, %c0_216] : memref<3x8x2x32xbf16, #tpu.memory_space<vmem>>, vector<1x1x1x32xbf16>
    %191 = vector.shape_cast %190 : vector<1x1x1x32xbf16> to vector<1x32xbf16>
    %c4_217 = arith.constant 4 : index
    %c0_218 = arith.constant 0 : index
    %c0_219 = arith.constant 0 : index
    %192 = vector.load %arg3[%c4_217, %c0_218, %c0_219] : memref<5x32x128xbf16, #tpu.memory_space<vmem>>, vector<1x32x128xbf16>
    %193 = vector.shape_cast %192 : vector<1x32x128xbf16> to vector<32x128xbf16>
    %cst_220 = arith.constant dense<0.000000e+00> : vector<1x128xf32>
    %194 = tpu.matmul %191, %193, %cst_220 {dimension_numbers = #tpu.dot_dimension_numbers<[1], [0], [0], [1], [0, 0, 1, 1], [], []>} : vector<1x32xbf16>, vector<32x128xbf16>, vector<1x128xf32> -> vector<1x128xf32>
    %195 = arith.addf %189, %194 : vector<1x128xf32>
    %196 = arith.addf %195, %0 : vector<1x128xf32>
    %cst_221 = arith.constant 0.000000e+00 : f32
    %197 = vector.broadcast %cst_221 : f32 to vector<1x128xf32>
    %198 = arith.cmpf oge, %196, %197 : vector<1x128xf32>
    %cst_222 = arith.constant 1.000000e-01 : f32
    %199 = vector.broadcast %cst_222 : f32 to vector<1x128xf32>
    %200 = arith.mulf %199, %196 : vector<1x128xf32>
    %201 = arith.select %198, %196, %200 : vector<1x128xi1>, vector<1x128xf32>
    %202 = arith.truncf %201 : vector<1x128xf32> to vector<1x128xbf16>
    %c4_223 = arith.constant 4 : index
    %c0_224 = arith.constant 0 : index
    %c0_225 = arith.constant 0 : index
    %203 = vector.load %arg5[%c4_223, %c0_224, %c0_225] : memref<8x1x128xbf16, #tpu.memory_space<vmem>>, vector<1x1x128xbf16>
    %204 = vector.shape_cast %203 : vector<1x1x128xbf16> to vector<1x128xbf16>
    %205 = vector.shape_cast %202 : vector<1x128xbf16> to vector<1x1x128xbf16>
    tpu.vector_store %arg5[%c4_223, %c0_224, %c0_225], %205 {strides = array<i32>} : memref<8x1x128xbf16, #tpu.memory_space<vmem>>, vector<1x1x128xbf16>,
    %cst_226 = arith.constant 0.000000e+00 : f32
    %206 = vector.broadcast %cst_226 : f32 to vector<1x128xf32>
    %c0_227 = arith.constant 0 : index
    %c5 = arith.constant 5 : index
    %c0_228 = arith.constant 0 : index
    %c0_229 = arith.constant 0 : index
    %207 = vector.load %arg2[%c0_227, %c5, %c0_228, %c0_229] : memref<3x8x2x32xbf16, #tpu.memory_space<vmem>>, vector<1x1x1x32xbf16>
    %208 = vector.shape_cast %207 : vector<1x1x1x32xbf16> to vector<1x32xbf16>
    %c0_230 = arith.constant 0 : index
    %c0_231 = arith.constant 0 : index
    %c0_232 = arith.constant 0 : index
    %209 = vector.load %arg3[%c0_230, %c0_231, %c0_232] : memref<5x32x128xbf16, #tpu.memory_space<vmem>>, vector<1x32x128xbf16>
    %210 = vector.shape_cast %209 : vector<1x32x128xbf16> to vector<32x128xbf16>
    %cst_233 = arith.constant dense<0.000000e+00> : vector<1x128xf32>
    %211 = tpu.matmul %208, %210, %cst_233 {dimension_numbers = #tpu.dot_dimension_numbers<[1], [0], [0], [1], [0, 0, 1, 1], [], []>} : vector<1x32xbf16>, vector<32x128xbf16>, vector<1x128xf32> -> vector<1x128xf32>
    %212 = arith.addf %206, %211 : vector<1x128xf32>
    %c1_234 = arith.constant 1 : index
    %c5_235 = arith.constant 5 : index
    %c0_236 = arith.constant 0 : index
    %c0_237 = arith.constant 0 : index
    %213 = vector.load %arg2[%c1_234, %c5_235, %c0_236, %c0_237] : memref<3x8x2x32xbf16, #tpu.memory_space<vmem>>, vector<1x1x1x32xbf16>
    %214 = vector.shape_cast %213 : vector<1x1x1x32xbf16> to vector<1x32xbf16>
    %c1_238 = arith.constant 1 : index
    %c0_239 = arith.constant 0 : index
    %c0_240 = arith.constant 0 : index
    %215 = vector.load %arg3[%c1_238, %c0_239, %c0_240] : memref<5x32x128xbf16, #tpu.memory_space<vmem>>, vector<1x32x128xbf16>
    %216 = vector.shape_cast %215 : vector<1x32x128xbf16> to vector<32x128xbf16>
    %cst_241 = arith.constant dense<0.000000e+00> : vector<1x128xf32>
    %217 = tpu.matmul %214, %216, %cst_241 {dimension_numbers = #tpu.dot_dimension_numbers<[1], [0], [0], [1], [0, 0, 1, 1], [], []>} : vector<1x32xbf16>, vector<32x128xbf16>, vector<1x128xf32> -> vector<1x128xf32>
    %218 = arith.addf %212, %217 : vector<1x128xf32>
    %c2_242 = arith.constant 2 : index
    %c5_243 = arith.constant 5 : index
    %c0_244 = arith.constant 0 : index
    %c0_245 = arith.constant 0 : index
    %219 = vector.load %arg2[%c2_242, %c5_243, %c0_244, %c0_245] : memref<3x8x2x32xbf16, #tpu.memory_space<vmem>>, vector<1x1x1x32xbf16>
    %220 = vector.shape_cast %219 : vector<1x1x1x32xbf16> to vector<1x32xbf16>
    %c2_246 = arith.constant 2 : index
    %c0_247 = arith.constant 0 : index
    %c0_248 = arith.constant 0 : index
    %221 = vector.load %arg3[%c2_246, %c0_247, %c0_248] : memref<5x32x128xbf16, #tpu.memory_space<vmem>>, vector<1x32x128xbf16>
    %222 = vector.shape_cast %221 : vector<1x32x128xbf16> to vector<32x128xbf16>
    %cst_249 = arith.constant dense<0.000000e+00> : vector<1x128xf32>
    %223 = tpu.matmul %220, %222, %cst_249 {dimension_numbers = #tpu.dot_dimension_numbers<[1], [0], [0], [1], [0, 0, 1, 1], [], []>} : vector<1x32xbf16>, vector<32x128xbf16>, vector<1x128xf32> -> vector<1x128xf32>
    %224 = arith.addf %218, %223 : vector<1x128xf32>
    %c0_250 = arith.constant 0 : index
    %c5_251 = arith.constant 5 : index
    %c1_252 = arith.constant 1 : index
    %c0_253 = arith.constant 0 : index
    %225 = vector.load %arg2[%c0_250, %c5_251, %c1_252, %c0_253] : memref<3x8x2x32xbf16, #tpu.memory_space<vmem>>, vector<1x1x1x32xbf16>
    %226 = vector.shape_cast %225 : vector<1x1x1x32xbf16> to vector<1x32xbf16>
    %c3_254 = arith.constant 3 : index
    %c0_255 = arith.constant 0 : index
    %c0_256 = arith.constant 0 : index
    %227 = vector.load %arg3[%c3_254, %c0_255, %c0_256] : memref<5x32x128xbf16, #tpu.memory_space<vmem>>, vector<1x32x128xbf16>
    %228 = vector.shape_cast %227 : vector<1x32x128xbf16> to vector<32x128xbf16>
    %cst_257 = arith.constant dense<0.000000e+00> : vector<1x128xf32>
    %229 = tpu.matmul %226, %228, %cst_257 {dimension_numbers = #tpu.dot_dimension_numbers<[1], [0], [0], [1], [0, 0, 1, 1], [], []>} : vector<1x32xbf16>, vector<32x128xbf16>, vector<1x128xf32> -> vector<1x128xf32>
    %230 = arith.addf %224, %229 : vector<1x128xf32>
    %c1_258 = arith.constant 1 : index
    %c5_259 = arith.constant 5 : index
    %c1_260 = arith.constant 1 : index
    %c0_261 = arith.constant 0 : index
    %231 = vector.load %arg2[%c1_258, %c5_259, %c1_260, %c0_261] : memref<3x8x2x32xbf16, #tpu.memory_space<vmem>>, vector<1x1x1x32xbf16>
    %232 = vector.shape_cast %231 : vector<1x1x1x32xbf16> to vector<1x32xbf16>
    %c4_262 = arith.constant 4 : index
    %c0_263 = arith.constant 0 : index
    %c0_264 = arith.constant 0 : index
    %233 = vector.load %arg3[%c4_262, %c0_263, %c0_264] : memref<5x32x128xbf16, #tpu.memory_space<vmem>>, vector<1x32x128xbf16>
    %234 = vector.shape_cast %233 : vector<1x32x128xbf16> to vector<32x128xbf16>
    %cst_265 = arith.constant dense<0.000000e+00> : vector<1x128xf32>
    %235 = tpu.matmul %232, %234, %cst_265 {dimension_numbers = #tpu.dot_dimension_numbers<[1], [0], [0], [1], [0, 0, 1, 1], [], []>} : vector<1x32xbf16>, vector<32x128xbf16>, vector<1x128xf32> -> vector<1x128xf32>
    %236 = arith.addf %230, %235 : vector<1x128xf32>
    %237 = arith.addf %236, %0 : vector<1x128xf32>
    %cst_266 = arith.constant 0.000000e+00 : f32
    %238 = vector.broadcast %cst_266 : f32 to vector<1x128xf32>
    %239 = arith.cmpf oge, %237, %238 : vector<1x128xf32>
    %cst_267 = arith.constant 1.000000e-01 : f32
    %240 = vector.broadcast %cst_267 : f32 to vector<1x128xf32>
    %241 = arith.mulf %240, %237 : vector<1x128xf32>
    %242 = arith.select %239, %237, %241 : vector<1x128xi1>, vector<1x128xf32>
    %243 = arith.truncf %242 : vector<1x128xf32> to vector<1x128xbf16>
    %c5_268 = arith.constant 5 : index
    %c0_269 = arith.constant 0 : index
    %c0_270 = arith.constant 0 : index
    %244 = vector.load %arg5[%c5_268, %c0_269, %c0_270] : memref<8x1x128xbf16, #tpu.memory_space<vmem>>, vector<1x1x128xbf16>
    %245 = vector.shape_cast %244 : vector<1x1x128xbf16> to vector<1x128xbf16>
    %246 = vector.shape_cast %243 : vector<1x128xbf16> to vector<1x1x128xbf16>
    tpu.vector_store %arg5[%c5_268, %c0_269, %c0_270], %246 {strides = array<i32>} : memref<8x1x128xbf16, #tpu.memory_space<vmem>>, vector<1x1x128xbf16>,
    %cst_271 = arith.constant 0.000000e+00 : f32
    %247 = vector.broadcast %cst_271 : f32 to vector<1x128xf32>
    %c0_272 = arith.constant 0 : index
    %c6 = arith.constant 6 : index
    %c0_273 = arith.constant 0 : index
    %c0_274 = arith.constant 0 : index
    %248 = vector.load %arg2[%c0_272, %c6, %c0_273, %c0_274] : memref<3x8x2x32xbf16, #tpu.memory_space<vmem>>, vector<1x1x1x32xbf16>
    %249 = vector.shape_cast %248 : vector<1x1x1x32xbf16> to vector<1x32xbf16>
    %c0_275 = arith.constant 0 : index
    %c0_276 = arith.constant 0 : index
    %c0_277 = arith.constant 0 : index
    %250 = vector.load %arg3[%c0_275, %c0_276, %c0_277] : memref<5x32x128xbf16, #tpu.memory_space<vmem>>, vector<1x32x128xbf16>
    %251 = vector.shape_cast %250 : vector<1x32x128xbf16> to vector<32x128xbf16>
    %cst_278 = arith.constant dense<0.000000e+00> : vector<1x128xf32>
    %252 = tpu.matmul %249, %251, %cst_278 {dimension_numbers = #tpu.dot_dimension_numbers<[1], [0], [0], [1], [0, 0, 1, 1], [], []>} : vector<1x32xbf16>, vector<32x128xbf16>, vector<1x128xf32> -> vector<1x128xf32>
    %253 = arith.addf %247, %252 : vector<1x128xf32>
    %c1_279 = arith.constant 1 : index
    %c6_280 = arith.constant 6 : index
    %c0_281 = arith.constant 0 : index
    %c0_282 = arith.constant 0 : index
    %254 = vector.load %arg2[%c1_279, %c6_280, %c0_281, %c0_282] : memref<3x8x2x32xbf16, #tpu.memory_space<vmem>>, vector<1x1x1x32xbf16>
    %255 = vector.shape_cast %254 : vector<1x1x1x32xbf16> to vector<1x32xbf16>
    %c1_283 = arith.constant 1 : index
    %c0_284 = arith.constant 0 : index
    %c0_285 = arith.constant 0 : index
    %256 = vector.load %arg3[%c1_283, %c0_284, %c0_285] : memref<5x32x128xbf16, #tpu.memory_space<vmem>>, vector<1x32x128xbf16>
    %257 = vector.shape_cast %256 : vector<1x32x128xbf16> to vector<32x128xbf16>
    %cst_286 = arith.constant dense<0.000000e+00> : vector<1x128xf32>
    %258 = tpu.matmul %255, %257, %cst_286 {dimension_numbers = #tpu.dot_dimension_numbers<[1], [0], [0], [1], [0, 0, 1, 1], [], []>} : vector<1x32xbf16>, vector<32x128xbf16>, vector<1x128xf32> -> vector<1x128xf32>
    %259 = arith.addf %253, %258 : vector<1x128xf32>
    %c2_287 = arith.constant 2 : index
    %c6_288 = arith.constant 6 : index
    %c0_289 = arith.constant 0 : index
    %c0_290 = arith.constant 0 : index
    %260 = vector.load %arg2[%c2_287, %c6_288, %c0_289, %c0_290] : memref<3x8x2x32xbf16, #tpu.memory_space<vmem>>, vector<1x1x1x32xbf16>
    %261 = vector.shape_cast %260 : vector<1x1x1x32xbf16> to vector<1x32xbf16>
    %c2_291 = arith.constant 2 : index
    %c0_292 = arith.constant 0 : index
    %c0_293 = arith.constant 0 : index
    %262 = vector.load %arg3[%c2_291, %c0_292, %c0_293] : memref<5x32x128xbf16, #tpu.memory_space<vmem>>, vector<1x32x128xbf16>
    %263 = vector.shape_cast %262 : vector<1x32x128xbf16> to vector<32x128xbf16>
    %cst_294 = arith.constant dense<0.000000e+00> : vector<1x128xf32>
    %264 = tpu.matmul %261, %263, %cst_294 {dimension_numbers = #tpu.dot_dimension_numbers<[1], [0], [0], [1], [0, 0, 1, 1], [], []>} : vector<1x32xbf16>, vector<32x128xbf16>, vector<1x128xf32> -> vector<1x128xf32>
    %265 = arith.addf %259, %264 : vector<1x128xf32>
    %c0_295 = arith.constant 0 : index
    %c6_296 = arith.constant 6 : index
    %c1_297 = arith.constant 1 : index
    %c0_298 = arith.constant 0 : index
    %266 = vector.load %arg2[%c0_295, %c6_296, %c1_297, %c0_298] : memref<3x8x2x32xbf16, #tpu.memory_space<vmem>>, vector<1x1x1x32xbf16>
    %267 = vector.shape_cast %266 : vector<1x1x1x32xbf16> to vector<1x32xbf16>
    %c3_299 = arith.constant 3 : index
    %c0_300 = arith.constant 0 : index
    %c0_301 = arith.constant 0 : index
    %268 = vector.load %arg3[%c3_299, %c0_300, %c0_301] : memref<5x32x128xbf16, #tpu.memory_space<vmem>>, vector<1x32x128xbf16>
    %269 = vector.shape_cast %268 : vector<1x32x128xbf16> to vector<32x128xbf16>
    %cst_302 = arith.constant dense<0.000000e+00> : vector<1x128xf32>
    %270 = tpu.matmul %267, %269, %cst_302 {dimension_numbers = #tpu.dot_dimension_numbers<[1], [0], [0], [1], [0, 0, 1, 1], [], []>} : vector<1x32xbf16>, vector<32x128xbf16>, vector<1x128xf32> -> vector<1x128xf32>
    %271 = arith.addf %265, %270 : vector<1x128xf32>
    %c1_303 = arith.constant 1 : index
    %c6_304 = arith.constant 6 : index
    %c1_305 = arith.constant 1 : index
    %c0_306 = arith.constant 0 : index
    %272 = vector.load %arg2[%c1_303, %c6_304, %c1_305, %c0_306] : memref<3x8x2x32xbf16, #tpu.memory_space<vmem>>, vector<1x1x1x32xbf16>
    %273 = vector.shape_cast %272 : vector<1x1x1x32xbf16> to vector<1x32xbf16>
    %c4_307 = arith.constant 4 : index
    %c0_308 = arith.constant 0 : index
    %c0_309 = arith.constant 0 : index
    %274 = vector.load %arg3[%c4_307, %c0_308, %c0_309] : memref<5x32x128xbf16, #tpu.memory_space<vmem>>, vector<1x32x128xbf16>
    %275 = vector.shape_cast %274 : vector<1x32x128xbf16> to vector<32x128xbf16>
    %cst_310 = arith.constant dense<0.000000e+00> : vector<1x128xf32>
    %276 = tpu.matmul %273, %275, %cst_310 {dimension_numbers = #tpu.dot_dimension_numbers<[1], [0], [0], [1], [0, 0, 1, 1], [], []>} : vector<1x32xbf16>, vector<32x128xbf16>, vector<1x128xf32> -> vector<1x128xf32>
    %277 = arith.addf %271, %276 : vector<1x128xf32>
    %278 = arith.addf %277, %0 : vector<1x128xf32>
    %cst_311 = arith.constant 0.000000e+00 : f32
    %279 = vector.broadcast %cst_311 : f32 to vector<1x128xf32>
    %280 = arith.cmpf oge, %278, %279 : vector<1x128xf32>
    %cst_312 = arith.constant 1.000000e-01 : f32
    %281 = vector.broadcast %cst_312 : f32 to vector<1x128xf32>
    %282 = arith.mulf %281, %278 : vector<1x128xf32>
    %283 = arith.select %280, %278, %282 : vector<1x128xi1>, vector<1x128xf32>
    %284 = arith.truncf %283 : vector<1x128xf32> to vector<1x128xbf16>
    %c6_313 = arith.constant 6 : index
    %c0_314 = arith.constant 0 : index
    %c0_315 = arith.constant 0 : index
    %285 = vector.load %arg5[%c6_313, %c0_314, %c0_315] : memref<8x1x128xbf16, #tpu.memory_space<vmem>>, vector<1x1x128xbf16>
    %286 = vector.shape_cast %285 : vector<1x1x128xbf16> to vector<1x128xbf16>
    %287 = vector.shape_cast %284 : vector<1x128xbf16> to vector<1x1x128xbf16>
    tpu.vector_store %arg5[%c6_313, %c0_314, %c0_315], %287 {strides = array<i32>} : memref<8x1x128xbf16, #tpu.memory_space<vmem>>, vector<1x1x128xbf16>,
    %cst_316 = arith.constant 0.000000e+00 : f32
    %288 = vector.broadcast %cst_316 : f32 to vector<1x128xf32>
    %c0_317 = arith.constant 0 : index
    %c7 = arith.constant 7 : index
    %c0_318 = arith.constant 0 : index
    %c0_319 = arith.constant 0 : index
    %289 = vector.load %arg2[%c0_317, %c7, %c0_318, %c0_319] : memref<3x8x2x32xbf16, #tpu.memory_space<vmem>>, vector<1x1x1x32xbf16>
    %290 = vector.shape_cast %289 : vector<1x1x1x32xbf16> to vector<1x32xbf16>
    %c0_320 = arith.constant 0 : index
    %c0_321 = arith.constant 0 : index
    %c0_322 = arith.constant 0 : index
    %291 = vector.load %arg3[%c0_320, %c0_321, %c0_322] : memref<5x32x128xbf16, #tpu.memory_space<vmem>>, vector<1x32x128xbf16>
    %292 = vector.shape_cast %291 : vector<1x32x128xbf16> to vector<32x128xbf16>
    %cst_323 = arith.constant dense<0.000000e+00> : vector<1x128xf32>
    %293 = tpu.matmul %290, %292, %cst_323 {dimension_numbers = #tpu.dot_dimension_numbers<[1], [0], [0], [1], [0, 0, 1, 1], [], []>} : vector<1x32xbf16>, vector<32x128xbf16>, vector<1x128xf32> -> vector<1x128xf32>
    %294 = arith.addf %288, %293 : vector<1x128xf32>
    %c1_324 = arith.constant 1 : index
    %c7_325 = arith.constant 7 : index
    %c0_326 = arith.constant 0 : index
    %c0_327 = arith.constant 0 : index
    %295 = vector.load %arg2[%c1_324, %c7_325, %c0_326, %c0_327] : memref<3x8x2x32xbf16, #tpu.memory_space<vmem>>, vector<1x1x1x32xbf16>
    %296 = vector.shape_cast %295 : vector<1x1x1x32xbf16> to vector<1x32xbf16>
    %c1_328 = arith.constant 1 : index
    %c0_329 = arith.constant 0 : index
    %c0_330 = arith.constant 0 : index
    %297 = vector.load %arg3[%c1_328, %c0_329, %c0_330] : memref<5x32x128xbf16, #tpu.memory_space<vmem>>, vector<1x32x128xbf16>
    %298 = vector.shape_cast %297 : vector<1x32x128xbf16> to vector<32x128xbf16>
    %cst_331 = arith.constant dense<0.000000e+00> : vector<1x128xf32>
    %299 = tpu.matmul %296, %298, %cst_331 {dimension_numbers = #tpu.dot_dimension_numbers<[1], [0], [0], [1], [0, 0, 1, 1], [], []>} : vector<1x32xbf16>, vector<32x128xbf16>, vector<1x128xf32> -> vector<1x128xf32>
    %300 = arith.addf %294, %299 : vector<1x128xf32>
    %c2_332 = arith.constant 2 : index
    %c7_333 = arith.constant 7 : index
    %c0_334 = arith.constant 0 : index
    %c0_335 = arith.constant 0 : index
    %301 = vector.load %arg2[%c2_332, %c7_333, %c0_334, %c0_335] : memref<3x8x2x32xbf16, #tpu.memory_space<vmem>>, vector<1x1x1x32xbf16>
    %302 = vector.shape_cast %301 : vector<1x1x1x32xbf16> to vector<1x32xbf16>
    %c2_336 = arith.constant 2 : index
    %c0_337 = arith.constant 0 : index
    %c0_338 = arith.constant 0 : index
    %303 = vector.load %arg3[%c2_336, %c0_337, %c0_338] : memref<5x32x128xbf16, #tpu.memory_space<vmem>>, vector<1x32x128xbf16>
    %304 = vector.shape_cast %303 : vector<1x32x128xbf16> to vector<32x128xbf16>
    %cst_339 = arith.constant dense<0.000000e+00> : vector<1x128xf32>
    %305 = tpu.matmul %302, %304, %cst_339 {dimension_numbers = #tpu.dot_dimension_numbers<[1], [0], [0], [1], [0, 0, 1, 1], [], []>} : vector<1x32xbf16>, vector<32x128xbf16>, vector<1x128xf32> -> vector<1x128xf32>
    %306 = arith.addf %300, %305 : vector<1x128xf32>
    %c0_340 = arith.constant 0 : index
    %c7_341 = arith.constant 7 : index
    %c1_342 = arith.constant 1 : index
    %c0_343 = arith.constant 0 : index
    %307 = vector.load %arg2[%c0_340, %c7_341, %c1_342, %c0_343] : memref<3x8x2x32xbf16, #tpu.memory_space<vmem>>, vector<1x1x1x32xbf16>
    %308 = vector.shape_cast %307 : vector<1x1x1x32xbf16> to vector<1x32xbf16>
    %c3_344 = arith.constant 3 : index
    %c0_345 = arith.constant 0 : index
    %c0_346 = arith.constant 0 : index
    %309 = vector.load %arg3[%c3_344, %c0_345, %c0_346] : memref<5x32x128xbf16, #tpu.memory_space<vmem>>, vector<1x32x128xbf16>
    %310 = vector.shape_cast %309 : vector<1x32x128xbf16> to vector<32x128xbf16>
    %cst_347 = arith.constant dense<0.000000e+00> : vector<1x128xf32>
    %311 = tpu.matmul %308, %310, %cst_347 {dimension_numbers = #tpu.dot_dimension_numbers<[1], [0], [0], [1], [0, 0, 1, 1], [], []>} : vector<1x32xbf16>, vector<32x128xbf16>, vector<1x128xf32> -> vector<1x128xf32>
    %312 = arith.addf %306, %311 : vector<1x128xf32>
    %c1_348 = arith.constant 1 : index
    %c7_349 = arith.constant 7 : index
    %c1_350 = arith.constant 1 : index
    %c0_351 = arith.constant 0 : index
    %313 = vector.load %arg2[%c1_348, %c7_349, %c1_350, %c0_351] : memref<3x8x2x32xbf16, #tpu.memory_space<vmem>>, vector<1x1x1x32xbf16>
    %314 = vector.shape_cast %313 : vector<1x1x1x32xbf16> to vector<1x32xbf16>
    %c4_352 = arith.constant 4 : index
    %c0_353 = arith.constant 0 : index
    %c0_354 = arith.constant 0 : index
    %315 = vector.load %arg3[%c4_352, %c0_353, %c0_354] : memref<5x32x128xbf16, #tpu.memory_space<vmem>>, vector<1x32x128xbf16>
    %316 = vector.shape_cast %315 : vector<1x32x128xbf16> to vector<32x128xbf16>
    %cst_355 = arith.constant dense<0.000000e+00> : vector<1x128xf32>
    %317 = tpu.matmul %314, %316, %cst_355 {dimension_numbers = #tpu.dot_dimension_numbers<[1], [0], [0], [1], [0, 0, 1, 1], [], []>} : vector<1x32xbf16>, vector<32x128xbf16>, vector<1x128xf32> -> vector<1x128xf32>
    %318 = arith.addf %312, %317 : vector<1x128xf32>
    %319 = arith.addf %318, %0 : vector<1x128xf32>
    %cst_356 = arith.constant 0.000000e+00 : f32
    %320 = vector.broadcast %cst_356 : f32 to vector<1x128xf32>
    %321 = arith.cmpf oge, %319, %320 : vector<1x128xf32>
    %cst_357 = arith.constant 1.000000e-01 : f32
    %322 = vector.broadcast %cst_357 : f32 to vector<1x128xf32>
    %323 = arith.mulf %322, %319 : vector<1x128xf32>
    %324 = arith.select %321, %319, %323 : vector<1x128xi1>, vector<1x128xf32>
    %325 = arith.truncf %324 : vector<1x128xf32> to vector<1x128xbf16>
    %c7_358 = arith.constant 7 : index
    %c0_359 = arith.constant 0 : index
    %c0_360 = arith.constant 0 : index
    %326 = vector.load %arg5[%c7_358, %c0_359, %c0_360] : memref<8x1x128xbf16, #tpu.memory_space<vmem>>, vector<1x1x128xbf16>
    %327 = vector.shape_cast %326 : vector<1x1x128xbf16> to vector<1x128xbf16>
    %328 = vector.shape_cast %325 : vector<1x128xbf16> to vector<1x1x128xbf16>
    tpu.vector_store %arg5[%c7_358, %c0_359, %c0_360], %328 {strides = array<i32>} : memref<8x1x128xbf16, #tpu.memory_space<vmem>>, vector<1x1x128xbf16>,
    return
  }
  func.func @transform_0(%arg0: i32, %arg1: i32) -> (i32, i32, i32, i32) {
    %c0_i32 = arith.constant 0 : i32
    %c0_i32_0 = arith.constant 0 : i32
    %c0_i32_1 = arith.constant 0 : i32
    %c0_i32_2 = arith.constant 0 : i32
    return %c0_i32, %arg0, %c0_i32_0, %c0_i32_1 : i32, i32, i32, i32
  }
  func.func @transform_1(%arg0: i32, %arg1: i32) -> (i32, i32, i32) {
    %c0_i32 = arith.constant 0 : i32
    %c0_i32_0 = arith.constant 0 : i32
    %c0_i32_1 = arith.constant 0 : i32
    return %c0_i32, %c0_i32_0, %arg1 : i32, i32, i32
  }
  func.func @transform_2(%arg0: i32, %arg1: i32) -> (i32, i32) {
    %c0_i32 = arith.constant 0 : i32
    %c0_i32_0 = arith.constant 0 : i32
    return %c0_i32, %arg1 : i32, i32
  }
  func.func @transform_3(%arg0: i32, %arg1: i32) -> (i32, i32, i32) {
    %c0_i32 = arith.constant 0 : i32
    %c0_i32_0 = arith.constant 0 : i32
    return %arg0, %c0_i32, %arg1 : i32, i32, i32
  }
}

</mosaic_0001>

<llo_original>
// kernel: tpu_custom_call.1
$region0: #{tpu_custom_call.1}
  #allocation0 [shape = 'u32[]', space=smem, size = 0x4, offset = 0x4, fixed_abs, tag = 'smem constant byte address 0x4 - core index']
  #allocation1 [shape = 'u32[144,128]{1,0:T(1,128)}', space=vmem, size = 0x12000, scoped, tag = 'internal scratch']
  %s0 = inlined_call_operand.hbm [shape: bf16[3,8,2,32], index: 0, kind: input, shape index: {}]
  %s1 = inlined_call_operand.hbm [shape: bf16[5,32,128], index: 1, kind: input, shape index: {}]
  %s2 = inlined_call_operand.vmem [shape: f32[1,128], index: 2, kind: input, shape index: {}]
  %s3 = inlined_call_operand.vmem [shape: bf16[8,1,128], index: 3, kind: output, shape index: {}]
  %s4 = sld [smem:[#allocation0]]
  $region30: #{tpu_custom_call.1} parent=0
    _
  %s6 = ssub.s32 1, %s4
  %s7 = scalar_select 0, %s6, %s4
  $region1: #{tpu_custom_call.1} parent=0
    #allocation2 [shape = 'u8[12288]{0}', space=vmem, size = 0x3000, scoped, tag = 'input window, operand 0, single buffered']
    #allocation3 [shape = 's32[1]{0}', space=sflag, size = 0x4, scoped, tag = 'scoped memory for tpu_custom_call.1']
    #allocation4 [shape = 'u8[40960]{0}', space=vmem, size = 0xa000, scoped, tag = 'input window, operand 1, single buffered']
    #allocation5 [shape = 's32[1]{0}', space=sflag, size = 0x4, scoped, tag = 'scoped memory for tpu_custom_call.1']
    %8 = vsyncpa [#allocation3], 0
    %9 = vsyncpa [#allocation5], 0
    // Predicated region
    $region2: #{tpu_custom_call.1} parent=1 // pred_check
      _
    $region3: #{tpu_custom_call.1} parent=1 // pred_check_branch
      %11 = sbr.rel (0) target = $region5
    $region4: #{tpu_custom_call.1} parent=1 // pred_region
      %s13 = ssub.s32 384, 384
      %14 = vsyncadd [#allocation3], %s13
      %s15 = sshll.u32 [#allocation2], 4
      %s16 = int_to_ptr.vmem [resolvable:$true] %s15
      %21 = dma.hbm_to_vmem [thread:$0]  %s0, 384, %s16, [#allocation3], 16, 16, 1
    $region5: #{tpu_custom_call.1} parent=1 // pred_fallthru
      _
    // Predicated region
    $region6: #{tpu_custom_call.1} parent=1 // pred_check
      _
    $region7: #{tpu_custom_call.1} parent=1 // pred_check_branch
      %23 = sbr.rel (0) target = $region9
    $region8: #{tpu_custom_call.1} parent=1 // pred_region
      %s25 = ssub.s32 1280, 1280
      %26 = vsyncadd [#allocation5], %s25
      %s27 = sshll.u32 [#allocation4], 4
      %s28 = int_to_ptr.vmem [resolvable:$true] %s27
      %33 = dma.hbm_to_vmem [thread:$0]  %s1, 1280, %s28, [#allocation5], 64, 64, 4
    $region9: #{tpu_custom_call.1} parent=1 // pred_fallthru
      _
    // Predicated region
    $region10: #{tpu_custom_call.1} parent=1 // pred_check
      _
    $region11: #{tpu_custom_call.1} parent=1 // pred_check_branch
      %35 = sbr.rel (0) target = $region13
    $region12: #{tpu_custom_call.1} parent=1 // pred_region
      _
    $region13: #{tpu_custom_call.1} parent=1 // pred_fallthru
      _
    // Predicated region
    $region14: #{tpu_custom_call.1} parent=1 // pred_check
      _
    $region15: #{tpu_custom_call.1} parent=1 // pred_check_branch
      %37 = sbr.rel (0) target = $region17
    $region16: #{tpu_custom_call.1} parent=1 // pred_region
      %38 = dma.done [#allocation3], 384
    $region17: #{tpu_custom_call.1} parent=1 // pred_fallthru
      _
    // Predicated region
    $region18: #{tpu_custom_call.1} parent=1 // pred_check
      _
    $region19: #{tpu_custom_call.1} parent=1 // pred_check_branch
      %40 = sbr.rel (0) target = $region21
    $region20: #{tpu_custom_call.1} parent=1 // pred_region
      %41 = dma.done [#allocation5], 1280
    $region21: #{tpu_custom_call.1} parent=1 // pred_fallthru
      _
    %v43 = vld [vmem:[%s2] sm:$0x1]
    %v44 = vld [vmem:[#allocation2] sm:$0x1]
    %v45 = vld [vmem:[#allocation4] sm:$0xf]
    %v46 = vld [vmem:[#allocation4 + $0x4] sm:$0xf]
    %v47 = vld [vmem:[#allocation4 + $0x8] sm:$0xf]
    %v48 = vld [vmem:[#allocation4 + $0xc] sm:$0xf]
    %s49 = scalar_lea.vmem [#allocation2], 8
    %v50 = vld [vmem:[%s49] sm:$0x1]
    %s51 = scalar_lea.vmem [#allocation4], 16
    %v52 = vld [vmem:[%s51] sm:$0xf]
    %v53 = vld [vmem:[%s51 + $0x4] sm:$0xf]
    %v54 = vld [vmem:[%s51 + $0x8] sm:$0xf]
    %v55 = vld [vmem:[%s51 + $0xc] sm:$0xf]
    %v60 = vunpack.c.l.b16 %v52
    %v61 = vunpack.c.l.b16 %v53
    %v62 = vunpack.c.l.b16 %v54
    %v63 = vunpack.c.l.b16 %v55
    %v64 = vpack.c.b16 %v61, %v60
    %v65 = vpack.c.b16 %v63, %v62
    %vm68 = vcmask 261120
    %v70 = vsel %vm68, %v50, 0
    %72 = vmatprep.subr.bf16.mxu0 0
    %73 = vmatpush1.bf16.msra.mxu0 %v64
    %74 = vmatprep.subr.bf16.mxu0 0
    %75 = vmatpush1.bf16.msra.mxu0 %v65
    %76 = vmatprep.subr.bf16.mxu0 0
    %77 = vmatpush1.bf16.msra.mxu0 0
    %78 = vmatprep.subr.bf16.mxu0 0
    %79 = vmatpush1.bf16.msra.mxu0 0
    %80 = vmatprep.subr.bf16.mxu0 0
    %81 = vmatpush1.bf16.msra.mxu0 0
    %82 = vmatprep.subr.bf16.mxu0 0
    %83 = vmatpush1.bf16.msra.mxu0 0
    %84 = vmatprep.subr.bf16.mxu0 0
    %85 = vmatpush1.bf16.msra.mxu0 0
    %86 = vmatprep.subr.bf16.mxu0 0
    %87 = vmatpush1.bf16.msra.mxu0 0
    %88 = vmatprep.subr.bf16.mxu0 0
    %89 = vmatpush1.bf16.msra.mxu0 0
    %90 = vmatprep.subr.bf16.mxu0 0
    %91 = vmatpush1.bf16.msra.mxu0 0
    %92 = vmatprep.subr.bf16.mxu0 0
    %93 = vmatpush1.bf16.msra.mxu0 0
    %94 = vmatprep.subr.bf16.mxu0 0
    %95 = vmatpush1.bf16.msra.mxu0 0
    %96 = vmatprep.subr.bf16.mxu0 0
    %97 = vmatpush1.bf16.msra.mxu0 0
    %98 = vmatprep.subr.bf16.mxu0 0
    %99 = vmatpush1.bf16.msra.mxu0 0
    %100 = vmatprep.subr.bf16.mxu0 0
    %101 = vmatpush1.bf16.msra.mxu0 0
    %102 = vmatprep.subr.bf16.mxu0 0
    %103 = vmatpush1.bf16.msra.mxu0 0
    %104 = vmatprep.mubr.bf16.mxu0 0
    %105 = vmatmul.mubr.bf16.gmra.mrb[0].mxu0 %v70
    %v106 = vpop.f32.mrb[0].mxu0
    %v107 = vadd.f32 0.0, %v106
    %v108 = vpop.f32.mrb[0].mxu0
    %v109 = vpop.f32.mrb[0].mxu0
    %v110 = vpop.f32.mrb[0].mxu0
    %111 = vdwg.mxu0
    %v116 = vunpack.c.l.b16 %v45
    %v117 = vunpack.c.l.b16 %v46
    %v118 = vunpack.c.l.b16 %v47
    %v119 = vunpack.c.l.b16 %v48
    %v120 = vpack.c.b16 %v117, %v116
    %v121 = vpack.c.b16 %v119, %v118
    %v125 = vsel %vm68, %v44, 0
    %127 = vmatprep.subr.bf16.mxu0 0
    %128 = vmatpush1.bf16.msra.mxu0 %v120
    %129 = vmatprep.subr.bf16.mxu0 0
    %130 = vmatpush1.bf16.msra.mxu0 %v121
    %131 = vmatprep.subr.bf16.mxu0 0
    %132 = vmatpush1.bf16.msra.mxu0 0
    %133 = vmatprep.subr.bf16.mxu0 0
    %134 = vmatpush1.bf16.msra.mxu0 0
    %135 = vmatprep.subr.bf16.mxu0 0
    %136 = vmatpush1.bf16.msra.mxu0 0
    %137 = vmatprep.subr.bf16.mxu0 0
    %138 = vmatpush1.bf16.msra.mxu0 0
    %139 = vmatprep.subr.bf16.mxu0 0
    %140 = vmatpush1.bf16.msra.mxu0 0
    %141 = vmatprep.subr.bf16.mxu0 0
    %142 = vmatpush1.bf16.msra.mxu0 0
    %143 = vmatprep.subr.bf16.mxu0 0
    %144 = vmatpush1.bf16.msra.mxu0 0
    %145 = vmatprep.subr.bf16.mxu0 0
    %146 = vmatpush1.bf16.msra.mxu0 0
    %147 = vmatprep.subr.bf16.mxu0 0
    %148 = vmatpush1.bf16.msra.mxu0 0
    %149 = vmatprep.subr.bf16.mxu0 0
    %150 = vmatpush1.bf16.msra.mxu0 0
    %151 = vmatprep.subr.bf16.mxu0 0
    %152 = vmatpush1.bf16.msra.mxu0 0
    %153 = vmatprep.subr.bf16.mxu0 0
    %154 = vmatpush1.bf16.msra.mxu0 0
    %155 = vmatprep.subr.bf16.mxu0 0
    %156 = vmatpush1.bf16.msra.mxu0 0
    %157 = vmatprep.subr.bf16.mxu0 0
    %158 = vmatpush1.bf16.msra.mxu0 0
    %159 = vmatprep.mubr.bf16.mxu0 0
    %160 = vmatmul.mubr.bf16.gmra.mrb[0].mxu0 %v125
    %v161 = vpop.f32.mrb[0].mxu0
    %v162 = vadd.f32 %v107, %v161
    %v163 = vpop.f32.mrb[0].mxu0
    %v164 = vpop.f32.mrb[0].mxu0
    %v165 = vpop.f32.mrb[0].mxu0
    %166 = vdwg.mxu0
    %s167 = scalar_lea.vmem [#allocation2], 16
    %v168 = vld [vmem:[%s167] sm:$0x1]
    %s169 = scalar_lea.vmem [#allocation4], 32
    %v170 = vld [vmem:[%s169] sm:$0xf]
    %v171 = vld [vmem:[%s169 + $0x4] sm:$0xf]
    %v172 = vld [vmem:[%s169 + $0x8] sm:$0xf]
    %v173 = vld [vmem:[%s169 + $0xc] sm:$0xf]
    %v178 = vunpack.c.l.b16 %v170
    %v179 = vunpack.c.l.b16 %v171
    %v180 = vunpack.c.l.b16 %v172
    %v181 = vunpack.c.l.b16 %v173
    %v182 = vpack.c.b16 %v179, %v178
    %v183 = vpack.c.b16 %v181, %v180
    %v187 = vsel %vm68, %v168, 0
    %189 = vmatprep.subr.bf16.mxu0 0
    %190 = vmatpush1.bf16.msra.mxu0 %v182
    %191 = vmatprep.subr.bf16.mxu0 0
    %192 = vmatpush1.bf16.msra.mxu0 %v183
    %193 = vmatprep.subr.bf16.mxu0 0
    %194 = vmatpush1.bf16.msra.mxu0 0
    %195 = vmatprep.subr.bf16.mxu0 0
    %196 = vmatpush1.bf16.msra.mxu0 0
    %197 = vmatprep.subr.bf16.mxu0 0
    %198 = vmatpush1.bf16.msra.mxu0 0
    %199 = vmatprep.subr.bf16.mxu0 0
    %200 = vmatpush1.bf16.msra.mxu0 0
    %201 = vmatprep.subr.bf16.mxu0 0
    %202 = vmatpush1.bf16.msra.mxu0 0
    %203 = vmatprep.subr.bf16.mxu0 0
    %204 = vmatpush1.bf16.msra.mxu0 0
    %205 = vmatprep.subr.bf16.mxu0 0
    %206 = vmatpush1.bf16.msra.mxu0 0
    %207 = vmatprep.subr.bf16.mxu0 0
    %208 = vmatpush1.bf16.msra.mxu0 0
    %209 = vmatprep.subr.bf16.mxu0 0
    %210 = vmatpush1.bf16.msra.mxu0 0
    %211 = vmatprep.subr.bf16.mxu0 0
    %212 = vmatpush1.bf16.msra.mxu0 0
    %213 = vmatprep.subr.bf16.mxu0 0
    %214 = vmatpush1.bf16.msra.mxu0 0
    %215 = vmatprep.subr.bf16.mxu0 0
    %216 = vmatpush1.bf16.msra.mxu0 0
    %217 = vmatprep.subr.bf16.mxu0 0
    %218 = vmatpush1.bf16.msra.mxu0 0
    %219 = vmatprep.subr.bf16.mxu0 0
    %220 = vmatpush1.bf16.msra.mxu0 0
    %221 = vmatprep.mubr.bf16.mxu0 0
    %222 = vmatmul.mubr.bf16.gmra.mrb[0].mxu0 %v187
    %v223 = vpop.f32.mrb[0].mxu0
    %v224 = vadd.f32 0.0, %v223
    %v225 = vpop.f32.mrb[0].mxu0
    %v226 = vpop.f32.mrb[0].mxu0
    %v227 = vpop.f32.mrb[0].mxu0
    %228 = vdwg.mxu0
    %v229 = vadd.f32 %v162, %v224
    %s230 = scalar_lea.vmem [#allocation4], 48
    %v231 = vld [vmem:[%s230] sm:$0xf]
    %v232 = vld [vmem:[%s230 + $0x4] sm:$0xf]
    %v233 = vld [vmem:[%s230 + $0x8] sm:$0xf]
    %v234 = vld [vmem:[%s230 + $0xc] sm:$0xf]
    %v237 = vunpack.c.l.s4 1966171168
    %v238 = vunpack.c.0.s8 %v237
    %v239 = vlaneseq
    %v240 = vshrl.u32 %v239, 7
    %v241 = vsub.s32 %v238, %v240
    %v242 = vrot.slane %v44, %v241
    %v244 = vunpack.c.l.s4 1966171168
    %v245 = vunpack.c.0.s8 %v244
    %v246 = vlaneseq
    %v247 = vshrl.u32 %v246, 7
    %v248 = vsub.s32 %v245, %v247
    %v249 = vrot.slane %v242, %v248
    %v251 = vshrl.u32 %v249, 16
    %v257 = vunpack.c.l.b16 %v231
    %v258 = vunpack.c.l.b16 %v232
    %v259 = vunpack.c.l.b16 %v233
    %v260 = vunpack.c.l.b16 %v234
    %v261 = vpack.c.b16 %v258, %v257
    %v262 = vpack.c.b16 %v260, %v259
    %v266 = vsel %vm68, %v251, 0
    %268 = vmatprep.subr.bf16.mxu0 0
    %269 = vmatpush1.bf16.msra.mxu0 %v261
    %270 = vmatprep.subr.bf16.mxu0 0
    %271 = vmatpush1.bf16.msra.mxu0 %v262
    %272 = vmatprep.subr.bf16.mxu0 0
    %273 = vmatpush1.bf16.msra.mxu0 0
    %274 = vmatprep.subr.bf16.mxu0 0
    %275 = vmatpush1.bf16.msra.mxu0 0
    %276 = vmatprep.subr.bf16.mxu0 0
    %277 = vmatpush1.bf16.msra.mxu0 0
    %278 = vmatprep.subr.bf16.mxu0 0
    %279 = vmatpush1.bf16.msra.mxu0 0
    %280 = vmatprep.subr.bf16.mxu0 0
    %281 = vmatpush1.bf16.msra.mxu0 0
    %282 = vmatprep.subr.bf16.mxu0 0
    %283 = vmatpush1.bf16.msra.mxu0 0
    %284 = vmatprep.subr.bf16.mxu0 0
    %285 = vmatpush1.bf16.msra.mxu0 0
    %286 = vmatprep.subr.bf16.mxu0 0
    %287 = vmatpush1.bf16.msra.mxu0 0
    %288 = vmatprep.subr.bf16.mxu0 0
    %289 = vmatpush1.bf16.msra.mxu0 0
    %290 = vmatprep.subr.bf16.mxu0 0
    %291 = vmatpush1.bf16.msra.mxu0 0
    %292 = vmatprep.subr.bf16.mxu0 0
    %293 = vmatpush1.bf16.msra.mxu0 0
    %294 = vmatprep.subr.bf16.mxu0 0
    %295 = vmatpush1.bf16.msra.mxu0 0
    %296 = vmatprep.subr.bf16.mxu0 0
    %297 = vmatpush1.bf16.msra.mxu0 0
    %298 = vmatprep.subr.bf16.mxu0 0
    %299 = vmatpush1.bf16.msra.mxu0 0
    %300 = vmatprep.mubr.bf16.mxu0 0
    %301 = vmatmul.mubr.bf16.gmra.mrb[0].mxu0 %v266
    %v302 = vpop.f32.mrb[0].mxu0
    %v303 = vadd.f32 0.0, %v302
    %v304 = vpop.f32.mrb[0].mxu0
    %v305 = vpop.f32.mrb[0].mxu0
    %v306 = vpop.f32.mrb[0].mxu0
    %307 = vdwg.mxu0
    %v308 = vadd.f32 %v229, %v303
    %v309 = vld [vmem:[%s49] sm:$0x1]
    %s310 = scalar_lea.vmem [#allocation4], 64
    %v311 = vld [vmem:[%s310] sm:$0xf]
    %v312 = vld [vmem:[%s310 + $0x4] sm:$0xf]
    %v313 = vld [vmem:[%s310 + $0x8] sm:$0xf]
    %v314 = vld [vmem:[%s310 + $0xc] sm:$0xf]
    %v317 = vunpack.c.l.s4 1966171168
    %v318 = vunpack.c.0.s8 %v317
    %v319 = vlaneseq
    %v320 = vshrl.u32 %v319, 7
    %v321 = vsub.s32 %v318, %v320
    %v322 = vrot.slane %v309, %v321
    %v324 = vunpack.c.l.s4 1966171168
    %v325 = vunpack.c.0.s8 %v324
    %v326 = vlaneseq
    %v327 = vshrl.u32 %v326, 7
    %v328 = vsub.s32 %v325, %v327
    %v329 = vrot.slane %v322, %v328
    %v331 = vshrl.u32 %v329, 16
    %v337 = vunpack.c.l.b16 %v311
    %v338 = vunpack.c.l.b16 %v312
    %v339 = vunpack.c.l.b16 %v313
    %v340 = vunpack.c.l.b16 %v314
    %v341 = vpack.c.b16 %v338, %v337
    %v342 = vpack.c.b16 %v340, %v339
    %v346 = vsel %vm68, %v331, 0
    %348 = vmatprep.subr.bf16.mxu0 0
    %349 = vmatpush1.bf16.msra.mxu0 %v341
    %350 = vmatprep.subr.bf16.mxu0 0
    %351 = vmatpush1.bf16.msra.mxu0 %v342
    %352 = vmatprep.subr.bf16.mxu0 0
    %353 = vmatpush1.bf16.msra.mxu0 0
    %354 = vmatprep.subr.bf16.mxu0 0
    %355 = vmatpush1.bf16.msra.mxu0 0
    %356 = vmatprep.subr.bf16.mxu0 0
    %357 = vmatpush1.bf16.msra.mxu0 0
    %358 = vmatprep.subr.bf16.mxu0 0
    %359 = vmatpush1.bf16.msra.mxu0 0
    %360 = vmatprep.subr.bf16.mxu0 0
    %361 = vmatpush1.bf16.msra.mxu0 0
    %362 = vmatprep.subr.bf16.mxu0 0
    %363 = vmatpush1.bf16.msra.mxu0 0
    %364 = vmatprep.subr.bf16.mxu0 0
    %365 = vmatpush1.bf16.msra.mxu0 0
    %366 = vmatprep.subr.bf16.mxu0 0
    %367 = vmatpush1.bf16.msra.mxu0 0
    %368 = vmatprep.subr.bf16.mxu0 0
    %369 = vmatpush1.bf16.msra.mxu0 0
    %370 = vmatprep.subr.bf16.mxu0 0
    %371 = vmatpush1.bf16.msra.mxu0 0
    %372 = vmatprep.subr.bf16.mxu0 0
    %373 = vmatpush1.bf16.msra.mxu0 0
    %374 = vmatprep.subr.bf16.mxu0 0
    %375 = vmatpush1.bf16.msra.mxu0 0
    %376 = vmatprep.subr.bf16.mxu0 0
    %377 = vmatpush1.bf16.msra.mxu0 0
    %378 = vmatprep.subr.bf16.mxu0 0
    %379 = vmatpush1.bf16.msra.mxu0 0
    %380 = vmatprep.mubr.bf16.mxu0 0
    %381 = vmatmul.mubr.bf16.gmra.mrb[0].mxu0 %v346
    %v382 = vpop.f32.mrb[0].mxu0
    %v383 = vadd.f32 0.0, %v382
    %v384 = vpop.f32.mrb[0].mxu0
    %v385 = vpop.f32.mrb[0].mxu0
    %v386 = vpop.f32.mrb[0].mxu0
    %387 = vdwg.mxu0
    %v388 = vadd.f32 %v308, %v383
    %v389 = vadd.f32 %v388, %v43
    %vm390 = vcmp.ge.f32.partialorder %v389, 0.0
    %v391 = vmul.f32 %v389, 0.1
    %v392 = vsel %vm390, %v389, %v391
    %v393 = vpack.c.bf16 %v392, %v392
    %vm394 = vcmask 1040384
    %vm395 = vsmask.f32 256
    %vm396 = vmand %vm394, %vm395
    %v397 = vld [vmem:[%s3] sm:$0x1]
    %v398 = vsel %vm396, %v393, %v397
    %399 = vst [vmem:[%s3] sm:$0x1] %v398
    %s400 = scalar_lea.vmem [#allocation2], 1
    %v401 = vld [vmem:[%s400] sm:$0x1]
    %v402 = vld [vmem:[#allocation4] sm:$0xf]
    %v403 = vld [vmem:[#allocation4 + $0x4] sm:$0xf]
    %v404 = vld [vmem:[#allocation4 + $0x8] sm:$0xf]
    %v405 = vld [vmem:[#allocation4 + $0xc] sm:$0xf]
    %s406 = scalar_lea.vmem [#allocation2], 9
    %v407 = vld [vmem:[%s406] sm:$0x1]
    %v408 = vld [vmem:[%s51] sm:$0xf]
    %v409 = vld [vmem:[%s51 + $0x4] sm:$0xf]
    %v410 = vld [vmem:[%s51 + $0x8] sm:$0xf]
    %v411 = vld [vmem:[%s51 + $0xc] sm:$0xf]
    %v416 = vunpack.c.l.b16 %v408
    %v417 = vunpack.c.l.b16 %v409
    %v418 = vunpack.c.l.b16 %v410
    %v419 = vunpack.c.l.b16 %v411
    %v420 = vpack.c.b16 %v417, %v416
    %v421 = vpack.c.b16 %v419, %v418
    %v425 = vsel %vm68, %v407, 0
    %427 = vmatprep.subr.bf16.mxu0 0
    %428 = vmatpush1.bf16.msra.mxu0 %v420
    %429 = vmatprep.subr.bf16.mxu0 0
    %430 = vmatpush1.bf16.msra.mxu0 %v421
    %431 = vmatprep.subr.bf16.mxu0 0
    %432 = vmatpush1.bf16.msra.mxu0 0
    %433 = vmatprep.subr.bf16.mxu0 0
    %434 = vmatpush1.bf16.msra.mxu0 0
    %435 = vmatprep.subr.bf16.mxu0 0
    %436 = vmatpush1.bf16.msra.mxu0 0
    %437 = vmatprep.subr.bf16.mxu0 0
    %438 = vmatpush1.bf16.msra.mxu0 0
    %439 = vmatprep.subr.bf16.mxu0 0
    %440 = vmatpush1.bf16.msra.mxu0 0
    %441 = vmatprep.subr.bf16.mxu0 0
    %442 = vmatpush1.bf16.msra.mxu0 0
    %443 = vmatprep.subr.bf16.mxu0 0
    %444 = vmatpush1.bf16.msra.mxu0 0
    %445 = vmatprep.subr.bf16.mxu0 0
    %446 = vmatpush1.bf16.msra.mxu0 0
    %447 = vmatprep.subr.bf16.mxu0 0
    %448 = vmatpush1.bf16.msra.mxu0 0
    %449 = vmatprep.subr.bf16.mxu0 0
    %450 = vmatpush1.bf16.msra.mxu0 0
    %451 = vmatprep.subr.bf16.mxu0 0
    %452 = vmatpush1.bf16.msra.mxu0 0
    %453 = vmatprep.subr.bf16.mxu0 0
    %454 = vmatpush1.bf16.msra.mxu0 0
    %455 = vmatprep.subr.bf16.mxu0 0
    %456 = vmatpush1.bf16.msra.mxu0 0
    %457 = vmatprep.subr.bf16.mxu0 0
    %458 = vmatpush1.bf16.msra.mxu0 0
    %459 = vmatprep.mubr.bf16.mxu0 0
    %460 = vmatmul.mubr.bf16.gmra.mrb[0].mxu0 %v425
    %v461 = vpop.f32.mrb[0].mxu0
    %v462 = vadd.f32 0.0, %v461
    %v463 = vpop.f32.mrb[0].mxu0
    %v464 = vpop.f32.mrb[0].mxu0
    %v465 = vpop.f32.mrb[0].mxu0
    %466 = vdwg.mxu0
    %v471 = vunpack.c.l.b16 %v402
    %v472 = vunpack.c.l.b16 %v403
    %v473 = vunpack.c.l.b16 %v404
    %v474 = vunpack.c.l.b16 %v405
    %v475 = vpack.c.b16 %v472, %v471
    %v476 = vpack.c.b16 %v474, %v473
    %v480 = vsel %vm68, %v401, 0
    %482 = vmatprep.subr.bf16.mxu0 0
    %483 = vmatpush1.bf16.msra.mxu0 %v475
    %484 = vmatprep.subr.bf16.mxu0 0
    %485 = vmatpush1.bf16.msra.mxu0 %v476
    %486 = vmatprep.subr.bf16.mxu0 0
    %487 = vmatpush1.bf16.msra.mxu0 0
    %488 = vmatprep.subr.bf16.mxu0 0
    %489 = vmatpush1.bf16.msra.mxu0 0
    %490 = vmatprep.subr.bf16.mxu0 0
    %491 = vmatpush1.bf16.msra.mxu0 0
    %492 = vmatprep.subr.bf16.mxu0 0
    %493 = vmatpush1.bf16.msra.mxu0 0
    %494 = vmatprep.subr.bf16.mxu0 0
    %495 = vmatpush1.bf16.msra.mxu0 0
    %496 = vmatprep.subr.bf16.mxu0 0
    %497 = vmatpush1.bf16.msra.mxu0 0
    %498 = vmatprep.subr.bf16.mxu0 0
    %499 = vmatpush1.bf16.msra.mxu0 0
    %500 = vmatprep.subr.bf16.mxu0 0
    %501 = vmatpush1.bf16.msra.mxu0 0
    %502 = vmatprep.subr.bf16.mxu0 0
    %503 = vmatpush1.bf16.msra.mxu0 0
    %504 = vmatprep.subr.bf16.mxu0 0
    %505 = vmatpush1.bf16.msra.mxu0 0
    %506 = vmatprep.subr.bf16.mxu0 0
    %507 = vmatpush1.bf16.msra.mxu0 0
    %508 = vmatprep.subr.bf16.mxu0 0
    %509 = vmatpush1.bf16.msra.mxu0 0
    %510 = vmatprep.subr.bf16.mxu0 0
    %511 = vmatpush1.bf16.msra.mxu0 0
    %512 = vmatprep.subr.bf16.mxu0 0
    %513 = vmatpush1.bf16.msra.mxu0 0
    %514 = vmatprep.mubr.bf16.mxu0 0
    %515 = vmatmul.mubr.bf16.gmra.mrb[0].mxu0 %v480
    %v516 = vpop.f32.mrb[0].mxu0
    %v517 = vadd.f32 %v462, %v516
    %v518 = vpop.f32.mrb[0].mxu0
    %v519 = vpop.f32.mrb[0].mxu0
    %v520 = vpop.f32.mrb[0].mxu0
    %521 = vdwg.mxu0
    %s522 = scalar_lea.vmem [#allocation2], 17
    %v523 = vld [vmem:[%s522] sm:$0x1]
    %v524 = vld [vmem:[%s169] sm:$0xf]
    %v525 = vld [vmem:[%s169 + $0x4] sm:$0xf]
    %v526 = vld [vmem:[%s169 + $0x8] sm:$0xf]
    %v527 = vld [vmem:[%s169 + $0xc] sm:$0xf]
    %v532 = vunpack.c.l.b16 %v524
    %v533 = vunpack.c.l.b16 %v525
    %v534 = vunpack.c.l.b16 %v526
    %v535 = vunpack.c.l.b16 %v527
    %v536 = vpack.c.b16 %v533, %v532
    %v537 = vpack.c.b16 %v535, %v534
    %v541 = vsel %vm68, %v523, 0
    %543 = vmatprep.subr.bf16.mxu0 0
    %544 = vmatpush1.bf16.msra.mxu0 %v536
    %545 = vmatprep.subr.bf16.mxu0 0
    %546 = vmatpush1.bf16.msra.mxu0 %v537
    %547 = vmatprep.subr.bf16.mxu0 0
    %548 = vmatpush1.bf16.msra.mxu0 0
    %549 = vmatprep.subr.bf16.mxu0 0
    %550 = vmatpush1.bf16.msra.mxu0 0
    %551 = vmatprep.subr.bf16.mxu0 0
    %552 = vmatpush1.bf16.msra.mxu0 0
    %553 = vmatprep.subr.bf16.mxu0 0
    %554 = vmatpush1.bf16.msra.mxu0 0
    %555 = vmatprep.subr.bf16.mxu0 0
    %556 = vmatpush1.bf16.msra.mxu0 0
    %557 = vmatprep.subr.bf16.mxu0 0
    %558 = vmatpush1.bf16.msra.mxu0 0
    %559 = vmatprep.subr.bf16.mxu0 0
    %560 = vmatpush1.bf16.msra.mxu0 0
    %561 = vmatprep.subr.bf16.mxu0 0
    %562 = vmatpush1.bf16.msra.mxu0 0
    %563 = vmatprep.subr.bf16.mxu0 0
    %564 = vmatpush1.bf16.msra.mxu0 0
    %565 = vmatprep.subr.bf16.mxu0 0
    %566 = vmatpush1.bf16.msra.mxu0 0
    %567 = vmatprep.subr.bf16.mxu0 0
    %568 = vmatpush1.bf16.msra.mxu0 0
    %569 = vmatprep.subr.bf16.mxu0 0
    %570 = vmatpush1.bf16.msra.mxu0 0
    %571 = vmatprep.subr.bf16.mxu0 0
    %572 = vmatpush1.bf16.msra.mxu0 0
    %573 = vmatprep.subr.bf16.mxu0 0
    %574 = vmatpush1.bf16.msra.mxu0 0
    %575 = vmatprep.mubr.bf16.mxu0 0
    %576 = vmatmul.mubr.bf16.gmra.mrb[0].mxu0 %v541
    %v577 = vpop.f32.mrb[0].mxu0
    %v578 = vadd.f32 0.0, %v577
    %v579 = vpop.f32.mrb[0].mxu0
    %v580 = vpop.f32.mrb[0].mxu0
    %v581 = vpop.f32.mrb[0].mxu0
    %582 = vdwg.mxu0
    %v583 = vadd.f32 %v517, %v578
    %v584 = vld [vmem:[%s230] sm:$0xf]
    %v585 = vld [vmem:[%s230 + $0x4] sm:$0xf]
    %v586 = vld [vmem:[%s230 + $0x8] sm:$0xf]
    %v587 = vld [vmem:[%s230 + $0xc] sm:$0xf]
    %v590 = vunpack.c.l.s4 1966171168
    %v591 = vunpack.c.0.s8 %v590
    %v592 = vlaneseq
    %v593 = vshrl.u32 %v592, 7
    %v594 = vsub.s32 %v591, %v593
    %v595 = vrot.slane %v401, %v594
    %v597 = vunpack.c.l.s4 1966171168
    %v598 = vunpack.c.0.s8 %v597
    %v599 = vlaneseq
    %v600 = vshrl.u32 %v599, 7
    %v601 = vsub.s32 %v598, %v600
    %v602 = vrot.slane %v595, %v601
    %v604 = vshrl.u32 %v602, 16
    %v610 = vunpack.c.l.b16 %v584
    %v611 = vunpack.c.l.b16 %v585
    %v612 = vunpack.c.l.b16 %v586
    %v613 = vunpack.c.l.b16 %v587
    %v614 = vpack.c.b16 %v611, %v610
    %v615 = vpack.c.b16 %v613, %v612
    %v619 = vsel %vm68, %v604, 0
    %621 = vmatprep.subr.bf16.mxu0 0
    %622 = vmatpush1.bf16.msra.mxu0 %v614
    %623 = vmatprep.subr.bf16.mxu0 0
    %624 = vmatpush1.bf16.msra.mxu0 %v615
    %625 = vmatprep.subr.bf16.mxu0 0
    %626 = vmatpush1.bf16.msra.mxu0 0
    %627 = vmatprep.subr.bf16.mxu0 0
    %628 = vmatpush1.bf16.msra.mxu0 0
    %629 = vmatprep.subr.bf16.mxu0 0
    %630 = vmatpush1.bf16.msra.mxu0 0
    %631 = vmatprep.subr.bf16.mxu0 0
    %632 = vmatpush1.bf16.msra.mxu0 0
    %633 = vmatprep.subr.bf16.mxu0 0
    %634 = vmatpush1.bf16.msra.mxu0 0
    %635 = vmatprep.subr.bf16.mxu0 0
    %636 = vmatpush1.bf16.msra.mxu0 0
    %637 = vmatprep.subr.bf16.mxu0 0
    %638 = vmatpush1.bf16.msra.mxu0 0
    %639 = vmatprep.subr.bf16.mxu0 0
    %640 = vmatpush1.bf16.msra.mxu0 0
    %641 = vmatprep.subr.bf16.mxu0 0
    %642 = vmatpush1.bf16.msra.mxu0 0
    %643 = vmatprep.subr.bf16.mxu0 0
    %644 = vmatpush1.bf16.msra.mxu0 0
    %645 = vmatprep.subr.bf16.mxu0 0
    %646 = vmatpush1.bf16.msra.mxu0 0
    %647 = vmatprep.subr.bf16.mxu0 0
    %648 = vmatpush1.bf16.msra.mxu0 0
    %649 = vmatprep.subr.bf16.mxu0 0
    %650 = vmatpush1.bf16.msra.mxu0 0
    %651 = vmatprep.subr.bf16.mxu0 0
    %652 = vmatpush1.bf16.msra.mxu0 0
    %653 = vmatprep.mubr.bf16.mxu0 0
    %654 = vmatmul.mubr.bf16.gmra.mrb[0].mxu0 %v619
    %v655 = vpop.f32.mrb[0].mxu0
    %v656 = vadd.f32 0.0, %v655
    %v657 = vpop.f32.mrb[0].mxu0
    %v658 = vpop.f32.mrb[0].mxu0
    %v659 = vpop.f32.mrb[0].mxu0
    %660 = vdwg.mxu0
    %v661 = vadd.f32 %v583, %v656
    %v662 = vld [vmem:[%s406] sm:$0x1]
    %v663 = vld [vmem:[%s310] sm:$0xf]
    %v664 = vld [vmem:[%s310 + $0x4] sm:$0xf]
    %v665 = vld [vmem:[%s310 + $0x8] sm:$0xf]
    %v666 = vld [vmem:[%s310 + $0xc] sm:$0xf]
    %v669 = vunpack.c.l.s4 1966171168
    %v670 = vunpack.c.0.s8 %v669
    %v671 = vlaneseq
    %v672 = vshrl.u32 %v671, 7
    %v673 = vsub.s32 %v670, %v672
    %v674 = vrot.slane %v662, %v673
    %v676 = vunpack.c.l.s4 1966171168
    %v677 = vunpack.c.0.s8 %v676
    %v678 = vlaneseq
    %v679 = vshrl.u32 %v678, 7
    %v680 = vsub.s32 %v677, %v679
    %v681 = vrot.slane %v674, %v680
    %v683 = vshrl.u32 %v681, 16
    %v689 = vunpack.c.l.b16 %v663
    %v690 = vunpack.c.l.b16 %v664
    %v691 = vunpack.c.l.b16 %v665
    %v692 = vunpack.c.l.b16 %v666
    %v693 = vpack.c.b16 %v690, %v689
    %v694 = vpack.c.b16 %v692, %v691
    %v698 = vsel %vm68, %v683, 0
    %700 = vmatprep.subr.bf16.mxu0 0
    %701 = vmatpush1.bf16.msra.mxu0 %v693
    %702 = vmatprep.subr.bf16.mxu0 0
    %703 = vmatpush1.bf16.msra.mxu0 %v694
    %704 = vmatprep.subr.bf16.mxu0 0
    %705 = vmatpush1.bf16.msra.mxu0 0
    %706 = vmatprep.subr.bf16.mxu0 0
    %707 = vmatpush1.bf16.msra.mxu0 0
    %708 = vmatprep.subr.bf16.mxu0 0
    %709 = vmatpush1.bf16.msra.mxu0 0
    %710 = vmatprep.subr.bf16.mxu0 0
    %711 = vmatpush1.bf16.msra.mxu0 0
    %712 = vmatprep.subr.bf16.mxu0 0
    %713 = vmatpush1.bf16.msra.mxu0 0
    %714 = vmatprep.subr.bf16.mxu0 0
    %715 = vmatpush1.bf16.msra.mxu0 0
    %716 = vmatprep.subr.bf16.mxu0 0
    %717 = vmatpush1.bf16.msra.mxu0 0
    %718 = vmatprep.subr.bf16.mxu0 0
    %719 = vmatpush1.bf16.msra.mxu0 0
    %720 = vmatprep.subr.bf16.mxu0 0
    %721 = vmatpush1.bf16.msra.mxu0 0
    %722 = vmatprep.subr.bf16.mxu0 0
    %723 = vmatpush1.bf16.msra.mxu0 0
    %724 = vmatprep.subr.bf16.mxu0 0
    %725 = vmatpush1.bf16.msra.mxu0 0
    %726 = vmatprep.subr.bf16.mxu0 0
    %727 = vmatpush1.bf16.msra.mxu0 0
    %728 = vmatprep.subr.bf16.mxu0 0
    %729 = vmatpush1.bf16.msra.mxu0 0
    %730 = vmatprep.subr.bf16.mxu0 0
    %731 = vmatpush1.bf16.msra.mxu0 0
    %732 = vmatprep.mubr.bf16.mxu0 0
    %733 = vmatmul.mubr.bf16.gmra.mrb[0].mxu0 %v698
    %v734 = vpop.f32.mrb[0].mxu0
    %v735 = vadd.f32 0.0, %v734
    %v736 = vpop.f32.mrb[0].mxu0
    %v737 = vpop.f32.mrb[0].mxu0
    %v738 = vpop.f32.mrb[0].mxu0
    %739 = vdwg.mxu0
    %v740 = vadd.f32 %v661, %v735
    %v741 = vadd.f32 %v740, %v43
    %vm742 = vcmp.ge.f32.partialorder %v741, 0.0
    %v743 = vmul.f32 %v741, 0.1
    %v744 = vsel %vm742, %v741, %v743
    %v745 = vpack.c.bf16 %v744, %v744
    %s746 = scalar_lea.vmem %s3, 1
    %v747 = vld [vmem:[%s746] sm:$0x1]
    %v748 = vsel %vm396, %v745, %v747
    %749 = vst [vmem:[%s746] sm:$0x1] %v748
    %s750 = scalar_lea.vmem [#allocation2], 2
    %v751 = vld [vmem:[%s750] sm:$0x1]
    %v752 = vld [vmem:[#allocation4] sm:$0xf]
    %v753 = vld [vmem:[#allocation4 + $0x4] sm:$0xf]
    %v754 = vld [vmem:[#allocation4 + $0x8] sm:$0xf]
    %v755 = vld [vmem:[#allocation4 + $0xc] sm:$0xf]
    %s756 = scalar_lea.vmem [#allocation2], 10
    %v757 = vld [vmem:[%s756] sm:$0x1]
    %v758 = vld [vmem:[%s51] sm:$0xf]
    %v759 = vld [vmem:[%s51 + $0x4] sm:$0xf]
    %v760 = vld [vmem:[%s51 + $0x8] sm:$0xf]
    %v761 = vld [vmem:[%s51 + $0xc] sm:$0xf]
    %v766 = vunpack.c.l.b16 %v758
    %v767 = vunpack.c.l.b16 %v759
    %v768 = vunpack.c.l.b16 %v760
    %v769 = vunpack.c.l.b16 %v761
    %v770 = vpack.c.b16 %v767, %v766
    %v771 = vpack.c.b16 %v769, %v768
    %v775 = vsel %vm68, %v757, 0
    %777 = vmatprep.subr.bf16.mxu0 0
    %778 = vmatpush1.bf16.msra.mxu0 %v770
    %779 = vmatprep.subr.bf16.mxu0 0
    %780 = vmatpush1.bf16.msra.mxu0 %v771
    %781 = vmatprep.subr.bf16.mxu0 0
    %782 = vmatpush1.bf16.msra.mxu0 0
    %783 = vmatprep.subr.bf16.mxu0 0
    %784 = vmatpush1.bf16.msra.mxu0 0
    %785 = vmatprep.subr.bf16.mxu0 0
    %786 = vmatpush1.bf16.msra.mxu0 0
    %787 = vmatprep.subr.bf16.mxu0 0
    %788 = vmatpush1.bf16.msra.mxu0 0
    %789 = vmatprep.subr.bf16.mxu0 0
    %790 = vmatpush1.bf16.msra.mxu0 0
    %791 = vmatprep.subr.bf16.mxu0 0
    %792 = vmatpush1.bf16.msra.mxu0 0
    %793 = vmatprep.subr.bf16.mxu0 0
    %794 = vmatpush1.bf16.msra.mxu0 0
    %795 = vmatprep.subr.bf16.mxu0 0
    %796 = vmatpush1.bf16.msra.mxu0 0
    %797 = vmatprep.subr.bf16.mxu0 0
    %798 = vmatpush1.bf16.msra.mxu0 0
    %799 = vmatprep.subr.bf16.mxu0 0
    %800 = vmatpush1.bf16.msra.mxu0 0
    %801 = vmatprep.subr.bf16.mxu0 0
    %802 = vmatpush1.bf16.msra.mxu0 0
    %803 = vmatprep.subr.bf16.mxu0 0
    %804 = vmatpush1.bf16.msra.mxu0 0
    %805 = vmatprep.subr.bf16.mxu0 0
    %806 = vmatpush1.bf16.msra.mxu0 0
    %807 = vmatprep.subr.bf16.mxu0 0
    %808 = vmatpush1.bf16.msra.mxu0 0
    %809 = vmatprep.mubr.bf16.mxu0 0
    %810 = vmatmul.mubr.bf16.gmra.mrb[0].mxu0 %v775
    %v811 = vpop.f32.mrb[0].mxu0
    %v812 = vadd.f32 0.0, %v811
    %v813 = vpop.f32.mrb[0].mxu0
    %v814 = vpop.f32.mrb[0].mxu0
    %v815 = vpop.f32.mrb[0].mxu0
    %816 = vdwg.mxu0
    %v821 = vunpack.c.l.b16 %v752
    %v822 = vunpack.c.l.b16 %v753
    %v823 = vunpack.c.l.b16 %v754
    %v824 = vunpack.c.l.b16 %v755
    %v825 = vpack.c.b16 %v822, %v821
    %v826 = vpack.c.b16 %v824, %v823
    %v830 = vsel %vm68, %v751, 0
    %832 = vmatprep.subr.bf16.mxu0 0
    %833 = vmatpush1.bf16.msra.mxu0 %v825
    %834 = vmatprep.subr.bf16.mxu0 0
    %835 = vmatpush1.bf16.msra.mxu0 %v826
    %836 = vmatprep.subr.bf16.mxu0 0
    %837 = vmatpush1.bf16.msra.mxu0 0
    %838 = vmatprep.subr.bf16.mxu0 0
    %839 = vmatpush1.bf16.msra.mxu0 0
    %840 = vmatprep.subr.bf16.mxu0 0
    %841 = vmatpush1.bf16.msra.mxu0 0
    %842 = vmatprep.subr.bf16.mxu0 0
    %843 = vmatpush1.bf16.msra.mxu0 0
    %844 = vmatprep.subr.bf16.mxu0 0
    %845 = vmatpush1.bf16.msra.mxu0 0
    %846 = vmatprep.subr.bf16.mxu0 0
    %847 = vmatpush1.bf16.msra.mxu0 0
    %848 = vmatprep.subr.bf16.mxu0 0
    %849 = vmatpush1.bf16.msra.mxu0 0
    %850 = vmatprep.subr.bf16.mxu0 0
    %851 = vmatpush1.bf16.msra.mxu0 0
    %852 = vmatprep.subr.bf16.mxu0 0
    %853 = vmatpush1.bf16.msra.mxu0 0
    %854 = vmatprep.subr.bf16.mxu0 0
    %855 = vmatpush1.bf16.msra.mxu0 0
    %856 = vmatprep.subr.bf16.mxu0 0
    %857 = vmatpush1.bf16.msra.mxu0 0
    %858 = vmatprep.subr.bf16.mxu0 0
    %859 = vmatpush1.bf16.msra.mxu0 0
    %860 = vmatprep.subr.bf16.mxu0 0
    %861 = vmatpush1.bf16.msra.mxu0 0
    %862 = vmatprep.subr.bf16.mxu0 0
    %863 = vmatpush1.bf16.msra.mxu0 0
    %864 = vmatprep.mubr.bf16.mxu0 0
    %865 = vmatmul.mubr.bf16.gmra.mrb[0].mxu0 %v830
    %v866 = vpop.f32.mrb[0].mxu0
    %v867 = vadd.f32 %v812, %v866
    %v868 = vpop.f32.mrb[0].mxu0
    %v869 = vpop.f32.mrb[0].mxu0
    %v870 = vpop.f32.mrb[0].mxu0
    %871 = vdwg.mxu0
    %s872 = scalar_lea.vmem [#allocation2], 18
    %v873 = vld [vmem:[%s872] sm:$0x1]
    %v874 = vld [vmem:[%s169] sm:$0xf]
    %v875 = vld [vmem:[%s169 + $0x4] sm:$0xf]
    %v876 = vld [vmem:[%s169 + $0x8] sm:$0xf]
    %v877 = vld [vmem:[%s169 + $0xc] sm:$0xf]
    %v882 = vunpack.c.l.b16 %v874
    %v883 = vunpack.c.l.b16 %v875
    %v884 = vunpack.c.l.b16 %v876
    %v885 = vunpack.c.l.b16 %v877
    %v886 = vpack.c.b16 %v883, %v882
    %v887 = vpack.c.b16 %v885, %v884
    %v891 = vsel %vm68, %v873, 0
    %893 = vmatprep.subr.bf16.mxu0 0
    %894 = vmatpush1.bf16.msra.mxu0 %v886
    %895 = vmatprep.subr.bf16.mxu0 0
    %896 = vmatpush1.bf16.msra.mxu0 %v887
    %897 = vmatprep.subr.bf16.mxu0 0
    %898 = vmatpush1.bf16.msra.mxu0 0
    %899 = vmatprep.subr.bf16.mxu0 0
    %900 = vmatpush1.bf16.msra.mxu0 0
    %901 = vmatprep.subr.bf16.mxu0 0
    %902 = vmatpush1.bf16.msra.mxu0 0
    %903 = vmatprep.subr.bf16.mxu0 0
    %904 = vmatpush1.bf16.msra.mxu0 0
    %905 = vmatprep.subr.bf16.mxu0 0
    %906 = vmatpush1.bf16.msra.mxu0 0
    %907 = vmatprep.subr.bf16.mxu0 0
    %908 = vmatpush1.bf16.msra.mxu0 0
    %909 = vmatprep.subr.bf16.mxu0 0
    %910 = vmatpush1.bf16.msra.mxu0 0
    %911 = vmatprep.subr.bf16.mxu0 0
    %912 = vmatpush1.bf16.msra.mxu0 0
    %913 = vmatprep.subr.bf16.mxu0 0
    %914 = vmatpush1.bf16.msra.mxu0 0
    %915 = vmatprep.subr.bf16.mxu0 0
    %916 = vmatpush1.bf16.msra.mxu0 0
    %917 = vmatprep.subr.bf16.mxu0 0
    %918 = vmatpush1.bf16.msra.mxu0 0
    %919 = vmatprep.subr.bf16.mxu0 0
    %920 = vmatpush1.bf16.msra.mxu0 0
    %921 = vmatprep.subr.bf16.mxu0 0
    %922 = vmatpush1.bf16.msra.mxu0 0
    %923 = vmatprep.subr.bf16.mxu0 0
    %924 = vmatpush1.bf16.msra.mxu0 0
    %925 = vmatprep.mubr.bf16.mxu0 0
    %926 = vmatmul.mubr.bf16.gmra.mrb[0].mxu0 %v891
    %v927 = vpop.f32.mrb[0].mxu0
    %v928 = vadd.f32 0.0, %v927
    %v929 = vpop.f32.mrb[0].mxu0
    %v930 = vpop.f32.mrb[0].mxu0
    %v931 = vpop.f32.mrb[0].mxu0
    %932 = vdwg.mxu0
    %v933 = vadd.f32 %v867, %v928
    %v934 = vld [vmem:[%s230] sm:$0xf]
    %v935 = vld [vmem:[%s230 + $0x4] sm:$0xf]
    %v936 = vld [vmem:[%s230 + $0x8] sm:$0xf]
    %v937 = vld [vmem:[%s230 + $0xc] sm:$0xf]
    %v940 = vunpack.c.l.s4 1966171168
    %v941 = vunpack.c.0.s8 %v940
    %v942 = vlaneseq
    %v943 = vshrl.u32 %v942, 7
    %v944 = vsub.s32 %v941, %v943
    %v945 = vrot.slane %v751, %v944
    %v947 = vunpack.c.l.s4 1966171168
    %v948 = vunpack.c.0.s8 %v947
    %v949 = vlaneseq
    %v950 = vshrl.u32 %v949, 7
    %v951 = vsub.s32 %v948, %v950
    %v952 = vrot.slane %v945, %v951
    %v954 = vshrl.u32 %v952, 16
    %v960 = vunpack.c.l.b16 %v934
    %v961 = vunpack.c.l.b16 %v935
    %v962 = vunpack.c.l.b16 %v936
    %v963 = vunpack.c.l.b16 %v937
    %v964 = vpack.c.b16 %v961, %v960
    %v965 = vpack.c.b16 %v963, %v962
    %v969 = vsel %vm68, %v954, 0
    %971 = vmatprep.subr.bf16.mxu0 0
    %972 = vmatpush1.bf16.msra.mxu0 %v964
    %973 = vmatprep.subr.bf16.mxu0 0
    %974 = vmatpush1.bf16.msra.mxu0 %v965
    %975 = vmatprep.subr.bf16.mxu0 0
    %976 = vmatpush1.bf16.msra.mxu0 0
    %977 = vmatprep.subr.bf16.mxu0 0
    %978 = vmatpush1.bf16.msra.mxu0 0
    %979 = vmatprep.subr.bf16.mxu0 0
    %980 = vmatpush1.bf16.msra.mxu0 0
    %981 = vmatprep.subr.bf16.mxu0 0
    %982 = vmatpush1.bf16.msra.mxu0 0
    %983 = vmatprep.subr.bf16.mxu0 0
    %984 = vmatpush1.bf16.msra.mxu0 0
    %985 = vmatprep.subr.bf16.mxu0 0
    %986 = vmatpush1.bf16.msra.mxu0 0
    %987 = vmatprep.subr.bf16.mxu0 0
    %988 = vmatpush1.bf16.msra.mxu0 0
    %989 = vmatprep.subr.bf16.mxu0 0
    %990 = vmatpush1.bf16.msra.mxu0 0
    %991 = vmatprep.subr.bf16.mxu0 0
    %992 = vmatpush1.bf16.msra.mxu0 0
    %993 = vmatprep.subr.bf16.mxu0 0
    %994 = vmatpush1.bf16.msra.mxu0 0
    %995 = vmatprep.subr.bf16.mxu0 0
    %996 = vmatpush1.bf16.msra.mxu0 0
    %997 = vmatprep.subr.bf16.mxu0 0
    %998 = vmatpush1.bf16.msra.mxu0 0
    %999 = vmatprep.subr.bf16.mxu0 0
    %1000 = vmatpush1.bf16.msra.mxu0 0
    %1001 = vmatprep.subr.bf16.mxu0 0
    %1002 = vmatpush1.bf16.msra.mxu0 0
    %1003 = vmatprep.mubr.bf16.mxu0 0
    %1004 = vmatmul.mubr.bf16.gmra.mrb[0].mxu0 %v969
    %v1005 = vpop.f32.mrb[0].mxu0
    %v1006 = vadd.f32 0.0, %v1005
    %v1007 = vpop.f32.mrb[0].mxu0
    %v1008 = vpop.f32.mrb[0].mxu0
    %v1009 = vpop.f32.mrb[0].mxu0
    %1010 = vdwg.mxu0
    %v1011 = vadd.f32 %v933, %v1006
    %v1012 = vld [vmem:[%s756] sm:$0x1]
    %v1013 = vld [vmem:[%s310] sm:$0xf]
    %v1014 = vld [vmem:[%s310 + $0x4] sm:$0xf]
    %v1015 = vld [vmem:[%s310 + $0x8] sm:$0xf]
    %v1016 = vld [vmem:[%s310 + $0xc] sm:$0xf]
    %v1019 = vunpack.c.l.s4 1966171168
    %v1020 = vunpack.c.0.s8 %v1019
    %v1021 = vlaneseq
    %v1022 = vshrl.u32 %v1021, 7
    %v1023 = vsub.s32 %v1020, %v1022
    %v1024 = vrot.slane %v1012, %v1023
    %v1026 = vunpack.c.l.s4 1966171168
    %v1027 = vunpack.c.0.s8 %v1026
    %v1028 = vlaneseq
    %v1029 = vshrl.u32 %v1028, 7
    %v1030 = vsub.s32 %v1027, %v1029
    %v1031 = vrot.slane %v1024, %v1030
    %v1033 = vshrl.u32 %v1031, 16
    %v1039 = vunpack.c.l.b16 %v1013
    %v1040 = vunpack.c.l.b16 %v1014
    %v1041 = vunpack.c.l.b16 %v1015
    %v1042 = vunpack.c.l.b16 %v1016
    %v1043 = vpack.c.b16 %v1040, %v1039
    %v1044 = vpack.c.b16 %v1042, %v1041
    %v1048 = vsel %vm68, %v1033, 0
    %1050 = vmatprep.subr.bf16.mxu0 0
    %1051 = vmatpush1.bf16.msra.mxu0 %v1043
    %1052 = vmatprep.subr.bf16.mxu0 0
    %1053 = vmatpush1.bf16.msra.mxu0 %v1044
    %1054 = vmatprep.subr.bf16.mxu0 0
    %1055 = vmatpush1.bf16.msra.mxu0 0
    %1056 = vmatprep.subr.bf16.mxu0 0
    %1057 = vmatpush1.bf16.msra.mxu0 0
    %1058 = vmatprep.subr.bf16.mxu0 0
    %1059 = vmatpush1.bf16.msra.mxu0 0
    %1060 = vmatprep.subr.bf16.mxu0 0
    %1061 = vmatpush1.bf16.msra.mxu0 0
    %1062 = vmatprep.subr.bf16.mxu0 0
    %1063 = vmatpush1.bf16.msra.mxu0 0
    %1064 = vmatprep.subr.bf16.mxu0 0
    %1065 = vmatpush1.bf16.msra.mxu0 0
    %1066 = vmatprep.subr.bf16.mxu0 0
    %1067 = vmatpush1.bf16.msra.mxu0 0
    %1068 = vmatprep.subr.bf16.mxu0 0
    %1069 = vmatpush1.bf16.msra.mxu0 0
    %1070 = vmatprep.subr.bf16.mxu0 0
    %1071 = vmatpush1.bf16.msra.mxu0 0
    %1072 = vmatprep.subr.bf16.mxu0 0
    %1073 = vmatpush1.bf16.msra.mxu0 0
    %1074 = vmatprep.subr.bf16.mxu0 0
    %1075 = vmatpush1.bf16.msra.mxu0 0
    %1076 = vmatprep.subr.bf16.mxu0 0
    %1077 = vmatpush1.bf16.msra.mxu0 0
    %1078 = vmatprep.subr.bf16.mxu0 0
    %1079 = vmatpush1.bf16.msra.mxu0 0
    %1080 = vmatprep.subr.bf16.mxu0 0
    %1081 = vmatpush1.bf16.msra.mxu0 0
    %1082 = vmatprep.mubr.bf16.mxu0 0
    %1083 = vmatmul.mubr.bf16.gmra.mrb[0].mxu0 %v1048
    %v1084 = vpop.f32.mrb[0].mxu0
    %v1085 = vadd.f32 0.0, %v1084
    %v1086 = vpop.f32.mrb[0].mxu0
    %v1087 = vpop.f32.mrb[0].mxu0
    %v1088 = vpop.f32.mrb[0].mxu0
    %1089 = vdwg.mxu0
    %v1090 = vadd.f32 %v1011, %v1085
    %v1091 = vadd.f32 %v1090, %v43
    %vm1092 = vcmp.ge.f32.partialorder %v1091, 0.0
    %v1093 = vmul.f32 %v1091, 0.1
    %v1094 = vsel %vm1092, %v1091, %v1093
    %v1095 = vpack.c.bf16 %v1094, %v1094
    %s1096 = scalar_lea.vmem %s3, 2
    %v1097 = vld [vmem:[%s1096] sm:$0x1]
    %v1098 = vsel %vm396, %v1095, %v1097
    %1099 = vst [vmem:[%s1096] sm:$0x1] %v1098
    %s1100 = scalar_lea.vmem [#allocation2], 3
    %v1101 = vld [vmem:[%s1100] sm:$0x1]
    %v1102 = vld [vmem:[#allocation4] sm:$0xf]
    %v1103 = vld [vmem:[#allocation4 + $0x4] sm:$0xf]
    %v1104 = vld [vmem:[#allocation4 + $0x8] sm:$0xf]
    %v1105 = vld [vmem:[#allocation4 + $0xc] sm:$0xf]
    %s1106 = scalar_lea.vmem [#allocation2], 11
    %v1107 = vld [vmem:[%s1106] sm:$0x1]
    %v1108 = vld [vmem:[%s51] sm:$0xf]
    %v1109 = vld [vmem:[%s51 + $0x4] sm:$0xf]
    %v1110 = vld [vmem:[%s51 + $0x8] sm:$0xf]
    %v1111 = vld [vmem:[%s51 + $0xc] sm:$0xf]
    %v1116 = vunpack.c.l.b16 %v1108
    %v1117 = vunpack.c.l.b16 %v1109
    %v1118 = vunpack.c.l.b16 %v1110
    %v1119 = vunpack.c.l.b16 %v1111
    %v1120 = vpack.c.b16 %v1117, %v1116
    %v1121 = vpack.c.b16 %v1119, %v1118
    %v1125 = vsel %vm68, %v1107, 0
    %1127 = vmatprep.subr.bf16.mxu0 0
    %1128 = vmatpush1.bf16.msra.mxu0 %v1120
    %1129 = vmatprep.subr.bf16.mxu0 0
    %1130 = vmatpush1.bf16.msra.mxu0 %v1121
    %1131 = vmatprep.subr.bf16.mxu0 0
    %1132 = vmatpush1.bf16.msra.mxu0 0
    %1133 = vmatprep.subr.bf16.mxu0 0
    %1134 = vmatpush1.bf16.msra.mxu0 0
    %1135 = vmatprep.subr.bf16.mxu0 0
    %1136 = vmatpush1.bf16.msra.mxu0 0
    %1137 = vmatprep.subr.bf16.mxu0 0
    %1138 = vmatpush1.bf16.msra.mxu0 0
    %1139 = vmatprep.subr.bf16.mxu0 0
    %1140 = vmatpush1.bf16.msra.mxu0 0
    %1141 = vmatprep.subr.bf16.mxu0 0
    %1142 = vmatpush1.bf16.msra.mxu0 0
    %1143 = vmatprep.subr.bf16.mxu0 0
    %1144 = vmatpush1.bf16.msra.mxu0 0
    %1145 = vmatprep.subr.bf16.mxu0 0
    %1146 = vmatpush1.bf16.msra.mxu0 0
    %1147 = vmatprep.subr.bf16.mxu0 0
    %1148 = vmatpush1.bf16.msra.mxu0 0
    %1149 = vmatprep.subr.bf16.mxu0 0
    %1150 = vmatpush1.bf16.msra.mxu0 0
    %1151 = vmatprep.subr.bf16.mxu0 0
    %1152 = vmatpush1.bf16.msra.mxu0 0
    %1153 = vmatprep.subr.bf16.mxu0 0
    %1154 = vmatpush1.bf16.msra.mxu0 0
    %1155 = vmatprep.subr.bf16.mxu0 0
    %1156 = vmatpush1.bf16.msra.mxu0 0
    %1157 = vmatprep.subr.bf16.mxu0 0
    %1158 = vmatpush1.bf16.msra.mxu0 0
    %1159 = vmatprep.mubr.bf16.mxu0 0
    %1160 = vmatmul.mubr.bf16.gmra.mrb[0].mxu0 %v1125
    %v1161 = vpop.f32.mrb[0].mxu0
    %v1162 = vadd.f32 0.0, %v1161
    %v1163 = vpop.f32.mrb[0].mxu0
    %v1164 = vpop.f32.mrb[0].mxu0
    %v1165 = vpop.f32.mrb[0].mxu0
    %1166 = vdwg.mxu0
    %v1171 = vunpack.c.l.b16 %v1102
    %v1172 = vunpack.c.l.b16 %v1103
    %v1173 = vunpack.c.l.b16 %v1104
    %v1174 = vunpack.c.l.b16 %v1105
    %v1175 = vpack.c.b16 %v1172, %v1171
    %v1176 = vpack.c.b16 %v1174, %v1173
    %v1180 = vsel %vm68, %v1101, 0
    %1182 = vmatprep.subr.bf16.mxu0 0
    %1183 = vmatpush1.bf16.msra.mxu0 %v1175
    %1184 = vmatprep.subr.bf16.mxu0 0
    %1185 = vmatpush1.bf16.msra.mxu0 %v1176
    %1186 = vmatprep.subr.bf16.mxu0 0
    %1187 = vmatpush1.bf16.msra.mxu0 0
    %1188 = vmatprep.subr.bf16.mxu0 0
    %1189 = vmatpush1.bf16.msra.mxu0 0
    %1190 = vmatprep.subr.bf16.mxu0 0
    %1191 = vmatpush1.bf16.msra.mxu0 0
    %1192 = vmatprep.subr.bf16.mxu0 0
    %1193 = vmatpush1.bf16.msra.mxu0 0
    %1194 = vmatprep.subr.bf16.mxu0 0
    %1195 = vmatpush1.bf16.msra.mxu0 0
    %1196 = vmatprep.subr.bf16.mxu0 0
    %1197 = vmatpush1.bf16.msra.mxu0 0
    %1198 = vmatprep.subr.bf16.mxu0 0
    %1199 = vmatpush1.bf16.msra.mxu0 0
    %1200 = vmatprep.subr.bf16.mxu0 0
    %1201 = vmatpush1.bf16.msra.mxu0 0
    %1202 = vmatprep.subr.bf16.mxu0 0
    %1203 = vmatpush1.bf16.msra.mxu0 0
    %1204 = vmatprep.subr.bf16.mxu0 0
    %1205 = vmatpush1.bf16.msra.mxu0 0
    %1206 = vmatprep.subr.bf16.mxu0 0
    %1207 = vmatpush1.bf16.msra.mxu0 0
    %1208 = vmatprep.subr.bf16.mxu0 0
    %1209 = vmatpush1.bf16.msra.mxu0 0
    %1210 = vmatprep.subr.bf16.mxu0 0
    %1211 = vmatpush1.bf16.msra.mxu0 0
    %1212 = vmatprep.subr.bf16.mxu0 0
    %1213 = vmatpush1.bf16.msra.mxu0 0
    %1214 = vmatprep.mubr.bf16.mxu0 0
    %1215 = vmatmul.mubr.bf16.gmra.mrb[0].mxu0 %v1180
    %v1216 = vpop.f32.mrb[0].mxu0
    %v1217 = vadd.f32 %v1162, %v1216
    %v1218 = vpop.f32.mrb[0].mxu0
    %v1219 = vpop.f32.mrb[0].mxu0
    %v1220 = vpop.f32.mrb[0].mxu0
    %1221 = vdwg.mxu0
    %s1222 = scalar_lea.vmem [#allocation2], 19
    %v1223 = vld [vmem:[%s1222] sm:$0x1]
    %v1224 = vld [vmem:[%s169] sm:$0xf]
    %v1225 = vld [vmem:[%s169 + $0x4] sm:$0xf]
    %v1226 = vld [vmem:[%s169 + $0x8] sm:$0xf]
    %v1227 = vld [vmem:[%s169 + $0xc] sm:$0xf]
    %v1232 = vunpack.c.l.b16 %v1224
    %v1233 = vunpack.c.l.b16 %v1225
    %v1234 = vunpack.c.l.b16 %v1226
    %v1235 = vunpack.c.l.b16 %v1227
    %v1236 = vpack.c.b16 %v1233, %v1232
    %v1237 = vpack.c.b16 %v1235, %v1234
    %v1241 = vsel %vm68, %v1223, 0
    %1243 = vmatprep.subr.bf16.mxu0 0
    %1244 = vmatpush1.bf16.msra.mxu0 %v1236
    %1245 = vmatprep.subr.bf16.mxu0 0
    %1246 = vmatpush1.bf16.msra.mxu0 %v1237
    %1247 = vmatprep.subr.bf16.mxu0 0
    %1248 = vmatpush1.bf16.msra.mxu0 0
    %1249 = vmatprep.subr.bf16.mxu0 0
    %1250 = vmatpush1.bf16.msra.mxu0 0
    %1251 = vmatprep.subr.bf16.mxu0 0
    %1252 = vmatpush1.bf16.msra.mxu0 0
    %1253 = vmatprep.subr.bf16.mxu0 0
    %1254 = vmatpush1.bf16.msra.mxu0 0
    %1255 = vmatprep.subr.bf16.mxu0 0
    %1256 = vmatpush1.bf16.msra.mxu0 0
    %1257 = vmatprep.subr.bf16.mxu0 0
    %1258 = vmatpush1.bf16.msra.mxu0 0
    %1259 = vmatprep.subr.bf16.mxu0 0
    %1260 = vmatpush1.bf16.msra.mxu0 0
    %1261 = vmatprep.subr.bf16.mxu0 0
    %1262 = vmatpush1.bf16.msra.mxu0 0
    %1263 = vmatprep.subr.bf16.mxu0 0
    %1264 = vmatpush1.bf16.msra.mxu0 0
    %1265 = vmatprep.subr.bf16.mxu0 0
    %1266 = vmatpush1.bf16.msra.mxu0 0
    %1267 = vmatprep.subr.bf16.mxu0 0
    %1268 = vmatpush1.bf16.msra.mxu0 0
    %1269 = vmatprep.subr.bf16.mxu0 0
    %1270 = vmatpush1.bf16.msra.mxu0 0
    %1271 = vmatprep.subr.bf16.mxu0 0
    %1272 = vmatpush1.bf16.msra.mxu0 0
    %1273 = vmatprep.subr.bf16.mxu0 0
    %1274 = vmatpush1.bf16.msra.mxu0 0
    %1275 = vmatprep.mubr.bf16.mxu0 0
    %1276 = vmatmul.mubr.bf16.gmra.mrb[0].mxu0 %v1241
    %v1277 = vpop.f32.mrb[0].mxu0
    %v1278 = vadd.f32 0.0, %v1277
    %v1279 = vpop.f32.mrb[0].mxu0
    %v1280 = vpop.f32.mrb[0].mxu0
    %v1281 = vpop.f32.mrb[0].mxu0
    %1282 = vdwg.mxu0
    %v1283 = vadd.f32 %v1217, %v1278
    %v1284 = vld [vmem:[%s230] sm:$0xf]
    %v1285 = vld [vmem:[%s230 + $0x4] sm:$0xf]
    %v1286 = vld [vmem:[%s230 + $0x8] sm:$0xf]
    %v1287 = vld [vmem:[%s230 + $0xc] sm:$0xf]
    %v1290 = vunpack.c.l.s4 1966171168
    %v1291 = vunpack.c.0.s8 %v1290
    %v1292 = vlaneseq
    %v1293 = vshrl.u32 %v1292, 7
    %v1294 = vsub.s32 %v1291, %v1293
    %v1295 = vrot.slane %v1101, %v1294
    %v1297 = vunpack.c.l.s4 1966171168
    %v1298 = vunpack.c.0.s8 %v1297
    %v1299 = vlaneseq
    %v1300 = vshrl.u32 %v1299, 7
    %v1301 = vsub.s32 %v1298, %v1300
    %v1302 = vrot.slane %v1295, %v1301
    %v1304 = vshrl.u32 %v1302, 16
    %v1310 = vunpack.c.l.b16 %v1284
    %v1311 = vunpack.c.l.b16 %v1285
    %v1312 = vunpack.c.l.b16 %v1286
    %v1313 = vunpack.c.l.b16 %v1287
    %v1314 = vpack.c.b16 %v1311, %v1310
    %v1315 = vpack.c.b16 %v1313, %v1312
    %v1319 = vsel %vm68, %v1304, 0
    %1321 = vmatprep.subr.bf16.mxu0 0
    %1322 = vmatpush1.bf16.msra.mxu0 %v1314
    %1323 = vmatprep.subr.bf16.mxu0 0
    %1324 = vmatpush1.bf16.msra.mxu0 %v1315
    %1325 = vmatprep.subr.bf16.mxu0 0
    %1326 = vmatpush1.bf16.msra.mxu0 0
    %1327 = vmatprep.subr.bf16.mxu0 0
    %1328 = vmatpush1.bf16.msra.mxu0 0
    %1329 = vmatprep.subr.bf16.mxu0 0
    %1330 = vmatpush1.bf16.msra.mxu0 0
    %1331 = vmatprep.subr.bf16.mxu0 0
    %1332 = vmatpush1.bf16.msra.mxu0 0
    %1333 = vmatprep.subr.bf16.mxu0 0
    %1334 = vmatpush1.bf16.msra.mxu0 0
    %1335 = vmatprep.subr.bf16.mxu0 0
    %1336 = vmatpush1.bf16.msra.mxu0 0
    %1337 = vmatprep.subr.bf16.mxu0 0
    %1338 = vmatpush1.bf16.msra.mxu0 0
    %1339 = vmatprep.subr.bf16.mxu0 0
    %1340 = vmatpush1.bf16.msra.mxu0 0
    %1341 = vmatprep.subr.bf16.mxu0 0
    %1342 = vmatpush1.bf16.msra.mxu0 0
    %1343 = vmatprep.subr.bf16.mxu0 0
    %1344 = vmatpush1.bf16.msra.mxu0 0
    %1345 = vmatprep.subr.bf16.mxu0 0
    %1346 = vmatpush1.bf16.msra.mxu0 0
    %1347 = vmatprep.subr.bf16.mxu0 0
    %1348 = vmatpush1.bf16.msra.mxu0 0
    %1349 = vmatprep.subr.bf16.mxu0 0
    %1350 = vmatpush1.bf16.msra.mxu0 0
    %1351 = vmatprep.subr.bf16.mxu0 0
    %1352 = vmatpush1.bf16.msra.mxu0 0
    %1353 = vmatprep.mubr.bf16.mxu0 0
    %1354 = vmatmul.mubr.bf16.gmra.mrb[0].mxu0 %v1319
    %v1355 = vpop.f32.mrb[0].mxu0
    %v1356 = vadd.f32 0.0, %v1355
    %v1357 = vpop.f32.mrb[0].mxu0
    %v1358 = vpop.f32.mrb[0].mxu0
    %v1359 = vpop.f32.mrb[0].mxu0
    %1360 = vdwg.mxu0
    %v1361 = vadd.f32 %v1283, %v1356
    %v1362 = vld [vmem:[%s1106] sm:$0x1]
    %v1363 = vld [vmem:[%s310] sm:$0xf]
    %v1364 = vld [vmem:[%s310 + $0x4] sm:$0xf]
    %v1365 = vld [vmem:[%s310 + $0x8] sm:$0xf]
    %v1366 = vld [vmem:[%s310 + $0xc] sm:$0xf]
    %v1369 = vunpack.c.l.s4 1966171168
    %v1370 = vunpack.c.0.s8 %v1369
    %v1371 = vlaneseq
    %v1372 = vshrl.u32 %v1371, 7
    %v1373 = vsub.s32 %v1370, %v1372
    %v1374 = vrot.slane %v1362, %v1373
    %v1376 = vunpack.c.l.s4 1966171168
    %v1377 = vunpack.c.0.s8 %v1376
    %v1378 = vlaneseq
    %v1379 = vshrl.u32 %v1378, 7
    %v1380 = vsub.s32 %v1377, %v1379
    %v1381 = vrot.slane %v1374, %v1380
    %v1383 = vshrl.u32 %v1381, 16
    %v1389 = vunpack.c.l.b16 %v1363
    %v1390 = vunpack.c.l.b16 %v1364
    %v1391 = vunpack.c.l.b16 %v1365
    %v1392 = vunpack.c.l.b16 %v1366
    %v1393 = vpack.c.b16 %v1390, %v1389
    %v1394 = vpack.c.b16 %v1392, %v1391
    %v1398 = vsel %vm68, %v1383, 0
    %1400 = vmatprep.subr.bf16.mxu0 0
    %1401 = vmatpush1.bf16.msra.mxu0 %v1393
    %1402 = vmatprep.subr.bf16.mxu0 0
    %1403 = vmatpush1.bf16.msra.mxu0 %v1394
    %1404 = vmatprep.subr.bf16.mxu0 0
    %1405 = vmatpush1.bf16.msra.mxu0 0
    %1406 = vmatprep.subr.bf16.mxu0 0
    %1407 = vmatpush1.bf16.msra.mxu0 0
    %1408 = vmatprep.subr.bf16.mxu0 0
    %1409 = vmatpush1.bf16.msra.mxu0 0
    %1410 = vmatprep.subr.bf16.mxu0 0
    %1411 = vmatpush1.bf16.msra.mxu0 0
    %1412 = vmatprep.subr.bf16.mxu0 0
    %1413 = vmatpush1.bf16.msra.mxu0 0
    %1414 = vmatprep.subr.bf16.mxu0 0
    %1415 = vmatpush1.bf16.msra.mxu0 0
    %1416 = vmatprep.subr.bf16.mxu0 0
    %1417 = vmatpush1.bf16.msra.mxu0 0
    %1418 = vmatprep.subr.bf16.mxu0 0
    %1419 = vmatpush1.bf16.msra.mxu0 0
    %1420 = vmatprep.subr.bf16.mxu0 0
    %1421 = vmatpush1.bf16.msra.mxu0 0
    %1422 = vmatprep.subr.bf16.mxu0 0
    %1423 = vmatpush1.bf16.msra.mxu0 0
    %1424 = vmatprep.subr.bf16.mxu0 0
    %1425 = vmatpush1.bf16.msra.mxu0 0
    %1426 = vmatprep.subr.bf16.mxu0 0
    %1427 = vmatpush1.bf16.msra.mxu0 0
    %1428 = vmatprep.subr.bf16.mxu0 0
    %1429 = vmatpush1.bf16.msra.mxu0 0
    %1430 = vmatprep.subr.bf16.mxu0 0
    %1431 = vmatpush1.bf16.msra.mxu0 0
    %1432 = vmatprep.mubr.bf16.mxu0 0
    %1433 = vmatmul.mubr.bf16.gmra.mrb[0].mxu0 %v1398
    %v1434 = vpop.f32.mrb[0].mxu0
    %v1435 = vadd.f32 0.0, %v1434
    %v1436 = vpop.f32.mrb[0].mxu0
    %v1437 = vpop.f32.mrb[0].mxu0
    %v1438 = vpop.f32.mrb[0].mxu0
    %1439 = vdwg.mxu0
    %v1440 = vadd.f32 %v1361, %v1435
    %v1441 = vadd.f32 %v1440, %v43
    %vm1442 = vcmp.ge.f32.partialorder %v1441, 0.0
    %v1443 = vmul.f32 %v1441, 0.1
    %v1444 = vsel %vm1442, %v1441, %v1443
    %v1445 = vpack.c.bf16 %v1444, %v1444
    %s1446 = scalar_lea.vmem %s3, 3
    %v1447 = vld [vmem:[%s1446] sm:$0x1]
    %v1448 = vsel %vm396, %v1445, %v1447
    %1449 = vst [vmem:[%s1446] sm:$0x1] %v1448
    %s1450 = scalar_lea.vmem [#allocation2], 4
    %v1451 = vld [vmem:[%s1450] sm:$0x1]
    %v1452 = vld [vmem:[#allocation4] sm:$0xf]
    %v1453 = vld [vmem:[#allocation4 + $0x4] sm:$0xf]
    %v1454 = vld [vmem:[#allocation4 + $0x8] sm:$0xf]
    %v1455 = vld [vmem:[#allocation4 + $0xc] sm:$0xf]
    %s1456 = scalar_lea.vmem [#allocation2], 12
    %v1457 = vld [vmem:[%s1456] sm:$0x1]
    %v1458 = vld [vmem:[%s51] sm:$0xf]
    %v1459 = vld [vmem:[%s51 + $0x4] sm:$0xf]
    %v1460 = vld [vmem:[%s51 + $0x8] sm:$0xf]
    %v1461 = vld [vmem:[%s51 + $0xc] sm:$0xf]
    %v1466 = vunpack.c.l.b16 %v1458
    %v1467 = vunpack.c.l.b16 %v1459
    %v1468 = vunpack.c.l.b16 %v1460
    %v1469 = vunpack.c.l.b16 %v1461
    %v1470 = vpack.c.b16 %v1467, %v1466
    %v1471 = vpack.c.b16 %v1469, %v1468
    %v1475 = vsel %vm68, %v1457, 0
    %1477 = vmatprep.subr.bf16.mxu0 0
    %1478 = vmatpush1.bf16.msra.mxu0 %v1470
    %1479 = vmatprep.subr.bf16.mxu0 0
    %1480 = vmatpush1.bf16.msra.mxu0 %v1471
    %1481 = vmatprep.subr.bf16.mxu0 0
    %1482 = vmatpush1.bf16.msra.mxu0 0
    %1483 = vmatprep.subr.bf16.mxu0 0
    %1484 = vmatpush1.bf16.msra.mxu0 0
    %1485 = vmatprep.subr.bf16.mxu0 0
    %1486 = vmatpush1.bf16.msra.mxu0 0
    %1487 = vmatprep.subr.bf16.mxu0 0
    %1488 = vmatpush1.bf16.msra.mxu0 0
    %1489 = vmatprep.subr.bf16.mxu0 0
    %1490 = vmatpush1.bf16.msra.mxu0 0
    %1491 = vmatprep.subr.bf16.mxu0 0
    %1492 = vmatpush1.bf16.msra.mxu0 0
    %1493 = vmatprep.subr.bf16.mxu0 0
    %1494 = vmatpush1.bf16.msra.mxu0 0
    %1495 = vmatprep.subr.bf16.mxu0 0
    %1496 = vmatpush1.bf16.msra.mxu0 0
    %1497 = vmatprep.subr.bf16.mxu0 0
    %1498 = vmatpush1.bf16.msra.mxu0 0
    %1499 = vmatprep.subr.bf16.mxu0 0
    %1500 = vmatpush1.bf16.msra.mxu0 0
    %1501 = vmatprep.subr.bf16.mxu0 0
    %1502 = vmatpush1.bf16.msra.mxu0 0
    %1503 = vmatprep.subr.bf16.mxu0 0
    %1504 = vmatpush1.bf16.msra.mxu0 0
    %1505 = vmatprep.subr.bf16.mxu0 0
    %1506 = vmatpush1.bf16.msra.mxu0 0
    %1507 = vmatprep.subr.bf16.mxu0 0
    %1508 = vmatpush1.bf16.msra.mxu0 0
    %1509 = vmatprep.mubr.bf16.mxu0 0
    %1510 = vmatmul.mubr.bf16.gmra.mrb[0].mxu0 %v1475
    %v1511 = vpop.f32.mrb[0].mxu0
    %v1512 = vadd.f32 0.0, %v1511
    %v1513 = vpop.f32.mrb[0].mxu0
    %v1514 = vpop.f32.mrb[0].mxu0
    %v1515 = vpop.f32.mrb[0].mxu0
    %1516 = vdwg.mxu0
    %v1521 = vunpack.c.l.b16 %v1452
    %v1522 = vunpack.c.l.b16 %v1453
    %v1523 = vunpack.c.l.b16 %v1454
    %v1524 = vunpack.c.l.b16 %v1455
    %v1525 = vpack.c.b16 %v1522, %v1521
    %v1526 = vpack.c.b16 %v1524, %v1523
    %v1530 = vsel %vm68, %v1451, 0
    %1532 = vmatprep.subr.bf16.mxu0 0
    %1533 = vmatpush1.bf16.msra.mxu0 %v1525
    %1534 = vmatprep.subr.bf16.mxu0 0
    %1535 = vmatpush1.bf16.msra.mxu0 %v1526
    %1536 = vmatprep.subr.bf16.mxu0 0
    %1537 = vmatpush1.bf16.msra.mxu0 0
    %1538 = vmatprep.subr.bf16.mxu0 0
    %1539 = vmatpush1.bf16.msra.mxu0 0
    %1540 = vmatprep.subr.bf16.mxu0 0
    %1541 = vmatpush1.bf16.msra.mxu0 0
    %1542 = vmatprep.subr.bf16.mxu0 0
    %1543 = vmatpush1.bf16.msra.mxu0 0
    %1544 = vmatprep.subr.bf16.mxu0 0
    %1545 = vmatpush1.bf16.msra.mxu0 0
    %1546 = vmatprep.subr.bf16.mxu0 0
    %1547 = vmatpush1.bf16.msra.mxu0 0
    %1548 = vmatprep.subr.bf16.mxu0 0
    %1549 = vmatpush1.bf16.msra.mxu0 0
    %1550 = vmatprep.subr.bf16.mxu0 0
    %1551 = vmatpush1.bf16.msra.mxu0 0
    %1552 = vmatprep.subr.bf16.mxu0 0
    %1553 = vmatpush1.bf16.msra.mxu0 0
    %1554 = vmatprep.subr.bf16.mxu0 0
    %1555 = vmatpush1.bf16.msra.mxu0 0
    %1556 = vmatprep.subr.bf16.mxu0 0
    %1557 = vmatpush1.bf16.msra.mxu0 0
    %1558 = vmatprep.subr.bf16.mxu0 0
    %1559 = vmatpush1.bf16.msra.mxu0 0
    %1560 = vmatprep.subr.bf16.mxu0 0
    %1561 = vmatpush1.bf16.msra.mxu0 0
    %1562 = vmatprep.subr.bf16.mxu0 0
    %1563 = vmatpush1.bf16.msra.mxu0 0
    %1564 = vmatprep.mubr.bf16.mxu0 0
    %1565 = vmatmul.mubr.bf16.gmra.mrb[0].mxu0 %v1530
    %v1566 = vpop.f32.mrb[0].mxu0
    %v1567 = vadd.f32 %v1512, %v1566
    %v1568 = vpop.f32.mrb[0].mxu0
    %v1569 = vpop.f32.mrb[0].mxu0
    %v1570 = vpop.f32.mrb[0].mxu0
    %1571 = vdwg.mxu0
    %s1572 = scalar_lea.vmem [#allocation2], 20
    %v1573 = vld [vmem:[%s1572] sm:$0x1]
    %v1574 = vld [vmem:[%s169] sm:$0xf]
    %v1575 = vld [vmem:[%s169 + $0x4] sm:$0xf]
    %v1576 = vld [vmem:[%s169 + $0x8] sm:$0xf]
    %v1577 = vld [vmem:[%s169 + $0xc] sm:$0xf]
    %v1582 = vunpack.c.l.b16 %v1574
    %v1583 = vunpack.c.l.b16 %v1575
    %v1584 = vunpack.c.l.b16 %v1576
    %v1585 = vunpack.c.l.b16 %v1577
    %v1586 = vpack.c.b16 %v1583, %v1582
    %v1587 = vpack.c.b16 %v1585, %v1584
    %v1591 = vsel %vm68, %v1573, 0
    %1593 = vmatprep.subr.bf16.mxu0 0
    %1594 = vmatpush1.bf16.msra.mxu0 %v1586
    %1595 = vmatprep.subr.bf16.mxu0 0
    %1596 = vmatpush1.bf16.msra.mxu0 %v1587
    %1597 = vmatprep.subr.bf16.mxu0 0
    %1598 = vmatpush1.bf16.msra.mxu0 0
    %1599 = vmatprep.subr.bf16.mxu0 0
    %1600 = vmatpush1.bf16.msra.mxu0 0
    %1601 = vmatprep.subr.bf16.mxu0 0
    %1602 = vmatpush1.bf16.msra.mxu0 0
    %1603 = vmatprep.subr.bf16.mxu0 0
    %1604 = vmatpush1.bf16.msra.mxu0 0
    %1605 = vmatprep.subr.bf16.mxu0 0
    %1606 = vmatpush1.bf16.msra.mxu0 0
    %1607 = vmatprep.subr.bf16.mxu0 0
    %1608 = vmatpush1.bf16.msra.mxu0 0
    %1609 = vmatprep.subr.bf16.mxu0 0
    %1610 = vmatpush1.bf16.msra.mxu0 0
    %1611 = vmatprep.subr.bf16.mxu0 0
    %1612 = vmatpush1.bf16.msra.mxu0 0
    %1613 = vmatprep.subr.bf16.mxu0 0
    %1614 = vmatpush1.bf16.msra.mxu0 0
    %1615 = vmatprep.subr.bf16.mxu0 0
    %1616 = vmatpush1.bf16.msra.mxu0 0
    %1617 = vmatprep.subr.bf16.mxu0 0
    %1618 = vmatpush1.bf16.msra.mxu0 0
    %1619 = vmatprep.subr.bf16.mxu0 0
    %1620 = vmatpush1.bf16.msra.mxu0 0
    %1621 = vmatprep.subr.bf16.mxu0 0
    %1622 = vmatpush1.bf16.msra.mxu0 0
    %1623 = vmatprep.subr.bf16.mxu0 0
    %1624 = vmatpush1.bf16.msra.mxu0 0
    %1625 = vmatprep.mubr.bf16.mxu0 0
    %1626 = vmatmul.mubr.bf16.gmra.mrb[0].mxu0 %v1591
    %v1627 = vpop.f32.mrb[0].mxu0
    %v1628 = vadd.f32 0.0, %v1627
    %v1629 = vpop.f32.mrb[0].mxu0
    %v1630 = vpop.f32.mrb[0].mxu0
    %v1631 = vpop.f32.mrb[0].mxu0
    %1632 = vdwg.mxu0
    %v1633 = vadd.f32 %v1567, %v1628
    %v1634 = vld [vmem:[%s230] sm:$0xf]
    %v1635 = vld [vmem:[%s230 + $0x4] sm:$0xf]
    %v1636 = vld [vmem:[%s230 + $0x8] sm:$0xf]
    %v1637 = vld [vmem:[%s230 + $0xc] sm:$0xf]
    %v1640 = vunpack.c.l.s4 1966171168
    %v1641 = vunpack.c.0.s8 %v1640
    %v1642 = vlaneseq
    %v1643 = vshrl.u32 %v1642, 7
    %v1644 = vsub.s32 %v1641, %v1643
    %v1645 = vrot.slane %v1451, %v1644
    %v1647 = vunpack.c.l.s4 1966171168
    %v1648 = vunpack.c.0.s8 %v1647
    %v1649 = vlaneseq
    %v1650 = vshrl.u32 %v1649, 7
    %v1651 = vsub.s32 %v1648, %v1650
    %v1652 = vrot.slane %v1645, %v1651
    %v1654 = vshrl.u32 %v1652, 16
    %v1660 = vunpack.c.l.b16 %v1634
    %v1661 = vunpack.c.l.b16 %v1635
    %v1662 = vunpack.c.l.b16 %v1636
    %v1663 = vunpack.c.l.b16 %v1637
    %v1664 = vpack.c.b16 %v1661, %v1660
    %v1665 = vpack.c.b16 %v1663, %v1662
    %v1669 = vsel %vm68, %v1654, 0
    %1671 = vmatprep.subr.bf16.mxu0 0
    %1672 = vmatpush1.bf16.msra.mxu0 %v1664
    %1673 = vmatprep.subr.bf16.mxu0 0
    %1674 = vmatpush1.bf16.msra.mxu0 %v1665
    %1675 = vmatprep.subr.bf16.mxu0 0
    %1676 = vmatpush1.bf16.msra.mxu0 0
    %1677 = vmatprep.subr.bf16.mxu0 0
    %1678 = vmatpush1.bf16.msra.mxu0 0
    %1679 = vmatprep.subr.bf16.mxu0 0
    %1680 = vmatpush1.bf16.msra.mxu0 0
    %1681 = vmatprep.subr.bf16.mxu0 0
    %1682 = vmatpush1.bf16.msra.mxu0 0
    %1683 = vmatprep.subr.bf16.mxu0 0
    %1684 = vmatpush1.bf16.msra.mxu0 0
    %1685 = vmatprep.subr.bf16.mxu0 0
    %1686 = vmatpush1.bf16.msra.mxu0 0
    %1687 = vmatprep.subr.bf16.mxu0 0
    %1688 = vmatpush1.bf16.msra.mxu0 0
    %1689 = vmatprep.subr.bf16.mxu0 0
    %1690 = vmatpush1.bf16.msra.mxu0 0
    %1691 = vmatprep.subr.bf16.mxu0 0
    %1692 = vmatpush1.bf16.msra.mxu0 0
    %1693 = vmatprep.subr.bf16.mxu0 0
    %1694 = vmatpush1.bf16.msra.mxu0 0
    %1695 = vmatprep.subr.bf16.mxu0 0
    %1696 = vmatpush1.bf16.msra.mxu0 0
    %1697 = vmatprep.subr.bf16.mxu0 0
    %1698 = vmatpush1.bf16.msra.mxu0 0
    %1699 = vmatprep.subr.bf16.mxu0 0
    %1700 = vmatpush1.bf16.msra.mxu0 0
    %1701 = vmatprep.subr.bf16.mxu0 0
    %1702 = vmatpush1.bf16.msra.mxu0 0
    %1703 = vmatprep.mubr.bf16.mxu0 0
    %1704 = vmatmul.mubr.bf16.gmra.mrb[0].mxu0 %v1669
    %v1705 = vpop.f32.mrb[0].mxu0
    %v1706 = vadd.f32 0.0, %v1705
    %v1707 = vpop.f32.mrb[0].mxu0
    %v1708 = vpop.f32.mrb[0].mxu0
    %v1709 = vpop.f32.mrb[0].mxu0
    %1710 = vdwg.mxu0
    %v1711 = vadd.f32 %v1633, %v1706
    %v1712 = vld [vmem:[%s1456] sm:$0x1]
    %v1713 = vld [vmem:[%s310] sm:$0xf]
    %v1714 = vld [vmem:[%s310 + $0x4] sm:$0xf]
    %v1715 = vld [vmem:[%s310 + $0x8] sm:$0xf]
    %v1716 = vld [vmem:[%s310 + $0xc] sm:$0xf]
    %v1719 = vunpack.c.l.s4 1966171168
    %v1720 = vunpack.c.0.s8 %v1719
    %v1721 = vlaneseq
    %v1722 = vshrl.u32 %v1721, 7
    %v1723 = vsub.s32 %v1720, %v1722
    %v1724 = vrot.slane %v1712, %v1723
    %v1726 = vunpack.c.l.s4 1966171168
    %v1727 = vunpack.c.0.s8 %v1726
    %v1728 = vlaneseq
    %v1729 = vshrl.u32 %v1728, 7
    %v1730 = vsub.s32 %v1727, %v1729
    %v1731 = vrot.slane %v1724, %v1730
    %v1733 = vshrl.u32 %v1731, 16
    %v1739 = vunpack.c.l.b16 %v1713
    %v1740 = vunpack.c.l.b16 %v1714
    %v1741 = vunpack.c.l.b16 %v1715
    %v1742 = vunpack.c.l.b16 %v1716
    %v1743 = vpack.c.b16 %v1740, %v1739
    %v1744 = vpack.c.b16 %v1742, %v1741
    %v1748 = vsel %vm68, %v1733, 0
    %1750 = vmatprep.subr.bf16.mxu0 0
    %1751 = vmatpush1.bf16.msra.mxu0 %v1743
    %1752 = vmatprep.subr.bf16.mxu0 0
    %1753 = vmatpush1.bf16.msra.mxu0 %v1744
    %1754 = vmatprep.subr.bf16.mxu0 0
    %1755 = vmatpush1.bf16.msra.mxu0 0
    %1756 = vmatprep.subr.bf16.mxu0 0
    %1757 = vmatpush1.bf16.msra.mxu0 0
    %1758 = vmatprep.subr.bf16.mxu0 0
    %1759 = vmatpush1.bf16.msra.mxu0 0
    %1760 = vmatprep.subr.bf16.mxu0 0
    %1761 = vmatpush1.bf16.msra.mxu0 0
    %1762 = vmatprep.subr.bf16.mxu0 0
    %1763 = vmatpush1.bf16.msra.mxu0 0
    %1764 = vmatprep.subr.bf16.mxu0 0
    %1765 = vmatpush1.bf16.msra.mxu0 0
    %1766 = vmatprep.subr.bf16.mxu0 0
    %1767 = vmatpush1.bf16.msra.mxu0 0
    %1768 = vmatprep.subr.bf16.mxu0 0
    %1769 = vmatpush1.bf16.msra.mxu0 0
    %1770 = vmatprep.subr.bf16.mxu0 0
    %1771 = vmatpush1.bf16.msra.mxu0 0
    %1772 = vmatprep.subr.bf16.mxu0 0
    %1773 = vmatpush1.bf16.msra.mxu0 0
    %1774 = vmatprep.subr.bf16.mxu0 0
    %1775 = vmatpush1.bf16.msra.mxu0 0
    %1776 = vmatprep.subr.bf16.mxu0 0
    %1777 = vmatpush1.bf16.msra.mxu0 0
    %1778 = vmatprep.subr.bf16.mxu0 0
    %1779 = vmatpush1.bf16.msra.mxu0 0
    %1780 = vmatprep.subr.bf16.mxu0 0
    %1781 = vmatpush1.bf16.msra.mxu0 0
    %1782 = vmatprep.mubr.bf16.mxu0 0
    %1783 = vmatmul.mubr.bf16.gmra.mrb[0].mxu0 %v1748
    %v1784 = vpop.f32.mrb[0].mxu0
    %v1785 = vadd.f32 0.0, %v1784
    %v1786 = vpop.f32.mrb[0].mxu0
    %v1787 = vpop.f32.mrb[0].mxu0
    %v1788 = vpop.f32.mrb[0].mxu0
    %1789 = vdwg.mxu0
    %v1790 = vadd.f32 %v1711, %v1785
    %v1791 = vadd.f32 %v1790, %v43
    %vm1792 = vcmp.ge.f32.partialorder %v1791, 0.0
    %v1793 = vmul.f32 %v1791, 0.1
    %v1794 = vsel %vm1792, %v1791, %v1793
    %v1795 = vpack.c.bf16 %v1794, %v1794
    %s1796 = scalar_lea.vmem %s3, 4
    %v1797 = vld [vmem:[%s1796] sm:$0x1]
    %v1798 = vsel %vm396, %v1795, %v1797
    %1799 = vst [vmem:[%s1796] sm:$0x1] %v1798
    %s1800 = scalar_lea.vmem [#allocation2], 5
    %v1801 = vld [vmem:[%s1800] sm:$0x1]
    %v1802 = vld [vmem:[#allocation4] sm:$0xf]
    %v1803 = vld [vmem:[#allocation4 + $0x4] sm:$0xf]
    %v1804 = vld [vmem:[#allocation4 + $0x8] sm:$0xf]
    %v1805 = vld [vmem:[#allocation4 + $0xc] sm:$0xf]
    %s1806 = scalar_lea.vmem [#allocation2], 13
    %v1807 = vld [vmem:[%s1806] sm:$0x1]
    %v1808 = vld [vmem:[%s51] sm:$0xf]
    %v1809 = vld [vmem:[%s51 + $0x4] sm:$0xf]
    %v1810 = vld [vmem:[%s51 + $0x8] sm:$0xf]
    %v1811 = vld [vmem:[%s51 + $0xc] sm:$0xf]
    %v1816 = vunpack.c.l.b16 %v1808
    %v1817 = vunpack.c.l.b16 %v1809
    %v1818 = vunpack.c.l.b16 %v1810
    %v1819 = vunpack.c.l.b16 %v1811
    %v1820 = vpack.c.b16 %v1817, %v1816
    %v1821 = vpack.c.b16 %v1819, %v1818
    %v1825 = vsel %vm68, %v1807, 0
    %1827 = vmatprep.subr.bf16.mxu0 0
    %1828 = vmatpush1.bf16.msra.mxu0 %v1820
    %1829 = vmatprep.subr.bf16.mxu0 0
    %1830 = vmatpush1.bf16.msra.mxu0 %v1821
    %1831 = vmatprep.subr.bf16.mxu0 0
    %1832 = vmatpush1.bf16.msra.mxu0 0
    %1833 = vmatprep.subr.bf16.mxu0 0
    %1834 = vmatpush1.bf16.msra.mxu0 0
    %1835 = vmatprep.subr.bf16.mxu0 0
    %1836 = vmatpush1.bf16.msra.mxu0 0
    %1837 = vmatprep.subr.bf16.mxu0 0
    %1838 = vmatpush1.bf16.msra.mxu0 0
    %1839 = vmatprep.subr.bf16.mxu0 0
    %1840 = vmatpush1.bf16.msra.mxu0 0
    %1841 = vmatprep.subr.bf16.mxu0 0
    %1842 = vmatpush1.bf16.msra.mxu0 0
    %1843 = vmatprep.subr.bf16.mxu0 0
    %1844 = vmatpush1.bf16.msra.mxu0 0
    %1845 = vmatprep.subr.bf16.mxu0 0
    %1846 = vmatpush1.bf16.msra.mxu0 0
    %1847 = vmatprep.subr.bf16.mxu0 0
    %1848 = vmatpush1.bf16.msra.mxu0 0
    %1849 = vmatprep.subr.bf16.mxu0 0
    %1850 = vmatpush1.bf16.msra.mxu0 0
    %1851 = vmatprep.subr.bf16.mxu0 0
    %1852 = vmatpush1.bf16.msra.mxu0 0
    %1853 = vmatprep.subr.bf16.mxu0 0
    %1854 = vmatpush1.bf16.msra.mxu0 0
    %1855 = vmatprep.subr.bf16.mxu0 0
    %1856 = vmatpush1.bf16.msra.mxu0 0
    %1857 = vmatprep.subr.bf16.mxu0 0
    %1858 = vmatpush1.bf16.msra.mxu0 0
    %1859 = vmatprep.mubr.bf16.mxu0 0
    %1860 = vmatmul.mubr.bf16.gmra.mrb[0].mxu0 %v1825
    %v1861 = vpop.f32.mrb[0].mxu0
    %v1862 = vadd.f32 0.0, %v1861
    %v1863 = vpop.f32.mrb[0].mxu0
    %v1864 = vpop.f32.mrb[0].mxu0
    %v1865 = vpop.f32.mrb[0].mxu0
    %1866 = vdwg.mxu0
    %v1871 = vunpack.c.l.b16 %v1802
    %v1872 = vunpack.c.l.b16 %v1803
    %v1873 = vunpack.c.l.b16 %v1804
    %v1874 = vunpack.c.l.b16 %v1805
    %v1875 = vpack.c.b16 %v1872, %v1871
    %v1876 = vpack.c.b16 %v1874, %v1873
    %v1880 = vsel %vm68, %v1801, 0
    %1882 = vmatprep.subr.bf16.mxu0 0
    %1883 = vmatpush1.bf16.msra.mxu0 %v1875
    %1884 = vmatprep.subr.bf16.mxu0 0
    %1885 = vmatpush1.bf16.msra.mxu0 %v1876
    %1886 = vmatprep.subr.bf16.mxu0 0
    %1887 = vmatpush1.bf16.msra.mxu0 0
    %1888 = vmatprep.subr.bf16.mxu0 0
    %1889 = vmatpush1.bf16.msra.mxu0 0
    %1890 = vmatprep.subr.bf16.mxu0 0
    %1891 = vmatpush1.bf16.msra.mxu0 0
    %1892 = vmatprep.subr.bf16.mxu0 0
    %1893 = vmatpush1.bf16.msra.mxu0 0
    %1894 = vmatprep.subr.bf16.mxu0 0
    %1895 = vmatpush1.bf16.msra.mxu0 0
    %1896 = vmatprep.subr.bf16.mxu0 0
    %1897 = vmatpush1.bf16.msra.mxu0 0
    %1898 = vmatprep.subr.bf16.mxu0 0
    %1899 = vmatpush1.bf16.msra.mxu0 0
    %1900 = vmatprep.subr.bf16.mxu0 0
    %1901 = vmatpush1.bf16.msra.mxu0 0
    %1902 = vmatprep.subr.bf16.mxu0 0
    %1903 = vmatpush1.bf16.msra.mxu0 0
    %1904 = vmatprep.subr.bf16.mxu0 0
    %1905 = vmatpush1.bf16.msra.mxu0 0
    %1906 = vmatprep.subr.bf16.mxu0 0
    %1907 = vmatpush1.bf16.msra.mxu0 0
    %1908 = vmatprep.subr.bf16.mxu0 0
    %1909 = vmatpush1.bf16.msra.mxu0 0
    %1910 = vmatprep.subr.bf16.mxu0 0
    %1911 = vmatpush1.bf16.msra.mxu0 0
    %1912 = vmatprep.subr.bf16.mxu0 0
    %1913 = vmatpush1.bf16.msra.mxu0 0
    %1914 = vmatprep.mubr.bf16.mxu0 0
    %1915 = vmatmul.mubr.bf16.gmra.mrb[0].mxu0 %v1880
    %v1916 = vpop.f32.mrb[0].mxu0
    %v1917 = vadd.f32 %v1862, %v1916
    %v1918 = vpop.f32.mrb[0].mxu0
    %v1919 = vpop.f32.mrb[0].mxu0
    %v1920 = vpop.f32.mrb[0].mxu0
    %1921 = vdwg.mxu0
    %s1922 = scalar_lea.vmem [#allocation2], 21
    %v1923 = vld [vmem:[%s1922] sm:$0x1]
    %v1924 = vld [vmem:[%s169] sm:$0xf]
    %v1925 = vld [vmem:[%s169 + $0x4] sm:$0xf]
    %v1926 = vld [vmem:[%s169 + $0x8] sm:$0xf]
    %v1927 = vld [vmem:[%s169 + $0xc] sm:$0xf]
    %v1932 = vunpack.c.l.b16 %v1924
    %v1933 = vunpack.c.l.b16 %v1925
    %v1934 = vunpack.c.l.b16 %v1926
    %v1935 = vunpack.c.l.b16 %v1927
    %v1936 = vpack.c.b16 %v1933, %v1932
    %v1937 = vpack.c.b16 %v1935, %v1934
    %v1941 = vsel %vm68, %v1923, 0
    %1943 = vmatprep.subr.bf16.mxu0 0
    %1944 = vmatpush1.bf16.msra.mxu0 %v1936
    %1945 = vmatprep.subr.bf16.mxu0 0
    %1946 = vmatpush1.bf16.msra.mxu0 %v1937
    %1947 = vmatprep.subr.bf16.mxu0 0
    %1948 = vmatpush1.bf16.msra.mxu0 0
    %1949 = vmatprep.subr.bf16.mxu0 0
    %1950 = vmatpush1.bf16.msra.mxu0 0
    %1951 = vmatprep.subr.bf16.mxu0 0
    %1952 = vmatpush1.bf16.msra.mxu0 0
    %1953 = vmatprep.subr.bf16.mxu0 0
    %1954 = vmatpush1.bf16.msra.mxu0 0
    %1955 = vmatprep.subr.bf16.mxu0 0
    %1956 = vmatpush1.bf16.msra.mxu0 0
    %1957 = vmatprep.subr.bf16.mxu0 0
    %1958 = vmatpush1.bf16.msra.mxu0 0
    %1959 = vmatprep.subr.bf16.mxu0 0
    %1960 = vmatpush1.bf16.msra.mxu0 0
    %1961 = vmatprep.subr.bf16.mxu0 0
    %1962 = vmatpush1.bf16.msra.mxu0 0
    %1963 = vmatprep.subr.bf16.mxu0 0
    %1964 = vmatpush1.bf16.msra.mxu0 0
    %1965 = vmatprep.subr.bf16.mxu0 0
    %1966 = vmatpush1.bf16.msra.mxu0 0
    %1967 = vmatprep.subr.bf16.mxu0 0
    %1968 = vmatpush1.bf16.msra.mxu0 0
    %1969 = vmatprep.subr.bf16.mxu0 0
    %1970 = vmatpush1.bf16.msra.mxu0 0
    %1971 = vmatprep.subr.bf16.mxu0 0
    %1972 = vmatpush1.bf16.msra.mxu0 0
    %1973 = vmatprep.subr.bf16.mxu0 0
    %1974 = vmatpush1.bf16.msra.mxu0 0
    %1975 = vmatprep.mubr.bf16.mxu0 0
    %1976 = vmatmul.mubr.bf16.gmra.mrb[0].mxu0 %v1941
    %v1977 = vpop.f32.mrb[0].mxu0
    %v1978 = vadd.f32 0.0, %v1977
    %v1979 = vpop.f32.mrb[0].mxu0
    %v1980 = vpop.f32.mrb[0].mxu0
    %v1981 = vpop.f32.mrb[0].mxu0
    %1982 = vdwg.mxu0
    %v1983 = vadd.f32 %v1917, %v1978
    %v1984 = vld [vmem:[%s230] sm:$0xf]
    %v1985 = vld [vmem:[%s230 + $0x4] sm:$0xf]
    %v1986 = vld [vmem:[%s230 + $0x8] sm:$0xf]
    %v1987 = vld [vmem:[%s230 + $0xc] sm:$0xf]
    %v1990 = vunpack.c.l.s4 1966171168
    %v1991 = vunpack.c.0.s8 %v1990
    %v1992 = vlaneseq
    %v1993 = vshrl.u32 %v1992, 7
    %v1994 = vsub.s32 %v1991, %v1993
    %v1995 = vrot.slane %v1801, %v1994
    %v1997 = vunpack.c.l.s4 1966171168
    %v1998 = vunpack.c.0.s8 %v1997
    %v1999 = vlaneseq
    %v2000 = vshrl.u32 %v1999, 7
    %v2001 = vsub.s32 %v1998, %v2000
    %v2002 = vrot.slane %v1995, %v2001
    %v2004 = vshrl.u32 %v2002, 16
    %v2010 = vunpack.c.l.b16 %v1984
    %v2011 = vunpack.c.l.b16 %v1985
    %v2012 = vunpack.c.l.b16 %v1986
    %v2013 = vunpack.c.l.b16 %v1987
    %v2014 = vpack.c.b16 %v2011, %v2010
    %v2015 = vpack.c.b16 %v2013, %v2012
    %v2019 = vsel %vm68, %v2004, 0
    %2021 = vmatprep.subr.bf16.mxu0 0
    %2022 = vmatpush1.bf16.msra.mxu0 %v2014
    %2023 = vmatprep.subr.bf16.mxu0 0
    %2024 = vmatpush1.bf16.msra.mxu0 %v2015
    %2025 = vmatprep.subr.bf16.mxu0 0
    %2026 = vmatpush1.bf16.msra.mxu0 0
    %2027 = vmatprep.subr.bf16.mxu0 0
    %2028 = vmatpush1.bf16.msra.mxu0 0
    %2029 = vmatprep.subr.bf16.mxu0 0
    %2030 = vmatpush1.bf16.msra.mxu0 0
    %2031 = vmatprep.subr.bf16.mxu0 0
    %2032 = vmatpush1.bf16.msra.mxu0 0
    %2033 = vmatprep.subr.bf16.mxu0 0
    %2034 = vmatpush1.bf16.msra.mxu0 0
    %2035 = vmatprep.subr.bf16.mxu0 0
    %2036 = vmatpush1.bf16.msra.mxu0 0
    %2037 = vmatprep.subr.bf16.mxu0 0
    %2038 = vmatpush1.bf16.msra.mxu0 0
    %2039 = vmatprep.subr.bf16.mxu0 0
    %2040 = vmatpush1.bf16.msra.mxu0 0
    %2041 = vmatprep.subr.bf16.mxu0 0
    %2042 = vmatpush1.bf16.msra.mxu0 0
    %2043 = vmatprep.subr.bf16.mxu0 0
    %2044 = vmatpush1.bf16.msra.mxu0 0
    %2045 = vmatprep.subr.bf16.mxu0 0
    %2046 = vmatpush1.bf16.msra.mxu0 0
    %2047 = vmatprep.subr.bf16.mxu0 0
    %2048 = vmatpush1.bf16.msra.mxu0 0
    %2049 = vmatprep.subr.bf16.mxu0 0
    %2050 = vmatpush1.bf16.msra.mxu0 0
    %2051 = vmatprep.subr.bf16.mxu0 0
    %2052 = vmatpush1.bf16.msra.mxu0 0
    %2053 = vmatprep.mubr.bf16.mxu0 0
    %2054 = vmatmul.mubr.bf16.gmra.mrb[0].mxu0 %v2019
    %v2055 = vpop.f32.mrb[0].mxu0
    %v2056 = vadd.f32 0.0, %v2055
    %v2057 = vpop.f32.mrb[0].mxu0
    %v2058 = vpop.f32.mrb[0].mxu0
    %v2059 = vpop.f32.mrb[0].mxu0
    %2060 = vdwg.mxu0
    %v2061 = vadd.f32 %v1983, %v2056
    %v2062 = vld [vmem:[%s1806] sm:$0x1]
    %v2063 = vld [vmem:[%s310] sm:$0xf]
    %v2064 = vld [vmem:[%s310 + $0x4] sm:$0xf]
    %v2065 = vld [vmem:[%s310 + $0x8] sm:$0xf]
    %v2066 = vld [vmem:[%s310 + $0xc] sm:$0xf]
    %v2069 = vunpack.c.l.s4 1966171168
    %v2070 = vunpack.c.0.s8 %v2069
    %v2071 = vlaneseq
    %v2072 = vshrl.u32 %v2071, 7
    %v2073 = vsub.s32 %v2070, %v2072
    %v2074 = vrot.slane %v2062, %v2073
    %v2076 = vunpack.c.l.s4 1966171168
    %v2077 = vunpack.c.0.s8 %v2076
    %v2078 = vlaneseq
    %v2079 = vshrl.u32 %v2078, 7
    %v2080 = vsub.s32 %v2077, %v2079
    %v2081 = vrot.slane %v2074, %v2080
    %v2083 = vshrl.u32 %v2081, 16
    %v2089 = vunpack.c.l.b16 %v2063
    %v2090 = vunpack.c.l.b16 %v2064
    %v2091 = vunpack.c.l.b16 %v2065
    %v2092 = vunpack.c.l.b16 %v2066
    %v2093 = vpack.c.b16 %v2090, %v2089
    %v2094 = vpack.c.b16 %v2092, %v2091
    %v2098 = vsel %vm68, %v2083, 0
    %2100 = vmatprep.subr.bf16.mxu0 0
    %2101 = vmatpush1.bf16.msra.mxu0 %v2093
    %2102 = vmatprep.subr.bf16.mxu0 0
    %2103 = vmatpush1.bf16.msra.mxu0 %v2094
    %2104 = vmatprep.subr.bf16.mxu0 0
    %2105 = vmatpush1.bf16.msra.mxu0 0
    %2106 = vmatprep.subr.bf16.mxu0 0
    %2107 = vmatpush1.bf16.msra.mxu0 0
    %2108 = vmatprep.subr.bf16.mxu0 0
    %2109 = vmatpush1.bf16.msra.mxu0 0
    %2110 = vmatprep.subr.bf16.mxu0 0
    %2111 = vmatpush1.bf16.msra.mxu0 0
    %2112 = vmatprep.subr.bf16.mxu0 0
    %2113 = vmatpush1.bf16.msra.mxu0 0
    %2114 = vmatprep.subr.bf16.mxu0 0
    %2115 = vmatpush1.bf16.msra.mxu0 0
    %2116 = vmatprep.subr.bf16.mxu0 0
    %2117 = vmatpush1.bf16.msra.mxu0 0
    %2118 = vmatprep.subr.bf16.mxu0 0
    %2119 = vmatpush1.bf16.msra.mxu0 0
    %2120 = vmatprep.subr.bf16.mxu0 0
    %2121 = vmatpush1.bf16.msra.mxu0 0
    %2122 = vmatprep.subr.bf16.mxu0 0
    %2123 = vmatpush1.bf16.msra.mxu0 0
    %2124 = vmatprep.subr.bf16.mxu0 0
    %2125 = vmatpush1.bf16.msra.mxu0 0
    %2126 = vmatprep.subr.bf16.mxu0 0
    %2127 = vmatpush1.bf16.msra.mxu0 0
    %2128 = vmatprep.subr.bf16.mxu0 0
    %2129 = vmatpush1.bf16.msra.mxu0 0
    %2130 = vmatprep.subr.bf16.mxu0 0
    %2131 = vmatpush1.bf16.msra.mxu0 0
    %2132 = vmatprep.mubr.bf16.mxu0 0
    %2133 = vmatmul.mubr.bf16.gmra.mrb[0].mxu0 %v2098
    %v2134 = vpop.f32.mrb[0].mxu0
    %v2135 = vadd.f32 0.0, %v2134
    %v2136 = vpop.f32.mrb[0].mxu0
    %v2137 = vpop.f32.mrb[0].mxu0
    %v2138 = vpop.f32.mrb[0].mxu0
    %2139 = vdwg.mxu0
    %v2140 = vadd.f32 %v2061, %v2135
    %v2141 = vadd.f32 %v2140, %v43
    %vm2142 = vcmp.ge.f32.partialorder %v2141, 0.0
    %v2143 = vmul.f32 %v2141, 0.1
    %v2144 = vsel %vm2142, %v2141, %v2143
    %v2145 = vpack.c.bf16 %v2144, %v2144
    %s2146 = scalar_lea.vmem %s3, 5
    %v2147 = vld [vmem:[%s2146] sm:$0x1]
    %v2148 = vsel %vm396, %v2145, %v2147
    %2149 = vst [vmem:[%s2146] sm:$0x1] %v2148
    %s2150 = scalar_lea.vmem [#allocation2], 6
    %v2151 = vld [vmem:[%s2150] sm:$0x1]
    %v2152 = vld [vmem:[#allocation4] sm:$0xf]
    %v2153 = vld [vmem:[#allocation4 + $0x4] sm:$0xf]
    %v2154 = vld [vmem:[#allocation4 + $0x8] sm:$0xf]
    %v2155 = vld [vmem:[#allocation4 + $0xc] sm:$0xf]
    %s2156 = scalar_lea.vmem [#allocation2], 14
    %v2157 = vld [vmem:[%s2156] sm:$0x1]
    %v2158 = vld [vmem:[%s51] sm:$0xf]
    %v2159 = vld [vmem:[%s51 + $0x4] sm:$0xf]
    %v2160 = vld [vmem:[%s51 + $0x8] sm:$0xf]
    %v2161 = vld [vmem:[%s51 + $0xc] sm:$0xf]
    %v2166 = vunpack.c.l.b16 %v2158
    %v2167 = vunpack.c.l.b16 %v2159
    %v2168 = vunpack.c.l.b16 %v2160
    %v2169 = vunpack.c.l.b16 %v2161
    %v2170 = vpack.c.b16 %v2167, %v2166
    %v2171 = vpack.c.b16 %v2169, %v2168
    %v2175 = vsel %vm68, %v2157, 0
    %2177 = vmatprep.subr.bf16.mxu0 0
    %2178 = vmatpush1.bf16.msra.mxu0 %v2170
    %2179 = vmatprep.subr.bf16.mxu0 0
    %2180 = vmatpush1.bf16.msra.mxu0 %v2171
    %2181 = vmatprep.subr.bf16.mxu0 0
    %2182 = vmatpush1.bf16.msra.mxu0 0
    %2183 = vmatprep.subr.bf16.mxu0 0
    %2184 = vmatpush1.bf16.msra.mxu0 0
    %2185 = vmatprep.subr.bf16.mxu0 0
    %2186 = vmatpush1.bf16.msra.mxu0 0
    %2187 = vmatprep.subr.bf16.mxu0 0
    %2188 = vmatpush1.bf16.msra.mxu0 0
    %2189 = vmatprep.subr.bf16.mxu0 0
    %2190 = vmatpush1.bf16.msra.mxu0 0
    %2191 = vmatprep.subr.bf16.mxu0 0
    %2192 = vmatpush1.bf16.msra.mxu0 0
    %2193 = vmatprep.subr.bf16.mxu0 0
    %2194 = vmatpush1.bf16.msra.mxu0 0
    %2195 = vmatprep.subr.bf16.mxu0 0
    %2196 = vmatpush1.bf16.msra.mxu0 0
    %2197 = vmatprep.subr.bf16.mxu0 0
    %2198 = vmatpush1.bf16.msra.mxu0 0
    %2199 = vmatprep.subr.bf16.mxu0 0
    %2200 = vmatpush1.bf16.msra.mxu0 0
    %2201 = vmatprep.subr.bf16.mxu0 0
    %2202 = vmatpush1.bf16.msra.mxu0 0
    %2203 = vmatprep.subr.bf16.mxu0 0
    %2204 = vmatpush1.bf16.msra.mxu0 0
    %2205 = vmatprep.subr.bf16.mxu0 0
    %2206 = vmatpush1.bf16.msra.mxu0 0
    %2207 = vmatprep.subr.bf16.mxu0 0
    %2208 = vmatpush1.bf16.msra.mxu0 0
    %2209 = vmatprep.mubr.bf16.mxu0 0
    %2210 = vmatmul.mubr.bf16.gmra.mrb[0].mxu0 %v2175
    %v2211 = vpop.f32.mrb[0].mxu0
    %v2212 = vadd.f32 0.0, %v2211
    %v2213 = vpop.f32.mrb[0].mxu0
    %v2214 = vpop.f32.mrb[0].mxu0
    %v2215 = vpop.f32.mrb[0].mxu0
    %2216 = vdwg.mxu0
    %v2221 = vunpack.c.l.b16 %v2152
    %v2222 = vunpack.c.l.b16 %v2153
    %v2223 = vunpack.c.l.b16 %v2154
    %v2224 = vunpack.c.l.b16 %v2155
    %v2225 = vpack.c.b16 %v2222, %v2221
    %v2226 = vpack.c.b16 %v2224, %v2223
    %v2230 = vsel %vm68, %v2151, 0
    %2232 = vmatprep.subr.bf16.mxu0 0
    %2233 = vmatpush1.bf16.msra.mxu0 %v2225
    %2234 = vmatprep.subr.bf16.mxu0 0
    %2235 = vmatpush1.bf16.msra.mxu0 %v2226
    %2236 = vmatprep.subr.bf16.mxu0 0
    %2237 = vmatpush1.bf16.msra.mxu0 0
    %2238 = vmatprep.subr.bf16.mxu0 0
    %2239 = vmatpush1.bf16.msra.mxu0 0
    %2240 = vmatprep.subr.bf16.mxu0 0
    %2241 = vmatpush1.bf16.msra.mxu0 0
    %2242 = vmatprep.subr.bf16.mxu0 0
    %2243 = vmatpush1.bf16.msra.mxu0 0
    %2244 = vmatprep.subr.bf16.mxu0 0
    %2245 = vmatpush1.bf16.msra.mxu0 0
    %2246 = vmatprep.subr.bf16.mxu0 0
    %2247 = vmatpush1.bf16.msra.mxu0 0
    %2248 = vmatprep.subr.bf16.mxu0 0
    %2249 = vmatpush1.bf16.msra.mxu0 0
    %2250 = vmatprep.subr.bf16.mxu0 0
    %2251 = vmatpush1.bf16.msra.mxu0 0
    %2252 = vmatprep.subr.bf16.mxu0 0
    %2253 = vmatpush1.bf16.msra.mxu0 0
    %2254 = vmatprep.subr.bf16.mxu0 0
    %2255 = vmatpush1.bf16.msra.mxu0 0
    %2256 = vmatprep.subr.bf16.mxu0 0
    %2257 = vmatpush1.bf16.msra.mxu0 0
    %2258 = vmatprep.subr.bf16.mxu0 0
    %2259 = vmatpush1.bf16.msra.mxu0 0
    %2260 = vmatprep.subr.bf16.mxu0 0
    %2261 = vmatpush1.bf16.msra.mxu0 0
    %2262 = vmatprep.subr.bf16.mxu0 0
    %2263 = vmatpush1.bf16.msra.mxu0 0
    %2264 = vmatprep.mubr.bf16.mxu0 0
    %2265 = vmatmul.mubr.bf16.gmra.mrb[0].mxu0 %v2230
    %v2266 = vpop.f32.mrb[0].mxu0
    %v2267 = vadd.f32 %v2212, %v2266
    %v2268 = vpop.f32.mrb[0].mxu0
    %v2269 = vpop.f32.mrb[0].mxu0
    %v2270 = vpop.f32.mrb[0].mxu0
    %2271 = vdwg.mxu0
    %s2272 = scalar_lea.vmem [#allocation2], 22
    %v2273 = vld [vmem:[%s2272] sm:$0x1]
    %v2274 = vld [vmem:[%s169] sm:$0xf]
    %v2275 = vld [vmem:[%s169 + $0x4] sm:$0xf]
    %v2276 = vld [vmem:[%s169 + $0x8] sm:$0xf]
    %v2277 = vld [vmem:[%s169 + $0xc] sm:$0xf]
    %v2282 = vunpack.c.l.b16 %v2274
    %v2283 = vunpack.c.l.b16 %v2275
    %v2284 = vunpack.c.l.b16 %v2276
    %v2285 = vunpack.c.l.b16 %v2277
    %v2286 = vpack.c.b16 %v2283, %v2282
    %v2287 = vpack.c.b16 %v2285, %v2284
    %v2291 = vsel %vm68, %v2273, 0
    %2293 = vmatprep.subr.bf16.mxu0 0
    %2294 = vmatpush1.bf16.msra.mxu0 %v2286
    %2295 = vmatprep.subr.bf16.mxu0 0
    %2296 = vmatpush1.bf16.msra.mxu0 %v2287
    %2297 = vmatprep.subr.bf16.mxu0 0
    %2298 = vmatpush1.bf16.msra.mxu0 0
    %2299 = vmatprep.subr.bf16.mxu0 0
    %2300 = vmatpush1.bf16.msra.mxu0 0
    %2301 = vmatprep.subr.bf16.mxu0 0
    %2302 = vmatpush1.bf16.msra.mxu0 0
    %2303 = vmatprep.subr.bf16.mxu0 0
    %2304 = vmatpush1.bf16.msra.mxu0 0
    %2305 = vmatprep.subr.bf16.mxu0 0
    %2306 = vmatpush1.bf16.msra.mxu0 0
    %2307 = vmatprep.subr.bf16.mxu0 0
    %2308 = vmatpush1.bf16.msra.mxu0 0
    %2309 = vmatprep.subr.bf16.mxu0 0
    %2310 = vmatpush1.bf16.msra.mxu0 0
    %2311 = vmatprep.subr.bf16.mxu0 0
    %2312 = vmatpush1.bf16.msra.mxu0 0
    %2313 = vmatprep.subr.bf16.mxu0 0
    %2314 = vmatpush1.bf16.msra.mxu0 0
    %2315 = vmatprep.subr.bf16.mxu0 0
    %2316 = vmatpush1.bf16.msra.mxu0 0
    %2317 = vmatprep.subr.bf16.mxu0 0
    %2318 = vmatpush1.bf16.msra.mxu0 0
    %2319 = vmatprep.subr.bf16.mxu0 0
    %2320 = vmatpush1.bf16.msra.mxu0 0
    %2321 = vmatprep.subr.bf16.mxu0 0
    %2322 = vmatpush1.bf16.msra.mxu0 0
    %2323 = vmatprep.subr.bf16.mxu0 0
    %2324 = vmatpush1.bf16.msra.mxu0 0
    %2325 = vmatprep.mubr.bf16.mxu0 0
    %2326 = vmatmul.mubr.bf16.gmra.mrb[0].mxu0 %v2291
    %v2327 = vpop.f32.mrb[0].mxu0
    %v2328 = vadd.f32 0.0, %v2327
    %v2329 = vpop.f32.mrb[0].mxu0
    %v2330 = vpop.f32.mrb[0].mxu0
    %v2331 = vpop.f32.mrb[0].mxu0
    %2332 = vdwg.mxu0
    %v2333 = vadd.f32 %v2267, %v2328
    %v2334 = vld [vmem:[%s230] sm:$0xf]
    %v2335 = vld [vmem:[%s230 + $0x4] sm:$0xf]
    %v2336 = vld [vmem:[%s230 + $0x8] sm:$0xf]
    %v2337 = vld [vmem:[%s230 + $0xc] sm:$0xf]
    %v2340 = vunpack.c.l.s4 1966171168
    %v2341 = vunpack.c.0.s8 %v2340
    %v2342 = vlaneseq
    %v2343 = vshrl.u32 %v2342, 7
    %v2344 = vsub.s32 %v2341, %v2343
    %v2345 = vrot.slane %v2151, %v2344
    %v2347 = vunpack.c.l.s4 1966171168
    %v2348 = vunpack.c.0.s8 %v2347
    %v2349 = vlaneseq
    %v2350 = vshrl.u32 %v2349, 7
    %v2351 = vsub.s32 %v2348, %v2350
    %v2352 = vrot.slane %v2345, %v2351
    %v2354 = vshrl.u32 %v2352, 16
    %v2360 = vunpack.c.l.b16 %v2334
    %v2361 = vunpack.c.l.b16 %v2335
    %v2362 = vunpack.c.l.b16 %v2336
    %v2363 = vunpack.c.l.b16 %v2337
    %v2364 = vpack.c.b16 %v2361, %v2360
    %v2365 = vpack.c.b16 %v2363, %v2362
    %v2369 = vsel %vm68, %v2354, 0
    %2371 = vmatprep.subr.bf16.mxu0 0
    %2372 = vmatpush1.bf16.msra.mxu0 %v2364
    %2373 = vmatprep.subr.bf16.mxu0 0
    %2374 = vmatpush1.bf16.msra.mxu0 %v2365
    %2375 = vmatprep.subr.bf16.mxu0 0
    %2376 = vmatpush1.bf16.msra.mxu0 0
    %2377 = vmatprep.subr.bf16.mxu0 0
    %2378 = vmatpush1.bf16.msra.mxu0 0
    %2379 = vmatprep.subr.bf16.mxu0 0
    %2380 = vmatpush1.bf16.msra.mxu0 0
    %2381 = vmatprep.subr.bf16.mxu0 0
    %2382 = vmatpush1.bf16.msra.mxu0 0
    %2383 = vmatprep.subr.bf16.mxu0 0
    %2384 = vmatpush1.bf16.msra.mxu0 0
    %2385 = vmatprep.subr.bf16.mxu0 0
    %2386 = vmatpush1.bf16.msra.mxu0 0
    %2387 = vmatprep.subr.bf16.mxu0 0
    %2388 = vmatpush1.bf16.msra.mxu0 0
    %2389 = vmatprep.subr.bf16.mxu0 0
    %2390 = vmatpush1.bf16.msra.mxu0 0
    %2391 = vmatprep.subr.bf16.mxu0 0
    %2392 = vmatpush1.bf16.msra.mxu0 0
    %2393 = vmatprep.subr.bf16.mxu0 0
    %2394 = vmatpush1.bf16.msra.mxu0 0
    %2395 = vmatprep.subr.bf16.mxu0 0
    %2396 = vmatpush1.bf16.msra.mxu0 0
    %2397 = vmatprep.subr.bf16.mxu0 0
    %2398 = vmatpush1.bf16.msra.mxu0 0
    %2399 = vmatprep.subr.bf16.mxu0 0
    %2400 = vmatpush1.bf16.msra.mxu0 0
    %2401 = vmatprep.subr.bf16.mxu0 0
    %2402 = vmatpush1.bf16.msra.mxu0 0
    %2403 = vmatprep.mubr.bf16.mxu0 0
    %2404 = vmatmul.mubr.bf16.gmra.mrb[0].mxu0 %v2369
    %v2405 = vpop.f32.mrb[0].mxu0
    %v2406 = vadd.f32 0.0, %v2405
    %v2407 = vpop.f32.mrb[0].mxu0
    %v2408 = vpop.f32.mrb[0].mxu0
    %v2409 = vpop.f32.mrb[0].mxu0
    %2410 = vdwg.mxu0
    %v2411 = vadd.f32 %v2333, %v2406
    %v2412 = vld [vmem:[%s2156] sm:$0x1]
    %v2413 = vld [vmem:[%s310] sm:$0xf]
    %v2414 = vld [vmem:[%s310 + $0x4] sm:$0xf]
    %v2415 = vld [vmem:[%s310 + $0x8] sm:$0xf]
    %v2416 = vld [vmem:[%s310 + $0xc] sm:$0xf]
    %v2419 = vunpack.c.l.s4 1966171168
    %v2420 = vunpack.c.0.s8 %v2419
    %v2421 = vlaneseq
    %v2422 = vshrl.u32 %v2421, 7
    %v2423 = vsub.s32 %v2420, %v2422
    %v2424 = vrot.slane %v2412, %v2423
    %v2426 = vunpack.c.l.s4 1966171168
    %v2427 = vunpack.c.0.s8 %v2426
    %v2428 = vlaneseq
    %v2429 = vshrl.u32 %v2428, 7
    %v2430 = vsub.s32 %v2427, %v2429
    %v2431 = vrot.slane %v2424, %v2430
    %v2433 = vshrl.u32 %v2431, 16
    %v2439 = vunpack.c.l.b16 %v2413
    %v2440 = vunpack.c.l.b16 %v2414
    %v2441 = vunpack.c.l.b16 %v2415
    %v2442 = vunpack.c.l.b16 %v2416
    %v2443 = vpack.c.b16 %v2440, %v2439
    %v2444 = vpack.c.b16 %v2442, %v2441
    %v2448 = vsel %vm68, %v2433, 0
    %2450 = vmatprep.subr.bf16.mxu0 0
    %2451 = vmatpush1.bf16.msra.mxu0 %v2443
    %2452 = vmatprep.subr.bf16.mxu0 0
    %2453 = vmatpush1.bf16.msra.mxu0 %v2444
    %2454 = vmatprep.subr.bf16.mxu0 0
    %2455 = vmatpush1.bf16.msra.mxu0 0
    %2456 = vmatprep.subr.bf16.mxu0 0
    %2457 = vmatpush1.bf16.msra.mxu0 0
    %2458 = vmatprep.subr.bf16.mxu0 0
    %2459 = vmatpush1.bf16.msra.mxu0 0
    %2460 = vmatprep.subr.bf16.mxu0 0
    %2461 = vmatpush1.bf16.msra.mxu0 0
    %2462 = vmatprep.subr.bf16.mxu0 0
    %2463 = vmatpush1.bf16.msra.mxu0 0
    %2464 = vmatprep.subr.bf16.mxu0 0
    %2465 = vmatpush1.bf16.msra.mxu0 0
    %2466 = vmatprep.subr.bf16.mxu0 0
    %2467 = vmatpush1.bf16.msra.mxu0 0
    %2468 = vmatprep.subr.bf16.mxu0 0
    %2469 = vmatpush1.bf16.msra.mxu0 0
    %2470 = vmatprep.subr.bf16.mxu0 0
    %2471 = vmatpush1.bf16.msra.mxu0 0
    %2472 = vmatprep.subr.bf16.mxu0 0
    %2473 = vmatpush1.bf16.msra.mxu0 0
    %2474 = vmatprep.subr.bf16.mxu0 0
    %2475 = vmatpush1.bf16.msra.mxu0 0
    %2476 = vmatprep.subr.bf16.mxu0 0
    %2477 = vmatpush1.bf16.msra.mxu0 0
    %2478 = vmatprep.subr.bf16.mxu0 0
    %2479 = vmatpush1.bf16.msra.mxu0 0
    %2480 = vmatprep.subr.bf16.mxu0 0
    %2481 = vmatpush1.bf16.msra.mxu0 0
    %2482 = vmatprep.mubr.bf16.mxu0 0
    %2483 = vmatmul.mubr.bf16.gmra.mrb[0].mxu0 %v2448
    %v2484 = vpop.f32.mrb[0].mxu0
    %v2485 = vadd.f32 0.0, %v2484
    %v2486 = vpop.f32.mrb[0].mxu0
    %v2487 = vpop.f32.mrb[0].mxu0
    %v2488 = vpop.f32.mrb[0].mxu0
    %2489 = vdwg.mxu0
    %v2490 = vadd.f32 %v2411, %v2485
    %v2491 = vadd.f32 %v2490, %v43
    %vm2492 = vcmp.ge.f32.partialorder %v2491, 0.0
    %v2493 = vmul.f32 %v2491, 0.1
    %v2494 = vsel %vm2492, %v2491, %v2493
    %v2495 = vpack.c.bf16 %v2494, %v2494
    %s2496 = scalar_lea.vmem %s3, 6
    %v2497 = vld [vmem:[%s2496] sm:$0x1]
    %v2498 = vsel %vm396, %v2495, %v2497
    %2499 = vst [vmem:[%s2496] sm:$0x1] %v2498
    %s2500 = scalar_lea.vmem [#allocation2], 7
    %v2501 = vld [vmem:[%s2500] sm:$0x1]
    %v2502 = vld [vmem:[#allocation4] sm:$0xf]
    %v2503 = vld [vmem:[#allocation4 + $0x4] sm:$0xf]
    %v2504 = vld [vmem:[#allocation4 + $0x8] sm:$0xf]
    %v2505 = vld [vmem:[#allocation4 + $0xc] sm:$0xf]
    %s2506 = scalar_lea.vmem [#allocation2], 15
    %v2507 = vld [vmem:[%s2506] sm:$0x1]
    %v2508 = vld [vmem:[%s51] sm:$0xf]
    %v2509 = vld [vmem:[%s51 + $0x4] sm:$0xf]
    %v2510 = vld [vmem:[%s51 + $0x8] sm:$0xf]
    %v2511 = vld [vmem:[%s51 + $0xc] sm:$0xf]
    %v2516 = vunpack.c.l.b16 %v2508
    %v2517 = vunpack.c.l.b16 %v2509
    %v2518 = vunpack.c.l.b16 %v2510
    %v2519 = vunpack.c.l.b16 %v2511
    %v2520 = vpack.c.b16 %v2517, %v2516
    %v2521 = vpack.c.b16 %v2519, %v2518
    %v2525 = vsel %vm68, %v2507, 0
    %2527 = vmatprep.subr.bf16.mxu0 0
    %2528 = vmatpush1.bf16.msra.mxu0 %v2520
    %2529 = vmatprep.subr.bf16.mxu0 0
    %2530 = vmatpush1.bf16.msra.mxu0 %v2521
    %2531 = vmatprep.subr.bf16.mxu0 0
    %2532 = vmatpush1.bf16.msra.mxu0 0
    %2533 = vmatprep.subr.bf16.mxu0 0
    %2534 = vmatpush1.bf16.msra.mxu0 0
    %2535 = vmatprep.subr.bf16.mxu0 0
    %2536 = vmatpush1.bf16.msra.mxu0 0
    %2537 = vmatprep.subr.bf16.mxu0 0
    %2538 = vmatpush1.bf16.msra.mxu0 0
    %2539 = vmatprep.subr.bf16.mxu0 0
    %2540 = vmatpush1.bf16.msra.mxu0 0
    %2541 = vmatprep.subr.bf16.mxu0 0
    %2542 = vmatpush1.bf16.msra.mxu0 0
    %2543 = vmatprep.subr.bf16.mxu0 0
    %2544 = vmatpush1.bf16.msra.mxu0 0
    %2545 = vmatprep.subr.bf16.mxu0 0
    %2546 = vmatpush1.bf16.msra.mxu0 0
    %2547 = vmatprep.subr.bf16.mxu0 0
    %2548 = vmatpush1.bf16.msra.mxu0 0
    %2549 = vmatprep.subr.bf16.mxu0 0
    %2550 = vmatpush1.bf16.msra.mxu0 0
    %2551 = vmatprep.subr.bf16.mxu0 0
    %2552 = vmatpush1.bf16.msra.mxu0 0
    %2553 = vmatprep.subr.bf16.mxu0 0
    %2554 = vmatpush1.bf16.msra.mxu0 0
    %2555 = vmatprep.subr.bf16.mxu0 0
    %2556 = vmatpush1.bf16.msra.mxu0 0
    %2557 = vmatprep.subr.bf16.mxu0 0
    %2558 = vmatpush1.bf16.msra.mxu0 0
    %2559 = vmatprep.mubr.bf16.mxu0 0
    %2560 = vmatmul.mubr.bf16.gmra.mrb[0].mxu0 %v2525
    %v2561 = vpop.f32.mrb[0].mxu0
    %v2562 = vadd.f32 0.0, %v2561
    %v2563 = vpop.f32.mrb[0].mxu0
    %v2564 = vpop.f32.mrb[0].mxu0
    %v2565 = vpop.f32.mrb[0].mxu0
    %2566 = vdwg.mxu0
    %v2571 = vunpack.c.l.b16 %v2502
    %v2572 = vunpack.c.l.b16 %v2503
    %v2573 = vunpack.c.l.b16 %v2504
    %v2574 = vunpack.c.l.b16 %v2505
    %v2575 = vpack.c.b16 %v2572, %v2571
    %v2576 = vpack.c.b16 %v2574, %v2573
    %v2580 = vsel %vm68, %v2501, 0
    %2582 = vmatprep.subr.bf16.mxu0 0
    %2583 = vmatpush1.bf16.msra.mxu0 %v2575
    %2584 = vmatprep.subr.bf16.mxu0 0
    %2585 = vmatpush1.bf16.msra.mxu0 %v2576
    %2586 = vmatprep.subr.bf16.mxu0 0
    %2587 = vmatpush1.bf16.msra.mxu0 0
    %2588 = vmatprep.subr.bf16.mxu0 0
    %2589 = vmatpush1.bf16.msra.mxu0 0
    %2590 = vmatprep.subr.bf16.mxu0 0
    %2591 = vmatpush1.bf16.msra.mxu0 0
    %2592 = vmatprep.subr.bf16.mxu0 0
    %2593 = vmatpush1.bf16.msra.mxu0 0
    %2594 = vmatprep.subr.bf16.mxu0 0
    %2595 = vmatpush1.bf16.msra.mxu0 0
    %2596 = vmatprep.subr.bf16.mxu0 0
    %2597 = vmatpush1.bf16.msra.mxu0 0
    %2598 = vmatprep.subr.bf16.mxu0 0
    %2599 = vmatpush1.bf16.msra.mxu0 0
    %2600 = vmatprep.subr.bf16.mxu0 0
    %2601 = vmatpush1.bf16.msra.mxu0 0
    %2602 = vmatprep.subr.bf16.mxu0 0
    %2603 = vmatpush1.bf16.msra.mxu0 0
    %2604 = vmatprep.subr.bf16.mxu0 0
    %2605 = vmatpush1.bf16.msra.mxu0 0
    %2606 = vmatprep.subr.bf16.mxu0 0
    %2607 = vmatpush1.bf16.msra.mxu0 0
    %2608 = vmatprep.subr.bf16.mxu0 0
    %2609 = vmatpush1.bf16.msra.mxu0 0
    %2610 = vmatprep.subr.bf16.mxu0 0
    %2611 = vmatpush1.bf16.msra.mxu0 0
    %2612 = vmatprep.subr.bf16.mxu0 0
    %2613 = vmatpush1.bf16.msra.mxu0 0
    %2614 = vmatprep.mubr.bf16.mxu0 0
    %2615 = vmatmul.mubr.bf16.gmra.mrb[0].mxu0 %v2580
    %v2616 = vpop.f32.mrb[0].mxu0
    %v2617 = vadd.f32 %v2562, %v2616
    %v2618 = vpop.f32.mrb[0].mxu0
    %v2619 = vpop.f32.mrb[0].mxu0
    %v2620 = vpop.f32.mrb[0].mxu0
    %2621 = vdwg.mxu0
    %s2622 = scalar_lea.vmem [#allocation2], 23
    %v2623 = vld [vmem:[%s2622] sm:$0x1]
    %v2624 = vld [vmem:[%s169] sm:$0xf]
    %v2625 = vld [vmem:[%s169 + $0x4] sm:$0xf]
    %v2626 = vld [vmem:[%s169 + $0x8] sm:$0xf]
    %v2627 = vld [vmem:[%s169 + $0xc] sm:$0xf]
    %v2632 = vunpack.c.l.b16 %v2624
    %v2633 = vunpack.c.l.b16 %v2625
    %v2634 = vunpack.c.l.b16 %v2626
    %v2635 = vunpack.c.l.b16 %v2627
    %v2636 = vpack.c.b16 %v2633, %v2632
    %v2637 = vpack.c.b16 %v2635, %v2634
    %v2641 = vsel %vm68, %v2623, 0
    %2643 = vmatprep.subr.bf16.mxu0 0
    %2644 = vmatpush1.bf16.msra.mxu0 %v2636
    %2645 = vmatprep.subr.bf16.mxu0 0
    %2646 = vmatpush1.bf16.msra.mxu0 %v2637
    %2647 = vmatprep.subr.bf16.mxu0 0
    %2648 = vmatpush1.bf16.msra.mxu0 0
    %2649 = vmatprep.subr.bf16.mxu0 0
    %2650 = vmatpush1.bf16.msra.mxu0 0
    %2651 = vmatprep.subr.bf16.mxu0 0
    %2652 = vmatpush1.bf16.msra.mxu0 0
    %2653 = vmatprep.subr.bf16.mxu0 0
    %2654 = vmatpush1.bf16.msra.mxu0 0
    %2655 = vmatprep.subr.bf16.mxu0 0
    %2656 = vmatpush1.bf16.msra.mxu0 0
    %2657 = vmatprep.subr.bf16.mxu0 0
    %2658 = vmatpush1.bf16.msra.mxu0 0
    %2659 = vmatprep.subr.bf16.mxu0 0
    %2660 = vmatpush1.bf16.msra.mxu0 0
    %2661 = vmatprep.subr.bf16.mxu0 0
    %2662 = vmatpush1.bf16.msra.mxu0 0
    %2663 = vmatprep.subr.bf16.mxu0 0
    %2664 = vmatpush1.bf16.msra.mxu0 0
    %2665 = vmatprep.subr.bf16.mxu0 0
    %2666 = vmatpush1.bf16.msra.mxu0 0
    %2667 = vmatprep.subr.bf16.mxu0 0
    %2668 = vmatpush1.bf16.msra.mxu0 0
    %2669 = vmatprep.subr.bf16.mxu0 0
    %2670 = vmatpush1.bf16.msra.mxu0 0
    %2671 = vmatprep.subr.bf16.mxu0 0
    %2672 = vmatpush1.bf16.msra.mxu0 0
    %2673 = vmatprep.subr.bf16.mxu0 0
    %2674 = vmatpush1.bf16.msra.mxu0 0
    %2675 = vmatprep.mubr.bf16.mxu0 0
    %2676 = vmatmul.mubr.bf16.gmra.mrb[0].mxu0 %v2641
    %v2677 = vpop.f32.mrb[0].mxu0
    %v2678 = vadd.f32 0.0, %v2677
    %v2679 = vpop.f32.mrb[0].mxu0
    %v2680 = vpop.f32.mrb[0].mxu0
    %v2681 = vpop.f32.mrb[0].mxu0
    %2682 = vdwg.mxu0
    %v2683 = vadd.f32 %v2617, %v2678
    %v2684 = vld [vmem:[%s230] sm:$0xf]
    %v2685 = vld [vmem:[%s230 + $0x4] sm:$0xf]
    %v2686 = vld [vmem:[%s230 + $0x8] sm:$0xf]
    %v2687 = vld [vmem:[%s230 + $0xc] sm:$0xf]
    %v2690 = vunpack.c.l.s4 1966171168
    %v2691 = vunpack.c.0.s8 %v2690
    %v2692 = vlaneseq
    %v2693 = vshrl.u32 %v2692, 7
    %v2694 = vsub.s32 %v2691, %v2693
    %v2695 = vrot.slane %v2501, %v2694
    %v2697 = vunpack.c.l.s4 1966171168
    %v2698 = vunpack.c.0.s8 %v2697
    %v2699 = vlaneseq
    %v2700 = vshrl.u32 %v2699, 7
    %v2701 = vsub.s32 %v2698, %v2700
    %v2702 = vrot.slane %v2695, %v2701
    %v2704 = vshrl.u32 %v2702, 16
    %v2710 = vunpack.c.l.b16 %v2684
    %v2711 = vunpack.c.l.b16 %v2685
    %v2712 = vunpack.c.l.b16 %v2686
    %v2713 = vunpack.c.l.b16 %v2687
    %v2714 = vpack.c.b16 %v2711, %v2710
    %v2715 = vpack.c.b16 %v2713, %v2712
    %v2719 = vsel %vm68, %v2704, 0
    %2721 = vmatprep.subr.bf16.mxu0 0
    %2722 = vmatpush1.bf16.msra.mxu0 %v2714
    %2723 = vmatprep.subr.bf16.mxu0 0
    %2724 = vmatpush1.bf16.msra.mxu0 %v2715
    %2725 = vmatprep.subr.bf16.mxu0 0
    %2726 = vmatpush1.bf16.msra.mxu0 0
    %2727 = vmatprep.subr.bf16.mxu0 0
    %2728 = vmatpush1.bf16.msra.mxu0 0
    %2729 = vmatprep.subr.bf16.mxu0 0
    %2730 = vmatpush1.bf16.msra.mxu0 0
    %2731 = vmatprep.subr.bf16.mxu0 0
    %2732 = vmatpush1.bf16.msra.mxu0 0
    %2733 = vmatprep.subr.bf16.mxu0 0
    %2734 = vmatpush1.bf16.msra.mxu0 0
    %2735 = vmatprep.subr.bf16.mxu0 0
    %2736 = vmatpush1.bf16.msra.mxu0 0
    %2737 = vmatprep.subr.bf16.mxu0 0
    %2738 = vmatpush1.bf16.msra.mxu0 0
    %2739 = vmatprep.subr.bf16.mxu0 0
    %2740 = vmatpush1.bf16.msra.mxu0 0
    %2741 = vmatprep.subr.bf16.mxu0 0
    %2742 = vmatpush1.bf16.msra.mxu0 0
    %2743 = vmatprep.subr.bf16.mxu0 0
    %2744 = vmatpush1.bf16.msra.mxu0 0
    %2745 = vmatprep.subr.bf16.mxu0 0
    %2746 = vmatpush1.bf16.msra.mxu0 0
    %2747 = vmatprep.subr.bf16.mxu0 0
    %2748 = vmatpush1.bf16.msra.mxu0 0
    %2749 = vmatprep.subr.bf16.mxu0 0
    %2750 = vmatpush1.bf16.msra.mxu0 0
    %2751 = vmatprep.subr.bf16.mxu0 0
    %2752 = vmatpush1.bf16.msra.mxu0 0
    %2753 = vmatprep.mubr.bf16.mxu0 0
    %2754 = vmatmul.mubr.bf16.gmra.mrb[0].mxu0 %v2719
    %v2755 = vpop.f32.mrb[0].mxu0
    %v2756 = vadd.f32 0.0, %v2755
    %v2757 = vpop.f32.mrb[0].mxu0
    %v2758 = vpop.f32.mrb[0].mxu0
    %v2759 = vpop.f32.mrb[0].mxu0
    %2760 = vdwg.mxu0
    %v2761 = vadd.f32 %v2683, %v2756
    %v2762 = vld [vmem:[%s2506] sm:$0x1]
    %v2763 = vld [vmem:[%s310] sm:$0xf]
    %v2764 = vld [vmem:[%s310 + $0x4] sm:$0xf]
    %v2765 = vld [vmem:[%s310 + $0x8] sm:$0xf]
    %v2766 = vld [vmem:[%s310 + $0xc] sm:$0xf]
    %v2769 = vunpack.c.l.s4 1966171168
    %v2770 = vunpack.c.0.s8 %v2769
    %v2771 = vlaneseq
    %v2772 = vshrl.u32 %v2771, 7
    %v2773 = vsub.s32 %v2770, %v2772
    %v2774 = vrot.slane %v2762, %v2773
    %v2776 = vunpack.c.l.s4 1966171168
    %v2777 = vunpack.c.0.s8 %v2776
    %v2778 = vlaneseq
    %v2779 = vshrl.u32 %v2778, 7
    %v2780 = vsub.s32 %v2777, %v2779
    %v2781 = vrot.slane %v2774, %v2780
    %v2783 = vshrl.u32 %v2781, 16
    %v2789 = vunpack.c.l.b16 %v2763
    %v2790 = vunpack.c.l.b16 %v2764
    %v2791 = vunpack.c.l.b16 %v2765
    %v2792 = vunpack.c.l.b16 %v2766
    %v2793 = vpack.c.b16 %v2790, %v2789
    %v2794 = vpack.c.b16 %v2792, %v2791
    %v2798 = vsel %vm68, %v2783, 0
    %2800 = vmatprep.subr.bf16.mxu0 0
    %2801 = vmatpush1.bf16.msra.mxu0 %v2793
    %2802 = vmatprep.subr.bf16.mxu0 0
    %2803 = vmatpush1.bf16.msra.mxu0 %v2794
    %2804 = vmatprep.subr.bf16.mxu0 0
    %2805 = vmatpush1.bf16.msra.mxu0 0
    %2806 = vmatprep.subr.bf16.mxu0 0
    %2807 = vmatpush1.bf16.msra.mxu0 0
    %2808 = vmatprep.subr.bf16.mxu0 0
    %2809 = vmatpush1.bf16.msra.mxu0 0
    %2810 = vmatprep.subr.bf16.mxu0 0
    %2811 = vmatpush1.bf16.msra.mxu0 0
    %2812 = vmatprep.subr.bf16.mxu0 0
    %2813 = vmatpush1.bf16.msra.mxu0 0
    %2814 = vmatprep.subr.bf16.mxu0 0
    %2815 = vmatpush1.bf16.msra.mxu0 0
    %2816 = vmatprep.subr.bf16.mxu0 0
    %2817 = vmatpush1.bf16.msra.mxu0 0
    %2818 = vmatprep.subr.bf16.mxu0 0
    %2819 = vmatpush1.bf16.msra.mxu0 0
    %2820 = vmatprep.subr.bf16.mxu0 0
    %2821 = vmatpush1.bf16.msra.mxu0 0
    %2822 = vmatprep.subr.bf16.mxu0 0
    %2823 = vmatpush1.bf16.msra.mxu0 0
    %2824 = vmatprep.subr.bf16.mxu0 0
    %2825 = vmatpush1.bf16.msra.mxu0 0
    %2826 = vmatprep.subr.bf16.mxu0 0
    %2827 = vmatpush1.bf16.msra.mxu0 0
    %2828 = vmatprep.subr.bf16.mxu0 0
    %2829 = vmatpush1.bf16.msra.mxu0 0
    %2830 = vmatprep.subr.bf16.mxu0 0
    %2831 = vmatpush1.bf16.msra.mxu0 0
    %2832 = vmatprep.mubr.bf16.mxu0 0
    %2833 = vmatmul.mubr.bf16.gmra.mrb[0].mxu0 %v2798
    %v2834 = vpop.f32.mrb[0].mxu0
    %v2835 = vadd.f32 0.0, %v2834
    %v2836 = vpop.f32.mrb[0].mxu0
    %v2837 = vpop.f32.mrb[0].mxu0
    %v2838 = vpop.f32.mrb[0].mxu0
    %2839 = vdwg.mxu0
    %v2840 = vadd.f32 %v2761, %v2835
    %v2841 = vadd.f32 %v2840, %v43
    %vm2842 = vcmp.ge.f32.partialorder %v2841, 0.0
    %v2843 = vmul.f32 %v2841, 0.1
    %v2844 = vsel %vm2842, %v2841, %v2843
    %v2845 = vpack.c.bf16 %v2844, %v2844
    %s2846 = scalar_lea.vmem %s3, 7
    %v2847 = vld [vmem:[%s2846] sm:$0x1]
    %v2848 = vsel %vm396, %v2845, %v2847
    %2849 = vst [vmem:[%s2846] sm:$0x1] %v2848
    // Predicated region
    $region22: #{tpu_custom_call.1} parent=1 // pred_check
      _
    $region23: #{tpu_custom_call.1} parent=1 // pred_check_branch
      %2851 = sbr.rel (0) target = $region25
    $region24: #{tpu_custom_call.1} parent=1 // pred_region
      _
    $region25: #{tpu_custom_call.1} parent=1 // pred_fallthru
      _
    // Predicated region
    $region26: #{tpu_custom_call.1} parent=1 // pred_check
      _
    $region27: #{tpu_custom_call.1} parent=1 // pred_check_branch
      %2853 = sbr.rel (0) target = $region29
    $region28: #{tpu_custom_call.1} parent=1 // pred_region
      _
    $region29: #{tpu_custom_call.1} parent=1 // pred_fallthru
      _
    %2854 = vsyncpa [#allocation3], 1
    %2855 = vsyncpa [#allocation5], 1

</llo_original>
